<compile_context>
chip_gen: v7x
topology: tpu7x:2x2x1
jax: 0.10.0
libtpu: 0.0.40
codegen_flags: <defaults>
</compile_context>

<pallas_src>
import functools
import math

import jax
import jax.numpy as jnp
from jax.experimental import pallas as pl
from jax.experimental.pallas import tpu as pltpu


# ----------------------------------------------------------------------------
# Fused decoder-layer kernel (one grid step per batch element)
# ----------------------------------------------------------------------------
def _bf16_dot(a, b):
    """MXU matmul: bf16 operands, f32 accumulation."""
    return jnp.dot(a.astype(jnp.bfloat16), b.astype(jnp.bfloat16),
                   preferred_element_type=jnp.float32)


def _decoder_layer_kernel(
    hs_ref, pos_ref, text_ref, tmask_ref, arows_ref, ascale_ref, refden_ref,
    w_sa_qk, b_sa_qk, w_sa_v, b_sa_v, w_sa_o, b_sa_o,
    w_ca_q, b_ca_q, w_ca_kv, b_ca_kv, w_ca_o, b_ca_o,
    w_da_v, b_da_v, w_da_ow, b_da_ow, w_da_o, b_da_o,
    w_fc1, b_fc1, w_fc2, b_fc2, ln_gb,
    o_ref, *, num_heads, n_points, eps, scale,
):
    f32 = jnp.float32
    hs = hs_ref[...].astype(f32)            # (Q, D)
    pos = pos_ref[...].astype(f32)          # (Q, D)
    text = text_ref[...].astype(f32)        # (T, D)
    Q, D = hs.shape
    dh = D // num_heads
    ln = ln_gb[...].astype(f32)             # (8, D): g/b for ln1, ln2, ln3, lnf

    def layer_norm(x, idx):
        g = ln[2 * idx:2 * idx + 1, :]
        b = ln[2 * idx + 1:2 * idx + 2, :]
        mean = jnp.mean(x, axis=-1, keepdims=True)
        xc = x - mean
        var = jnp.mean(xc * xc, axis=-1, keepdims=True)
        return xc * jax.lax.rsqrt(var + eps) * g + b

    def mha(q, k, v, add_mask, w_o_ref, b_o_ref):
        # q: (Lq, D), k/v: (Lk, D).  Heads are vreg lane slices; the output
        # projection is fused via per-head (dh, D) partial GEMMs.
        wo = w_o_ref[...]
        acc = jnp.zeros((q.shape[0], D), f32)
        for h in range(num_heads):
            sl = slice(h * dh, (h + 1) * dh)
            s = jax.lax.dot_general(
                q[:, sl].astype(jnp.bfloat16), k[:, sl].astype(jnp.bfloat16),
                (((1,), (1,)), ((), ())),
                preferred_element_type=f32) * scale               # (Lq, Lk)
            if add_mask is not None:
                s = s + add_mask
            s = s - jnp.max(s, axis=-1, keepdims=True)
            e = jnp.exp(s)
            p = e / jnp.sum(e, axis=-1, keepdims=True)
            ctx = _bf16_dot(p, v[:, sl])                          # (Lq, dh)
            acc = acc + _bf16_dot(ctx, wo[sl, :])                 # (Lq, D)
        return acc + b_o_ref[...]

    # ----------------------- self attention -----------------------
    residual = hs
    xqk = hs + pos
    qk = _bf16_dot(xqk, w_sa_qk[...]) + b_sa_qk[...]              # (Q, 2D)
    v = _bf16_dot(hs, w_sa_v[...]) + b_sa_v[...]                  # (Q, D)
    attn = mha(qk[:, :D], qk[:, D:], v, None, w_sa_o, b_sa_o)     # no self mask
    hs = layer_norm(residual + attn, 0)

    # -------------------- text cross attention --------------------
    residual = hs
    xq = hs + pos
    q = _bf16_dot(xq, w_ca_q[...]) + b_ca_q[...]                  # (Q, D)
    kv = _bf16_dot(text, w_ca_kv[...]) + b_ca_kv[...]             # (T, 2D)
    attn = mha(q, kv[:, :D], kv[:, D:], tmask_ref[...].astype(f32),
               w_ca_o, b_ca_o)
    hs = layer_norm(residual + attn, 1)

    # --------------- deformable audio cross attention ---------------
    # grid_sample's y-grid is fixed at 0 and W_in == 1: only two value rows
    # contribute; their masked projection + bilinear mix reduce to `center`.
    residual = hs
    xq = hs + pos
    proj = _bf16_dot(arows_ref[...], w_da_v[...]) + b_da_v[...]   # (8, D)
    center = jnp.sum(proj * ascale_ref[...], axis=0, keepdims=True)  # (1, D)
    ow = _bf16_dot(xq, w_da_ow[...]) + b_da_ow[...]               # (Q, 2*H*P)
    refpt = refden_ref[:, 0:1].astype(f32)                        # (Q, 1)
    den = refden_ref[:, 1:2].astype(f32)                          # (Q, 1)
    HP = num_heads * n_points
    wdo = w_da_o[...]
    acc = jnp.zeros((Q, D), f32)
    for h in range(num_heads):
        off_h = ow[:, h * n_points:(h + 1) * n_points]                 # (Q, P)
        awl_h = ow[:, HP + h * n_points:HP + (h + 1) * n_points]       # (Q, P)
        awl_h = awl_h - jnp.max(awl_h, axis=-1, keepdims=True)
        e = jnp.exp(awl_h)
        aw_h = e / jnp.sum(e, axis=-1, keepdims=True)
        loc_h = refpt + off_h / den
        # grid_sample x-weight with W_in == 1: relu(1 - |ix|), ix = loc - 0.5
        wx_h = jnp.maximum(0.0, 1.0 - jnp.abs(loc_h - 0.5))
        coef_h = jnp.sum(aw_h * wx_h, axis=-1, keepdims=True)          # (Q, 1)
        core_h = coef_h * center[:, h * dh:(h + 1) * dh]               # (Q, dh)
        acc = acc + _bf16_dot(core_h, wdo[h * dh:(h + 1) * dh, :])     # (Q, D)
    dout = acc + b_da_o[...]
    hs = layer_norm(residual + dout, 2)

    # ----------------------------- FFN -----------------------------
    residual = hs
    h1 = jnp.maximum(_bf16_dot(hs, w_fc1[...]) + b_fc1[...], 0.0)   # ReLU
    h2 = _bf16_dot(h1, w_fc2[...]) + b_fc2[...]
    hs = layer_norm(residual + h2, 3)

    o_ref[...] = hs.astype(o_ref.dtype)


# ----------------------------------------------------------------------------
# Parameter fusion (done once, outside the jitted forward)
# ----------------------------------------------------------------------------
def prepare_params(p):
    def b2(x):
        return x.reshape(1, -1)

    return dict(
        sa_qk_w=jnp.concatenate([p["sa_q_w"], p["sa_k_w"]], axis=1),
        sa_qk_b=b2(jnp.concatenate([p["sa_q_b"], p["sa_k_b"]], axis=0)),
        sa_v_w=p["sa_v_w"], sa_v_b=b2(p["sa_v_b"]),
        sa_o_w=p["sa_o_w"], sa_o_b=b2(p["sa_o_b"]),
        ca_q_w=p["ca_q_w"], ca_q_b=b2(p["ca_q_b"]),
        ca_kv_w=jnp.concatenate([p["ca_k_w"], p["ca_v_w"]], axis=1),
        ca_kv_b=b2(jnp.concatenate([p["ca_k_b"], p["ca_v_b"]], axis=0)),
        ca_o_w=p["ca_o_w"], ca_o_b=b2(p["ca_o_b"]),
        da_v_w=p["da_v_w"], da_v_b=b2(p["da_v_b"]),
        da_ow_w=jnp.concatenate([p["da_off_w"], p["da_aw_w"]], axis=1),
        da_ow_b=b2(jnp.concatenate([p["da_off_b"], p["da_aw_b"]], axis=0)),
        da_o_w=p["da_o_w"], da_o_b=b2(p["da_o_b"]),
        fc1_w=p["fc1_w"], fc1_b=b2(p["fc1_b"]),
        fc2_w=p["fc2_w"], fc2_b=b2(p["fc2_b"]),
        ln_gb=jnp.stack([p["ln1_g"], p["ln1_b"], p["ln2_g"], p["ln2_b"],
                         p["ln3_g"], p["ln3_b"], p["lnf_g"], p["lnf_b"]], axis=0),
    )


_WEIGHT_ORDER = [
    "sa_qk_w", "sa_qk_b", "sa_v_w", "sa_v_b", "sa_o_w", "sa_o_b",
    "ca_q_w", "ca_q_b", "ca_kv_w", "ca_kv_b", "ca_o_w", "ca_o_b",
    "da_v_w", "da_v_b", "da_ow_w", "da_ow_b", "da_o_w", "da_o_b",
    "fc1_w", "fc1_b", "fc2_w", "fc2_b", "ln_gb",
]


# ----------------------------------------------------------------------------
# Forward wrapper (single pallas_call)
# ----------------------------------------------------------------------------
def decoder_layer_forward(fp, hidden_states, pos, reference_points,
                          audio_hs, audio_mask, text_hs, text_mask_add,
                          *, num_heads, n_points, eps):
    B, Q, D = hidden_states.shape
    T = text_hs.shape[1]
    S = audio_hs.shape[1]
    dh = D // num_heads
    scale = 1.0 / math.sqrt(dh)

    # grid_sample y-coordinate is hard-wired to 0 -> static bilinear mix of two rows
    iy = (S - 1) / 2.0
    y0 = int(math.floor(iy))
    y1 = min(y0 + 1, S - 1)
    wy1 = float(iy - y0)
    wy0 = 1.0 - wy1

    maskf = audio_mask.astype(jnp.float32)
    audio_rows = jnp.zeros((B, 8, D), jnp.float32)
    audio_rows = audio_rows.at[:, 0].set(audio_hs[:, y0].astype(jnp.float32))
    audio_rows = audio_rows.at[:, 1].set(audio_hs[:, y1].astype(jnp.float32))
    row_scales = jnp.zeros((B, 8, 1), jnp.float32)
    row_scales = row_scales.at[:, 0, 0].set(wy0 * maskf[:, y0])
    row_scales = row_scales.at[:, 1, 0].set(wy1 * maskf[:, y1])
    denom = jnp.sum(maskf, axis=-1)                                    # (B,)
    refden = jnp.concatenate(
        [reference_points.reshape(B, Q, 1).astype(jnp.float32),
         jnp.broadcast_to(denom[:, None, None], (B, Q, 1))], axis=-1)  # (B, Q, 2)
    tmask = text_mask_add.reshape(B, 1, T).astype(jnp.float32)

    def bspec(*dims):
        nd = len(dims)
        return pl.BlockSpec((None,) + dims, lambda b: (b,) + (0,) * nd)

    def wspec(*dims):
        nd = len(dims)
        return pl.BlockSpec(dims, lambda b: (0,) * nd)

    data_specs = [
        bspec(Q, D), bspec(Q, D), bspec(T, D), bspec(1, T),
        bspec(8, D), bspec(8, 1), bspec(Q, 2),
    ]
    weight_args = [fp[k] for k in _WEIGHT_ORDER]
    weight_specs = [wspec(*fp[k].shape) for k in _WEIGHT_ORDER]

    kernel = functools.partial(_decoder_layer_kernel, num_heads=num_heads,
                               n_points=n_points, eps=eps, scale=scale)
    out = pl.pallas_call(
        kernel,
        out_shape=jax.ShapeDtypeStruct((B, Q, D), hidden_states.dtype),
        grid=(B,),
        in_specs=data_specs + weight_specs,
        out_specs=bspec(Q, D),
        compiler_params=pltpu.CompilerParams(dimension_semantics=("parallel",)),
    )(hidden_states, pos, text_hs, tmask, audio_rows, row_scales, refden,
      *weight_args)
    return out


# ----------------------------------------------------------------------------
# Pure-JAX reference (faithful to the PyTorch module structure, incl. the
# exact grid_sample(bilinear, zeros, align_corners=False) semantics; matmuls
# use the same bf16-operand / f32-accumulate convention as the kernel).
# ----------------------------------------------------------------------------
def _mm(x, w):
    return jnp.einsum("...d,de->...e", x.astype(jnp.bfloat16),
                      w.astype(jnp.bfloat16),
                      preferred_element_type=jnp.float32)


def _ref_layer_norm(x, g, b, eps):
    mean = jnp.mean(x, axis=-1, keepdims=True)
    var = jnp.mean((x - mean) ** 2, axis=-1, keepdims=True)
    return (x - mean) * jax.lax.rsqrt(var + eps) * g + b


def _ref_mha(q_in, k_in, v_in, attn_mask, wq, bq, wk, bk, wv, bv, wo, bo, H):
    B, Lq, D = q_in.shape
    Lk = k_in.shape[1]
    dh = D // H

    def proj(x, w, b, L):
        y = _mm(x, w) + b
        return y.reshape(B, L, H, dh).transpose(0, 2, 1, 3)

    q = proj(q_in, wq, bq, Lq)
    k = proj(k_in, wk, bk, Lk)
    v = proj(v_in, wv, bv, Lk)
    s = jnp.einsum("bhqd,bhkd->bhqk", q.astype(jnp.bfloat16),
                   k.astype(jnp.bfloat16),
                   preferred_element_type=jnp.float32) * (1.0 / math.sqrt(dh))
    if attn_mask is not None:
        s = s + attn_mask
    p = jax.nn.softmax(s, axis=-1)
    ctx = jnp.einsum("bhqk,bhkd->bhqd", p.astype(jnp.bfloat16),
                     v.astype(jnp.bfloat16),
                     preferred_element_type=jnp.float32)
    ctx = ctx.transpose(0, 2, 1, 3).reshape(B, Lq, D)
    return _mm(ctx, wo) + bo


def _grid_sample_bilinear_zeros(img, grid):
    # img: (N, C, Hi, Wi); grid: (N, Ho, Wo, 2), grid[...,0]=x(W), grid[...,1]=y(H)
    N, C, Hi, Wi = img.shape
    x, y = grid[..., 0], grid[..., 1]
    ix = ((x + 1.0) * Wi - 1.0) / 2.0
    iy = ((y + 1.0) * Hi - 1.0) / 2.0
    x0 = jnp.floor(ix)
    y0 = jnp.floor(iy)
    x1, y1 = x0 + 1.0, y0 + 1.0
    wx1, wy1 = ix - x0, iy - y0
    wx0, wy0 = 1.0 - wx1, 1.0 - wy1

    def sample(xi, yi):
        valid = (xi >= 0) & (xi <= Wi - 1) & (yi >= 0) & (yi <= Hi - 1)
        xc = jnp.clip(xi, 0, Wi - 1).astype(jnp.int32)
        yc = jnp.clip(yi, 0, Hi - 1).astype(jnp.int32)

        def one(im, yy, xx, vv):
            return im[:, yy, xx] * vv[None].astype(im.dtype)

        return jax.vmap(one)(img, yc, xc, valid)          # (N, C, Ho, Wo)

    return (sample(x0, y0) * (wx0 * wy0)[:, None]
            + sample(x1, y0) * (wx1 * wy0)[:, None]
            + sample(x0, y1) * (wx0 * wy1)[:, None]
            + sample(x1, y1) * (wx1 * wy1)[:, None])


def _ref_msda(value, sampling_locations, attention_weights):
    B, S, H, dh = value.shape
    _, Q, _, P, _ = sampling_locations.shape
    grids = 2.0 * sampling_locations - 1.0
    grids = jnp.transpose(grids, (0, 2, 1, 3, 4)).reshape(B * H, Q, P, 1)
    grids = jnp.concatenate([grids, jnp.zeros_like(grids)], axis=-1)
    img = value.reshape(B, S, H * dh).transpose(0, 2, 1).reshape(B * H, dh, S)[..., None]
    sampled = _grid_sample_bilinear_zeros(img, grids)     # (B*H, dh, Q, P)
    aw = jnp.transpose(attention_weights, (0, 2, 1, 3)).reshape(B * H, 1, Q, P)
    out = (sampled * aw).sum(-1).reshape(B, H * dh, Q).transpose(0, 2, 1)
    return out


def _ref_deformable(hs, attn_mask_bool, enc_hs, pos, ref_points, p, *, num_heads, n_points):
    H, P = num_heads, n_points
    if pos is not None:
        hs = hs + pos
    B, Q, D = hs.shape
    S = enc_hs.shape[1]
    dh = D // H
    value = _mm(enc_hs, p["da_v_w"]) + p["da_v_b"]
    value = jnp.where(attn_mask_bool[..., None], value, 0.0)
    value = value.reshape(B, S, H, dh)
    offs = (_mm(hs, p["da_off_w"]) + p["da_off_b"]).reshape(B, Q, H, P, 1)
    awl = (_mm(hs, p["da_aw_w"]) + p["da_aw_b"]).reshape(B, Q, H, P)
    aw = jax.nn.softmax(awl, axis=-1)
    denom = attn_mask_bool.sum(-1).astype(jnp.float32)[:, None, None, None, None]
    loc = ref_points[:, :, None, :, :1] + offs / denom
    out = _ref_msda(value, loc, aw)
    return _mm(out, p["da_o_w"]) + p["da_o_b"]


def ref_decoder_layer(p, hidden_states, pos, reference_points, audio_hs, audio_mask,
                      text_hs, text_mask_add_4d, *, num_heads, n_points, eps):
    H = num_heads
    residual = hidden_states
    qk = hidden_states + pos
    hs = _ref_mha(qk, qk, hidden_states, None,
                  p["sa_q_w"], p["sa_q_b"], p["sa_k_w"], p["sa_k_b"],
                  p["sa_v_w"], p["sa_v_b"], p["sa_o_w"], p["sa_o_b"], H)
    hs = _ref_layer_norm(residual + hs, p["ln1_g"], p["ln1_b"], eps)

    second = hs
    qin = hs + pos
    attn = _ref_mha(qin, text_hs, text_hs, text_mask_add_4d,
                    p["ca_q_w"], p["ca_q_b"], p["ca_k_w"], p["ca_k_b"],
                    p["ca_v_w"], p["ca_v_b"], p["ca_o_w"], p["ca_o_b"], H)
    hs = _ref_layer_norm(second + attn, p["ln2_g"], p["ln2_b"], eps)

    third = hs
    dout = _ref_deformable(hs, audio_mask, audio_hs, pos, reference_points, p,
                           num_heads=H, n_points=n_points)
    hs = _ref_layer_norm(third + dout, p["ln3_g"], p["ln3_b"], eps)

    residual = hs
    h = jax.nn.relu(_mm(hs, p["fc1_w"]) + p["fc1_b"])
    h = _mm(h, p["fc2_w"]) + p["fc2_b"]
    hs = _ref_layer_norm(residual + h, p["lnf_g"], p["lnf_b"], eps)
    return hs


# ----------------------------------------------------------------------------
# Parameter init
# ----------------------------------------------------------------------------
def init_params(key, D, H, P, F):
    keys = iter(jax.random.split(key, 64))
    p = {}
    for name, din, dout in [
        ("sa_q", D, D), ("sa_k", D, D), ("sa_v", D, D), ("sa_o", D, D),
        ("ca_q", D, D), ("ca_k", D, D), ("ca_v", D, D), ("ca_o", D, D),
        ("da_v", D, D), ("da_off", D, H * P), ("da_aw", D, H * P), ("da_o", D, D),
        ("fc1", D, F), ("fc2", F, D),
    ]:
        p[name + "_w"] = jax.random.normal(next(keys), (din, dout), jnp.float32) / math.sqrt(din)
        p[name + "_b"] = jax.random.normal(next(keys), (dout,), jnp.float32) * 0.02
    for ln in ["ln1", "ln2", "ln3", "lnf"]:
        p[ln + "_g"] = jax.random.uniform(next(keys), (D,), jnp.float32, 0.8, 1.2)
        p[ln + "_b"] = jax.random.normal(next(keys), (D,), jnp.float32) * 0.02
    return p


if __name__ == "__main__":
    B, Q, T, S = 2, 16, 8, 16          # batch, queries, text len, audio len
    D, H, P, F = 128, 4, 4, 256        # d_model, heads, n_points, ffn dim
    eps = 1e-5

    key = jax.random.PRNGKey(0)
    kp, k1, k2, k3, k4, k5 = jax.random.split(key, 6)
    params = init_params(kp, D, H, P, F)
    fused_params = prepare_params(params)          # weights pre-fused once

    hidden_states = jax.random.normal(k1, (B, Q, D), jnp.float32)
    pos = jax.random.normal(k2, (B, Q, D), jnp.float32) * 0.1
    text_hs = jax.random.normal(k3, (B, T, D), jnp.float32)
    audio_hs = jax.random.normal(k4, (B, S, D), jnp.float32)
    reference_points = jax.random.uniform(k5, (B, Q, 1, 1), jnp.float32, 0.1, 0.9)

    audio_mask = jnp.arange(S)[None, :] < jnp.array([S, S - 4])[:, None]     # (B, S) bool
    text_valid = jnp.arange(T)[None, :] < jnp.array([T, T - 3])[:, None]     # (B, T) bool
    text_mask_add = jnp.where(text_valid, 0.0, -1e9).astype(jnp.float32)     # additive

    fwd = jax.jit(functools.partial(decoder_layer_forward,
                                    num_heads=H, n_points=P, eps=eps))
    out = fwd(fused_params, hidden_states, pos, reference_points,
              audio_hs, audio_mask, text_hs, text_mask_add)
    out = jax.block_until_ready(out)

    ref = ref_decoder_layer(params, hidden_states, pos, reference_points,
                            audio_hs, audio_mask, text_hs,
                            text_mask_add[:, None, None, :],
                            num_heads=H, n_points=P, eps=eps)

    assert out.shape == (B, Q, D)
    err = float(jnp.max(jnp.abs(out - ref)))
    assert jnp.allclose(out, ref, atol=1e-2, rtol=1e-2), f"max abs err {err}"
    print("KERNEL_OK")
</pallas_src>

<mosaic_0001>
module attributes {stable_mosaic.version = 11 : i64} {
  func.func @_decoder_layer_kernel(%arg0: i32, %arg1: memref<1x16x128xf32, #tpu.memory_space<vmem>>, %arg2: memref<1x16x128xf32, #tpu.memory_space<vmem>>, %arg3: memref<1x8x128xf32, #tpu.memory_space<vmem>>, %arg4: memref<1x1x8xf32, #tpu.memory_space<vmem>>, %arg5: memref<1x8x128xf32, #tpu.memory_space<vmem>>, %arg6: memref<1x8x1xf32, #tpu.memory_space<vmem>>, %arg7: memref<1x16x2xf32, #tpu.memory_space<vmem>>, %arg8: memref<128x256xf32, #tpu.memory_space<vmem>>, %arg9: memref<1x256xf32, #tpu.memory_space<vmem>>, %arg10: memref<128x128xf32, #tpu.memory_space<vmem>>, %arg11: memref<1x128xf32, #tpu.memory_space<vmem>>, %arg12: memref<128x128xf32, #tpu.memory_space<vmem>>, %arg13: memref<1x128xf32, #tpu.memory_space<vmem>>, %arg14: memref<128x128xf32, #tpu.memory_space<vmem>>, %arg15: memref<1x128xf32, #tpu.memory_space<vmem>>, %arg16: memref<128x256xf32, #tpu.memory_space<vmem>>, %arg17: memref<1x256xf32, #tpu.memory_space<vmem>>, %arg18: memref<128x128xf32, #tpu.memory_space<vmem>>, %arg19: memref<1x128xf32, #tpu.memory_space<vmem>>, %arg20: memref<128x128xf32, #tpu.memory_space<vmem>>, %arg21: memref<1x128xf32, #tpu.memory_space<vmem>>, %arg22: memref<128x32xf32, #tpu.memory_space<vmem>>, %arg23: memref<1x32xf32, #tpu.memory_space<vmem>>, %arg24: memref<128x128xf32, #tpu.memory_space<vmem>>, %arg25: memref<1x128xf32, #tpu.memory_space<vmem>>, %arg26: memref<128x256xf32, #tpu.memory_space<vmem>>, %arg27: memref<1x256xf32, #tpu.memory_space<vmem>>, %arg28: memref<256x128xf32, #tpu.memory_space<vmem>>, %arg29: memref<1x128xf32, #tpu.memory_space<vmem>>, %arg30: memref<8x128xf32, #tpu.memory_space<vmem>>, %arg31: memref<1x16x128xf32, #tpu.memory_space<vmem>>) attributes {dimension_semantics = [#tpu.dimension_semantics<parallel>], iteration_bounds = array<i64: 2>, scalar_prefetch = 0 : i64, scratch_operands = 0 : i64, tpu.core_type = #tpu.core_type<tc>, window_params = [{transform_indices = @transform_0, window_bounds = array<i64: 1, 16, 128>}, {transform_indices = @transform_1, window_bounds = array<i64: 1, 16, 128>}, {transform_indices = @transform_2, window_bounds = array<i64: 1, 8, 128>}, {transform_indices = @transform_3, window_bounds = array<i64: 1, 1, 8>}, {transform_indices = @transform_4, window_bounds = array<i64: 1, 8, 128>}, {transform_indices = @transform_5, window_bounds = array<i64: 1, 8, 1>}, {transform_indices = @transform_6, window_bounds = array<i64: 1, 16, 2>}, {pipeline_mode = #tpu.pipeline_mode<synchronous>, transform_indices = @transform_7, window_bounds = array<i64: 128, 256>}, {pipeline_mode = #tpu.pipeline_mode<synchronous>, transform_indices = @transform_8, window_bounds = array<i64: 1, 256>}, {pipeline_mode = #tpu.pipeline_mode<synchronous>, transform_indices = @transform_9, window_bounds = array<i64: 128, 128>}, {pipeline_mode = #tpu.pipeline_mode<synchronous>, transform_indices = @transform_10, window_bounds = array<i64: 1, 128>}, {pipeline_mode = #tpu.pipeline_mode<synchronous>, transform_indices = @transform_11, window_bounds = array<i64: 128, 128>}, {pipeline_mode = #tpu.pipeline_mode<synchronous>, transform_indices = @transform_12, window_bounds = array<i64: 1, 128>}, {pipeline_mode = #tpu.pipeline_mode<synchronous>, transform_indices = @transform_13, window_bounds = array<i64: 128, 128>}, {pipeline_mode = #tpu.pipeline_mode<synchronous>, transform_indices = @transform_14, window_bounds = array<i64: 1, 128>}, {pipeline_mode = #tpu.pipeline_mode<synchronous>, transform_indices = @transform_15, window_bounds = array<i64: 128, 256>}, {pipeline_mode = #tpu.pipeline_mode<synchronous>, transform_indices = @transform_16, window_bounds = array<i64: 1, 256>}, {pipeline_mode = #tpu.pipeline_mode<synchronous>, transform_indices = @transform_17, window_bounds = array<i64: 128, 128>}, {pipeline_mode = #tpu.pipeline_mode<synchronous>, transform_indices = @transform_18, window_bounds = array<i64: 1, 128>}, {pipeline_mode = #tpu.pipeline_mode<synchronous>, transform_indices = @transform_19, window_bounds = array<i64: 128, 128>}, {pipeline_mode = #tpu.pipeline_mode<synchronous>, transform_indices = @transform_20, window_bounds = array<i64: 1, 128>}, {pipeline_mode = #tpu.pipeline_mode<synchronous>, transform_indices = @transform_21, window_bounds = array<i64: 128, 32>}, {pipeline_mode = #tpu.pipeline_mode<synchronous>, transform_indices = @transform_22, window_bounds = array<i64: 1, 32>}, {pipeline_mode = #tpu.pipeline_mode<synchronous>, transform_indices = @transform_23, window_bounds = array<i64: 128, 128>}, {pipeline_mode = #tpu.pipeline_mode<synchronous>, transform_indices = @transform_24, window_bounds = array<i64: 1, 128>}, {pipeline_mode = #tpu.pipeline_mode<synchronous>, transform_indices = @transform_25, window_bounds = array<i64: 128, 256>}, {pipeline_mode = #tpu.pipeline_mode<synchronous>, transform_indices = @transform_26, window_bounds = array<i64: 1, 256>}, {pipeline_mode = #tpu.pipeline_mode<synchronous>, transform_indices = @transform_27, window_bounds = array<i64: 256, 128>}, {pipeline_mode = #tpu.pipeline_mode<synchronous>, transform_indices = @transform_28, window_bounds = array<i64: 1, 128>}, {pipeline_mode = #tpu.pipeline_mode<synchronous>, transform_indices = @transform_29, window_bounds = array<i64: 8, 128>}, {transform_indices = @transform_30, window_bounds = array<i64: 1, 16, 128>}]} {
    %c0 = arith.constant 0 : index
    %c0_0 = arith.constant 0 : index
    %c0_1 = arith.constant 0 : index
    %0 = vector.load %arg1[%c0, %c0_0, %c0_1] : memref<1x16x128xf32, #tpu.memory_space<vmem>>, vector<1x16x128xf32>
    %1 = vector.shape_cast %0 : vector<1x16x128xf32> to vector<16x128xf32>
    %c0_2 = arith.constant 0 : index
    %c0_3 = arith.constant 0 : index
    %c0_4 = arith.constant 0 : index
    %2 = vector.load %arg2[%c0_2, %c0_3, %c0_4] : memref<1x16x128xf32, #tpu.memory_space<vmem>>, vector<1x16x128xf32>
    %3 = vector.shape_cast %2 : vector<1x16x128xf32> to vector<16x128xf32>
    %c0_5 = arith.constant 0 : index
    %c0_6 = arith.constant 0 : index
    %c0_7 = arith.constant 0 : index
    %4 = vector.load %arg3[%c0_5, %c0_6, %c0_7] : memref<1x8x128xf32, #tpu.memory_space<vmem>>, vector<1x8x128xf32>
    %5 = vector.shape_cast %4 : vector<1x8x128xf32> to vector<8x128xf32>
    %c0_8 = arith.constant 0 : index
    %c0_9 = arith.constant 0 : index
    %6 = vector.load %arg30[%c0_8, %c0_9] : memref<8x128xf32, #tpu.memory_space<vmem>>, vector<8x128xf32>
    %7 = arith.addf %1, %3 : vector<16x128xf32>
    %c0_10 = arith.constant 0 : index
    %c0_11 = arith.constant 0 : index
    %8 = vector.load %arg8[%c0_10, %c0_11] : memref<128x256xf32, #tpu.memory_space<vmem>>, vector<128x256xf32>
    %9 = arith.truncf %7 : vector<16x128xf32> to vector<16x128xbf16>
    %10 = arith.truncf %8 : vector<128x256xf32> to vector<128x256xbf16>
    %cst = arith.constant dense<0.000000e+00> : vector<16x256xf32>
    %11 = tpu.matmul %9, %10, %cst {dimension_numbers = #tpu.dot_dimension_numbers<[1], [0], [0], [1], [0, 0, 1, 1], [], []>} : vector<16x128xbf16>, vector<128x256xbf16>, vector<16x256xf32> -> vector<16x256xf32>
    %c0_12 = arith.constant 0 : index
    %c0_13 = arith.constant 0 : index
    %12 = vector.load %arg9[%c0_12, %c0_13] : memref<1x256xf32, #tpu.memory_space<vmem>>, vector<1x256xf32>
    %13 = vector.broadcast %12 : vector<1x256xf32> to vector<16x256xf32>
    %14 = arith.addf %11, %13 : vector<16x256xf32>
    %c0_14 = arith.constant 0 : index
    %c0_15 = arith.constant 0 : index
    %15 = vector.load %arg10[%c0_14, %c0_15] : memref<128x128xf32, #tpu.memory_space<vmem>>, vector<128x128xf32>
    %16 = arith.truncf %1 : vector<16x128xf32> to vector<16x128xbf16>
    %17 = arith.truncf %15 : vector<128x128xf32> to vector<128x128xbf16>
    %cst_16 = arith.constant dense<0.000000e+00> : vector<16x128xf32>
    %18 = tpu.matmul %16, %17, %cst_16 {dimension_numbers = #tpu.dot_dimension_numbers<[1], [0], [0], [1], [0, 0, 1, 1], [], []>} : vector<16x128xbf16>, vector<128x128xbf16>, vector<16x128xf32> -> vector<16x128xf32>
    %c0_17 = arith.constant 0 : index
    %c0_18 = arith.constant 0 : index
    %19 = vector.load %arg11[%c0_17, %c0_18] : memref<1x128xf32, #tpu.memory_space<vmem>>, vector<1x128xf32>
    %20 = vector.broadcast %19 : vector<1x128xf32> to vector<16x128xf32>
    %21 = arith.addf %18, %20 : vector<16x128xf32>
    %22 = vector.extract_strided_slice %14 {offsets = [0, 0], sizes = [16, 128], strides = [1, 1]} : vector<16x256xf32> to vector<16x128xf32>
    %23 = vector.extract_strided_slice %14 {offsets = [0, 128], sizes = [16, 128], strides = [1, 1]} : vector<16x256xf32> to vector<16x128xf32>
    %c0_19 = arith.constant 0 : index
    %c0_20 = arith.constant 0 : index
    %24 = vector.load %arg12[%c0_19, %c0_20] : memref<128x128xf32, #tpu.memory_space<vmem>>, vector<128x128xf32>
    %cst_21 = arith.constant 0.000000e+00 : f32
    %25 = vector.broadcast %cst_21 : f32 to vector<16x128xf32>
    %26 = vector.extract_strided_slice %22 {offsets = [0, 0], sizes = [16, 32], strides = [1, 1]} : vector<16x128xf32> to vector<16x32xf32>
    %27 = arith.truncf %26 : vector<16x32xf32> to vector<16x32xbf16>
    %28 = vector.extract_strided_slice %23 {offsets = [0, 0], sizes = [16, 32], strides = [1, 1]} : vector<16x128xf32> to vector<16x32xf32>
    %29 = arith.truncf %28 : vector<16x32xf32> to vector<16x32xbf16>
    %cst_22 = arith.constant dense<0.000000e+00> : vector<16x16xf32>
    %30 = tpu.matmul %27, %29, %cst_22 {dimension_numbers = #tpu.dot_dimension_numbers<[1], [1], [0], [0], [0, 0, 1, 0], [], []>} : vector<16x32xbf16>, vector<16x32xbf16>, vector<16x16xf32> -> vector<16x16xf32>
    %cst_23 = arith.constant 0.176776692 : f32
    %31 = vector.broadcast %cst_23 : f32 to vector<16x16xf32>
    %32 = arith.mulf %30, %31 : vector<16x16xf32>
    %cst_24 = arith.constant dense<0xFF800000> : vector<16xf32>
    %33 = vector.multi_reduction <maximumf>, %32, %cst_24 [1] : vector<16x16xf32> to vector<16xf32>
    %34 = vector.shape_cast %33 : vector<16xf32> to vector<16x1xf32>
    %35 = vector.broadcast %34 : vector<16x1xf32> to vector<16x16xf32>
    %36 = arith.subf %32, %35 : vector<16x16xf32>
    %37 = math.exp %36 : vector<16x16xf32>
    %cst_25 = arith.constant dense<0.000000e+00> : vector<16xf32>
    %38 = vector.multi_reduction <add>, %37, %cst_25 [1] : vector<16x16xf32> to vector<16xf32>
    %39 = vector.shape_cast %38 : vector<16xf32> to vector<16x1xf32>
    %40 = vector.broadcast %39 : vector<16x1xf32> to vector<16x16xf32>
    %41 = arith.divf %37, %40 : vector<16x16xf32>
    %42 = vector.extract_strided_slice %21 {offsets = [0, 0], sizes = [16, 32], strides = [1, 1]} : vector<16x128xf32> to vector<16x32xf32>
    %43 = arith.truncf %41 : vector<16x16xf32> to vector<16x16xbf16>
    %44 = arith.truncf %42 : vector<16x32xf32> to vector<16x32xbf16>
    %cst_26 = arith.constant dense<0.000000e+00> : vector<16x32xf32>
    %45 = tpu.matmul %43, %44, %cst_26 {dimension_numbers = #tpu.dot_dimension_numbers<[1], [0], [0], [1], [0, 0, 1, 1], [], []>} : vector<16x16xbf16>, vector<16x32xbf16>, vector<16x32xf32> -> vector<16x32xf32>
    %46 = vector.extract_strided_slice %24 {offsets = [0, 0], sizes = [32, 128], strides = [1, 1]} : vector<128x128xf32> to vector<32x128xf32>
    %47 = arith.truncf %45 : vector<16x32xf32> to vector<16x32xbf16>
    %48 = arith.truncf %46 : vector<32x128xf32> to vector<32x128xbf16>
    %cst_27 = arith.constant dense<0.000000e+00> : vector<16x128xf32>
    %49 = tpu.matmul %47, %48, %cst_27 {dimension_numbers = #tpu.dot_dimension_numbers<[1], [0], [0], [1], [0, 0, 1, 1], [], []>} : vector<16x32xbf16>, vector<32x128xbf16>, vector<16x128xf32> -> vector<16x128xf32>
    %50 = arith.addf %25, %49 : vector<16x128xf32>
    %51 = vector.extract_strided_slice %22 {offsets = [0, 32], sizes = [16, 32], strides = [1, 1]} : vector<16x128xf32> to vector<16x32xf32>
    %52 = arith.truncf %51 : vector<16x32xf32> to vector<16x32xbf16>
    %53 = vector.extract_strided_slice %23 {offsets = [0, 32], sizes = [16, 32], strides = [1, 1]} : vector<16x128xf32> to vector<16x32xf32>
    %54 = arith.truncf %53 : vector<16x32xf32> to vector<16x32xbf16>
    %cst_28 = arith.constant dense<0.000000e+00> : vector<16x16xf32>
    %55 = tpu.matmul %52, %54, %cst_28 {dimension_numbers = #tpu.dot_dimension_numbers<[1], [1], [0], [0], [0, 0, 1, 0], [], []>} : vector<16x32xbf16>, vector<16x32xbf16>, vector<16x16xf32> -> vector<16x16xf32>
    %cst_29 = arith.constant 0.176776692 : f32
    %56 = vector.broadcast %cst_29 : f32 to vector<16x16xf32>
    %57 = arith.mulf %55, %56 : vector<16x16xf32>
    %cst_30 = arith.constant dense<0xFF800000> : vector<16xf32>
    %58 = vector.multi_reduction <maximumf>, %57, %cst_30 [1] : vector<16x16xf32> to vector<16xf32>
    %59 = vector.shape_cast %58 : vector<16xf32> to vector<16x1xf32>
    %60 = vector.broadcast %59 : vector<16x1xf32> to vector<16x16xf32>
    %61 = arith.subf %57, %60 : vector<16x16xf32>
    %62 = math.exp %61 : vector<16x16xf32>
    %cst_31 = arith.constant dense<0.000000e+00> : vector<16xf32>
    %63 = vector.multi_reduction <add>, %62, %cst_31 [1] : vector<16x16xf32> to vector<16xf32>
    %64 = vector.shape_cast %63 : vector<16xf32> to vector<16x1xf32>
    %65 = vector.broadcast %64 : vector<16x1xf32> to vector<16x16xf32>
    %66 = arith.divf %62, %65 : vector<16x16xf32>
    %67 = vector.extract_strided_slice %21 {offsets = [0, 32], sizes = [16, 32], strides = [1, 1]} : vector<16x128xf32> to vector<16x32xf32>
    %68 = arith.truncf %66 : vector<16x16xf32> to vector<16x16xbf16>
    %69 = arith.truncf %67 : vector<16x32xf32> to vector<16x32xbf16>
    %cst_32 = arith.constant dense<0.000000e+00> : vector<16x32xf32>
    %70 = tpu.matmul %68, %69, %cst_32 {dimension_numbers = #tpu.dot_dimension_numbers<[1], [0], [0], [1], [0, 0, 1, 1], [], []>} : vector<16x16xbf16>, vector<16x32xbf16>, vector<16x32xf32> -> vector<16x32xf32>
    %71 = vector.extract_strided_slice %24 {offsets = [32, 0], sizes = [32, 128], strides = [1, 1]} : vector<128x128xf32> to vector<32x128xf32>
    %72 = arith.truncf %70 : vector<16x32xf32> to vector<16x32xbf16>
    %73 = arith.truncf %71 : vector<32x128xf32> to vector<32x128xbf16>
    %cst_33 = arith.constant dense<0.000000e+00> : vector<16x128xf32>
    %74 = tpu.matmul %72, %73, %cst_33 {dimension_numbers = #tpu.dot_dimension_numbers<[1], [0], [0], [1], [0, 0, 1, 1], [], []>} : vector<16x32xbf16>, vector<32x128xbf16>, vector<16x128xf32> -> vector<16x128xf32>
    %75 = arith.addf %50, %74 : vector<16x128xf32>
    %76 = vector.extract_strided_slice %22 {offsets = [0, 64], sizes = [16, 32], strides = [1, 1]} : vector<16x128xf32> to vector<16x32xf32>
    %77 = arith.truncf %76 : vector<16x32xf32> to vector<16x32xbf16>
    %78 = vector.extract_strided_slice %23 {offsets = [0, 64], sizes = [16, 32], strides = [1, 1]} : vector<16x128xf32> to vector<16x32xf32>
    %79 = arith.truncf %78 : vector<16x32xf32> to vector<16x32xbf16>
    %cst_34 = arith.constant dense<0.000000e+00> : vector<16x16xf32>
    %80 = tpu.matmul %77, %79, %cst_34 {dimension_numbers = #tpu.dot_dimension_numbers<[1], [1], [0], [0], [0, 0, 1, 0], [], []>} : vector<16x32xbf16>, vector<16x32xbf16>, vector<16x16xf32> -> vector<16x16xf32>
    %cst_35 = arith.constant 0.176776692 : f32
    %81 = vector.broadcast %cst_35 : f32 to vector<16x16xf32>
    %82 = arith.mulf %80, %81 : vector<16x16xf32>
    %cst_36 = arith.constant dense<0xFF800000> : vector<16xf32>
    %83 = vector.multi_reduction <maximumf>, %82, %cst_36 [1] : vector<16x16xf32> to vector<16xf32>
    %84 = vector.shape_cast %83 : vector<16xf32> to vector<16x1xf32>
    %85 = vector.broadcast %84 : vector<16x1xf32> to vector<16x16xf32>
    %86 = arith.subf %82, %85 : vector<16x16xf32>
    %87 = math.exp %86 : vector<16x16xf32>
    %cst_37 = arith.constant dense<0.000000e+00> : vector<16xf32>
    %88 = vector.multi_reduction <add>, %87, %cst_37 [1] : vector<16x16xf32> to vector<16xf32>
    %89 = vector.shape_cast %88 : vector<16xf32> to vector<16x1xf32>
    %90 = vector.broadcast %89 : vector<16x1xf32> to vector<16x16xf32>
    %91 = arith.divf %87, %90 : vector<16x16xf32>
    %92 = vector.extract_strided_slice %21 {offsets = [0, 64], sizes = [16, 32], strides = [1, 1]} : vector<16x128xf32> to vector<16x32xf32>
    %93 = arith.truncf %91 : vector<16x16xf32> to vector<16x16xbf16>
    %94 = arith.truncf %92 : vector<16x32xf32> to vector<16x32xbf16>
    %cst_38 = arith.constant dense<0.000000e+00> : vector<16x32xf32>
    %95 = tpu.matmul %93, %94, %cst_38 {dimension_numbers = #tpu.dot_dimension_numbers<[1], [0], [0], [1], [0, 0, 1, 1], [], []>} : vector<16x16xbf16>, vector<16x32xbf16>, vector<16x32xf32> -> vector<16x32xf32>
    %96 = vector.extract_strided_slice %24 {offsets = [64, 0], sizes = [32, 128], strides = [1, 1]} : vector<128x128xf32> to vector<32x128xf32>
    %97 = arith.truncf %95 : vector<16x32xf32> to vector<16x32xbf16>
    %98 = arith.truncf %96 : vector<32x128xf32> to vector<32x128xbf16>
    %cst_39 = arith.constant dense<0.000000e+00> : vector<16x128xf32>
    %99 = tpu.matmul %97, %98, %cst_39 {dimension_numbers = #tpu.dot_dimension_numbers<[1], [0], [0], [1], [0, 0, 1, 1], [], []>} : vector<16x32xbf16>, vector<32x128xbf16>, vector<16x128xf32> -> vector<16x128xf32>
    %100 = arith.addf %75, %99 : vector<16x128xf32>
    %101 = vector.extract_strided_slice %22 {offsets = [0, 96], sizes = [16, 32], strides = [1, 1]} : vector<16x128xf32> to vector<16x32xf32>
    %102 = arith.truncf %101 : vector<16x32xf32> to vector<16x32xbf16>
    %103 = vector.extract_strided_slice %23 {offsets = [0, 96], sizes = [16, 32], strides = [1, 1]} : vector<16x128xf32> to vector<16x32xf32>
    %104 = arith.truncf %103 : vector<16x32xf32> to vector<16x32xbf16>
    %cst_40 = arith.constant dense<0.000000e+00> : vector<16x16xf32>
    %105 = tpu.matmul %102, %104, %cst_40 {dimension_numbers = #tpu.dot_dimension_numbers<[1], [1], [0], [0], [0, 0, 1, 0], [], []>} : vector<16x32xbf16>, vector<16x32xbf16>, vector<16x16xf32> -> vector<16x16xf32>
    %cst_41 = arith.constant 0.176776692 : f32
    %106 = vector.broadcast %cst_41 : f32 to vector<16x16xf32>
    %107 = arith.mulf %105, %106 : vector<16x16xf32>
    %cst_42 = arith.constant dense<0xFF800000> : vector<16xf32>
    %108 = vector.multi_reduction <maximumf>, %107, %cst_42 [1] : vector<16x16xf32> to vector<16xf32>
    %109 = vector.shape_cast %108 : vector<16xf32> to vector<16x1xf32>
    %110 = vector.broadcast %109 : vector<16x1xf32> to vector<16x16xf32>
    %111 = arith.subf %107, %110 : vector<16x16xf32>
    %112 = math.exp %111 : vector<16x16xf32>
    %cst_43 = arith.constant dense<0.000000e+00> : vector<16xf32>
    %113 = vector.multi_reduction <add>, %112, %cst_43 [1] : vector<16x16xf32> to vector<16xf32>
    %114 = vector.shape_cast %113 : vector<16xf32> to vector<16x1xf32>
    %115 = vector.broadcast %114 : vector<16x1xf32> to vector<16x16xf32>
    %116 = arith.divf %112, %115 : vector<16x16xf32>
    %117 = vector.extract_strided_slice %21 {offsets = [0, 96], sizes = [16, 32], strides = [1, 1]} : vector<16x128xf32> to vector<16x32xf32>
    %118 = arith.truncf %116 : vector<16x16xf32> to vector<16x16xbf16>
    %119 = arith.truncf %117 : vector<16x32xf32> to vector<16x32xbf16>
    %cst_44 = arith.constant dense<0.000000e+00> : vector<16x32xf32>
    %120 = tpu.matmul %118, %119, %cst_44 {dimension_numbers = #tpu.dot_dimension_numbers<[1], [0], [0], [1], [0, 0, 1, 1], [], []>} : vector<16x16xbf16>, vector<16x32xbf16>, vector<16x32xf32> -> vector<16x32xf32>
    %121 = vector.extract_strided_slice %24 {offsets = [96, 0], sizes = [32, 128], strides = [1, 1]} : vector<128x128xf32> to vector<32x128xf32>
    %122 = arith.truncf %120 : vector<16x32xf32> to vector<16x32xbf16>
    %123 = arith.truncf %121 : vector<32x128xf32> to vector<32x128xbf16>
    %cst_45 = arith.constant dense<0.000000e+00> : vector<16x128xf32>
    %124 = tpu.matmul %122, %123, %cst_45 {dimension_numbers = #tpu.dot_dimension_numbers<[1], [0], [0], [1], [0, 0, 1, 1], [], []>} : vector<16x32xbf16>, vector<32x128xbf16>, vector<16x128xf32> -> vector<16x128xf32>
    %125 = arith.addf %100, %124 : vector<16x128xf32>
    %c0_46 = arith.constant 0 : index
    %c0_47 = arith.constant 0 : index
    %126 = vector.load %arg13[%c0_46, %c0_47] : memref<1x128xf32, #tpu.memory_space<vmem>>, vector<1x128xf32>
    %127 = vector.broadcast %126 : vector<1x128xf32> to vector<16x128xf32>
    %128 = arith.addf %125, %127 : vector<16x128xf32>
    %129 = arith.addf %1, %128 : vector<16x128xf32>
    %130 = vector.extract_strided_slice %6 {offsets = [0, 0], sizes = [1, 128], strides = [1, 1]} : vector<8x128xf32> to vector<1x128xf32>
    %131 = vector.extract_strided_slice %6 {offsets = [1, 0], sizes = [1, 128], strides = [1, 1]} : vector<8x128xf32> to vector<1x128xf32>
    %cst_48 = arith.constant dense<0.000000e+00> : vector<16xf32>
    %132 = vector.multi_reduction <add>, %129, %cst_48 [1] : vector<16x128xf32> to vector<16xf32>
    %133 = vector.shape_cast %132 : vector<16xf32> to vector<16x1xf32>
    %cst_49 = arith.constant 1.280000e+02 : f32
    %134 = vector.broadcast %cst_49 : f32 to vector<16x1xf32>
    %135 = arith.divf %133, %134 : vector<16x1xf32>
    %136 = vector.broadcast %135 : vector<16x1xf32> to vector<16x128xf32>
    %137 = arith.subf %129, %136 : vector<16x128xf32>
    %138 = arith.mulf %137, %137 : vector<16x128xf32>
    %cst_50 = arith.constant dense<0.000000e+00> : vector<16xf32>
    %139 = vector.multi_reduction <add>, %138, %cst_50 [1] : vector<16x128xf32> to vector<16xf32>
    %140 = vector.shape_cast %139 : vector<16xf32> to vector<16x1xf32>
    %cst_51 = arith.constant 1.280000e+02 : f32
    %141 = vector.broadcast %cst_51 : f32 to vector<16x1xf32>
    %142 = arith.divf %140, %141 : vector<16x1xf32>
    %cst_52 = arith.constant 9.99999974E-6 : f32
    %143 = vector.broadcast %cst_52 : f32 to vector<16x1xf32>
    %144 = arith.addf %142, %143 : vector<16x1xf32>
    %145 = math.rsqrt %144 : vector<16x1xf32>
    %146 = vector.broadcast %145 : vector<16x1xf32> to vector<16x128xf32>
    %147 = arith.mulf %137, %146 : vector<16x128xf32>
    %148 = vector.broadcast %130 : vector<1x128xf32> to vector<16x128xf32>
    %149 = arith.mulf %147, %148 : vector<16x128xf32>
    %150 = vector.broadcast %131 : vector<1x128xf32> to vector<16x128xf32>
    %151 = arith.addf %149, %150 : vector<16x128xf32>
    %152 = arith.addf %151, %3 : vector<16x128xf32>
    %c0_53 = arith.constant 0 : index
    %c0_54 = arith.constant 0 : index
    %153 = vector.load %arg14[%c0_53, %c0_54] : memref<128x128xf32, #tpu.memory_space<vmem>>, vector<128x128xf32>
    %154 = arith.truncf %152 : vector<16x128xf32> to vector<16x128xbf16>
    %155 = arith.truncf %153 : vector<128x128xf32> to vector<128x128xbf16>
    %cst_55 = arith.constant dense<0.000000e+00> : vector<16x128xf32>
    %156 = tpu.matmul %154, %155, %cst_55 {dimension_numbers = #tpu.dot_dimension_numbers<[1], [0], [0], [1], [0, 0, 1, 1], [], []>} : vector<16x128xbf16>, vector<128x128xbf16>, vector<16x128xf32> -> vector<16x128xf32>
    %c0_56 = arith.constant 0 : index
    %c0_57 = arith.constant 0 : index
    %157 = vector.load %arg15[%c0_56, %c0_57] : memref<1x128xf32, #tpu.memory_space<vmem>>, vector<1x128xf32>
    %158 = vector.broadcast %157 : vector<1x128xf32> to vector<16x128xf32>
    %159 = arith.addf %156, %158 : vector<16x128xf32>
    %c0_58 = arith.constant 0 : index
    %c0_59 = arith.constant 0 : index
    %160 = vector.load %arg16[%c0_58, %c0_59] : memref<128x256xf32, #tpu.memory_space<vmem>>, vector<128x256xf32>
    %161 = arith.truncf %5 : vector<8x128xf32> to vector<8x128xbf16>
    %162 = arith.truncf %160 : vector<128x256xf32> to vector<128x256xbf16>
    %cst_60 = arith.constant dense<0.000000e+00> : vector<8x256xf32>
    %163 = tpu.matmul %161, %162, %cst_60 {dimension_numbers = #tpu.dot_dimension_numbers<[1], [0], [0], [1], [0, 0, 1, 1], [], []>} : vector<8x128xbf16>, vector<128x256xbf16>, vector<8x256xf32> -> vector<8x256xf32>
    %c0_61 = arith.constant 0 : index
    %c0_62 = arith.constant 0 : index
    %164 = vector.load %arg17[%c0_61, %c0_62] : memref<1x256xf32, #tpu.memory_space<vmem>>, vector<1x256xf32>
    %165 = vector.broadcast %164 : vector<1x256xf32> to vector<8x256xf32>
    %166 = arith.addf %163, %165 : vector<8x256xf32>
    %167 = vector.extract_strided_slice %166 {offsets = [0, 0], sizes = [8, 128], strides = [1, 1]} : vector<8x256xf32> to vector<8x128xf32>
    %168 = vector.extract_strided_slice %166 {offsets = [0, 128], sizes = [8, 128], strides = [1, 1]} : vector<8x256xf32> to vector<8x128xf32>
    %c0_63 = arith.constant 0 : index
    %c0_64 = arith.constant 0 : index
    %c0_65 = arith.constant 0 : index
    %169 = vector.load %arg4[%c0_63, %c0_64, %c0_65] : memref<1x1x8xf32, #tpu.memory_space<vmem>>, vector<1x1x8xf32>
    %170 = vector.shape_cast %169 : vector<1x1x8xf32> to vector<1x8xf32>
    %c0_66 = arith.constant 0 : index
    %c0_67 = arith.constant 0 : index
    %171 = vector.load %arg18[%c0_66, %c0_67] : memref<128x128xf32, #tpu.memory_space<vmem>>, vector<128x128xf32>
    %cst_68 = arith.constant 0.000000e+00 : f32
    %172 = vector.broadcast %cst_68 : f32 to vector<16x128xf32>
    %173 = vector.extract_strided_slice %159 {offsets = [0, 0], sizes = [16, 32], strides = [1, 1]} : vector<16x128xf32> to vector<16x32xf32>
    %174 = arith.truncf %173 : vector<16x32xf32> to vector<16x32xbf16>
    %175 = vector.extract_strided_slice %167 {offsets = [0, 0], sizes = [8, 32], strides = [1, 1]} : vector<8x128xf32> to vector<8x32xf32>
    %176 = arith.truncf %175 : vector<8x32xf32> to vector<8x32xbf16>
    %cst_69 = arith.constant dense<0.000000e+00> : vector<16x8xf32>
    %177 = tpu.matmul %174, %176, %cst_69 {dimension_numbers = #tpu.dot_dimension_numbers<[1], [1], [0], [0], [0, 0, 1, 0], [], []>} : vector<16x32xbf16>, vector<8x32xbf16>, vector<16x8xf32> -> vector<16x8xf32>
    %cst_70 = arith.constant 0.176776692 : f32
    %178 = vector.broadcast %cst_70 : f32 to vector<16x8xf32>
    %179 = arith.mulf %177, %178 : vector<16x8xf32>
    %180 = vector.broadcast %170 : vector<1x8xf32> to vector<16x8xf32>
    %181 = arith.addf %179, %180 : vector<16x8xf32>
    %cst_71 = arith.constant dense<0xFF800000> : vector<16xf32>
    %182 = vector.multi_reduction <maximumf>, %181, %cst_71 [1] : vector<16x8xf32> to vector<16xf32>
    %183 = vector.shape_cast %182 : vector<16xf32> to vector<16x1xf32>
    %184 = vector.broadcast %183 : vector<16x1xf32> to vector<16x8xf32>
    %185 = arith.subf %181, %184 : vector<16x8xf32>
    %186 = math.exp %185 : vector<16x8xf32>
    %cst_72 = arith.constant dense<0.000000e+00> : vector<16xf32>
    %187 = vector.multi_reduction <add>, %186, %cst_72 [1] : vector<16x8xf32> to vector<16xf32>
    %188 = vector.shape_cast %187 : vector<16xf32> to vector<16x1xf32>
    %189 = vector.broadcast %188 : vector<16x1xf32> to vector<16x8xf32>
    %190 = arith.divf %186, %189 : vector<16x8xf32>
    %191 = vector.extract_strided_slice %168 {offsets = [0, 0], sizes = [8, 32], strides = [1, 1]} : vector<8x128xf32> to vector<8x32xf32>
    %192 = arith.truncf %190 : vector<16x8xf32> to vector<16x8xbf16>
    %193 = arith.truncf %191 : vector<8x32xf32> to vector<8x32xbf16>
    %cst_73 = arith.constant dense<0.000000e+00> : vector<16x32xf32>
    %194 = tpu.matmul %192, %193, %cst_73 {dimension_numbers = #tpu.dot_dimension_numbers<[1], [0], [0], [1], [0, 0, 1, 1], [], []>} : vector<16x8xbf16>, vector<8x32xbf16>, vector<16x32xf32> -> vector<16x32xf32>
    %195 = vector.extract_strided_slice %171 {offsets = [0, 0], sizes = [32, 128], strides = [1, 1]} : vector<128x128xf32> to vector<32x128xf32>
    %196 = arith.truncf %194 : vector<16x32xf32> to vector<16x32xbf16>
    %197 = arith.truncf %195 : vector<32x128xf32> to vector<32x128xbf16>
    %cst_74 = arith.constant dense<0.000000e+00> : vector<16x128xf32>
    %198 = tpu.matmul %196, %197, %cst_74 {dimension_numbers = #tpu.dot_dimension_numbers<[1], [0], [0], [1], [0, 0, 1, 1], [], []>} : vector<16x32xbf16>, vector<32x128xbf16>, vector<16x128xf32> -> vector<16x128xf32>
    %199 = arith.addf %172, %198 : vector<16x128xf32>
    %200 = vector.extract_strided_slice %159 {offsets = [0, 32], sizes = [16, 32], strides = [1, 1]} : vector<16x128xf32> to vector<16x32xf32>
    %201 = arith.truncf %200 : vector<16x32xf32> to vector<16x32xbf16>
    %202 = vector.extract_strided_slice %167 {offsets = [0, 32], sizes = [8, 32], strides = [1, 1]} : vector<8x128xf32> to vector<8x32xf32>
    %203 = arith.truncf %202 : vector<8x32xf32> to vector<8x32xbf16>
    %cst_75 = arith.constant dense<0.000000e+00> : vector<16x8xf32>
    %204 = tpu.matmul %201, %203, %cst_75 {dimension_numbers = #tpu.dot_dimension_numbers<[1], [1], [0], [0], [0, 0, 1, 0], [], []>} : vector<16x32xbf16>, vector<8x32xbf16>, vector<16x8xf32> -> vector<16x8xf32>
    %cst_76 = arith.constant 0.176776692 : f32
    %205 = vector.broadcast %cst_76 : f32 to vector<16x8xf32>
    %206 = arith.mulf %204, %205 : vector<16x8xf32>
    %207 = vector.broadcast %170 : vector<1x8xf32> to vector<16x8xf32>
    %208 = arith.addf %206, %207 : vector<16x8xf32>
    %cst_77 = arith.constant dense<0xFF800000> : vector<16xf32>
    %209 = vector.multi_reduction <maximumf>, %208, %cst_77 [1] : vector<16x8xf32> to vector<16xf32>
    %210 = vector.shape_cast %209 : vector<16xf32> to vector<16x1xf32>
    %211 = vector.broadcast %210 : vector<16x1xf32> to vector<16x8xf32>
    %212 = arith.subf %208, %211 : vector<16x8xf32>
    %213 = math.exp %212 : vector<16x8xf32>
    %cst_78 = arith.constant dense<0.000000e+00> : vector<16xf32>
    %214 = vector.multi_reduction <add>, %213, %cst_78 [1] : vector<16x8xf32> to vector<16xf32>
    %215 = vector.shape_cast %214 : vector<16xf32> to vector<16x1xf32>
    %216 = vector.broadcast %215 : vector<16x1xf32> to vector<16x8xf32>
    %217 = arith.divf %213, %216 : vector<16x8xf32>
    %218 = vector.extract_strided_slice %168 {offsets = [0, 32], sizes = [8, 32], strides = [1, 1]} : vector<8x128xf32> to vector<8x32xf32>
    %219 = arith.truncf %217 : vector<16x8xf32> to vector<16x8xbf16>
    %220 = arith.truncf %218 : vector<8x32xf32> to vector<8x32xbf16>
    %cst_79 = arith.constant dense<0.000000e+00> : vector<16x32xf32>
    %221 = tpu.matmul %219, %220, %cst_79 {dimension_numbers = #tpu.dot_dimension_numbers<[1], [0], [0], [1], [0, 0, 1, 1], [], []>} : vector<16x8xbf16>, vector<8x32xbf16>, vector<16x32xf32> -> vector<16x32xf32>
    %222 = vector.extract_strided_slice %171 {offsets = [32, 0], sizes = [32, 128], strides = [1, 1]} : vector<128x128xf32> to vector<32x128xf32>
    %223 = arith.truncf %221 : vector<16x32xf32> to vector<16x32xbf16>
    %224 = arith.truncf %222 : vector<32x128xf32> to vector<32x128xbf16>
    %cst_80 = arith.constant dense<0.000000e+00> : vector<16x128xf32>
    %225 = tpu.matmul %223, %224, %cst_80 {dimension_numbers = #tpu.dot_dimension_numbers<[1], [0], [0], [1], [0, 0, 1, 1], [], []>} : vector<16x32xbf16>, vector<32x128xbf16>, vector<16x128xf32> -> vector<16x128xf32>
    %226 = arith.addf %199, %225 : vector<16x128xf32>
    %227 = vector.extract_strided_slice %159 {offsets = [0, 64], sizes = [16, 32], strides = [1, 1]} : vector<16x128xf32> to vector<16x32xf32>
    %228 = arith.truncf %227 : vector<16x32xf32> to vector<16x32xbf16>
    %229 = vector.extract_strided_slice %167 {offsets = [0, 64], sizes = [8, 32], strides = [1, 1]} : vector<8x128xf32> to vector<8x32xf32>
    %230 = arith.truncf %229 : vector<8x32xf32> to vector<8x32xbf16>
    %cst_81 = arith.constant dense<0.000000e+00> : vector<16x8xf32>
    %231 = tpu.matmul %228, %230, %cst_81 {dimension_numbers = #tpu.dot_dimension_numbers<[1], [1], [0], [0], [0, 0, 1, 0], [], []>} : vector<16x32xbf16>, vector<8x32xbf16>, vector<16x8xf32> -> vector<16x8xf32>
    %cst_82 = arith.constant 0.176776692 : f32
    %232 = vector.broadcast %cst_82 : f32 to vector<16x8xf32>
    %233 = arith.mulf %231, %232 : vector<16x8xf32>
    %234 = vector.broadcast %170 : vector<1x8xf32> to vector<16x8xf32>
    %235 = arith.addf %233, %234 : vector<16x8xf32>
    %cst_83 = arith.constant dense<0xFF800000> : vector<16xf32>
    %236 = vector.multi_reduction <maximumf>, %235, %cst_83 [1] : vector<16x8xf32> to vector<16xf32>
    %237 = vector.shape_cast %236 : vector<16xf32> to vector<16x1xf32>
    %238 = vector.broadcast %237 : vector<16x1xf32> to vector<16x8xf32>
    %239 = arith.subf %235, %238 : vector<16x8xf32>
    %240 = math.exp %239 : vector<16x8xf32>
    %cst_84 = arith.constant dense<0.000000e+00> : vector<16xf32>
    %241 = vector.multi_reduction <add>, %240, %cst_84 [1] : vector<16x8xf32> to vector<16xf32>
    %242 = vector.shape_cast %241 : vector<16xf32> to vector<16x1xf32>
    %243 = vector.broadcast %242 : vector<16x1xf32> to vector<16x8xf32>
    %244 = arith.divf %240, %243 : vector<16x8xf32>
    %245 = vector.extract_strided_slice %168 {offsets = [0, 64], sizes = [8, 32], strides = [1, 1]} : vector<8x128xf32> to vector<8x32xf32>
    %246 = arith.truncf %244 : vector<16x8xf32> to vector<16x8xbf16>
    %247 = arith.truncf %245 : vector<8x32xf32> to vector<8x32xbf16>
    %cst_85 = arith.constant dense<0.000000e+00> : vector<16x32xf32>
    %248 = tpu.matmul %246, %247, %cst_85 {dimension_numbers = #tpu.dot_dimension_numbers<[1], [0], [0], [1], [0, 0, 1, 1], [], []>} : vector<16x8xbf16>, vector<8x32xbf16>, vector<16x32xf32> -> vector<16x32xf32>
    %249 = vector.extract_strided_slice %171 {offsets = [64, 0], sizes = [32, 128], strides = [1, 1]} : vector<128x128xf32> to vector<32x128xf32>
    %250 = arith.truncf %248 : vector<16x32xf32> to vector<16x32xbf16>
    %251 = arith.truncf %249 : vector<32x128xf32> to vector<32x128xbf16>
    %cst_86 = arith.constant dense<0.000000e+00> : vector<16x128xf32>
    %252 = tpu.matmul %250, %251, %cst_86 {dimension_numbers = #tpu.dot_dimension_numbers<[1], [0], [0], [1], [0, 0, 1, 1], [], []>} : vector<16x32xbf16>, vector<32x128xbf16>, vector<16x128xf32> -> vector<16x128xf32>
    %253 = arith.addf %226, %252 : vector<16x128xf32>
    %254 = vector.extract_strided_slice %159 {offsets = [0, 96], sizes = [16, 32], strides = [1, 1]} : vector<16x128xf32> to vector<16x32xf32>
    %255 = arith.truncf %254 : vector<16x32xf32> to vector<16x32xbf16>
    %256 = vector.extract_strided_slice %167 {offsets = [0, 96], sizes = [8, 32], strides = [1, 1]} : vector<8x128xf32> to vector<8x32xf32>
    %257 = arith.truncf %256 : vector<8x32xf32> to vector<8x32xbf16>
    %cst_87 = arith.constant dense<0.000000e+00> : vector<16x8xf32>
    %258 = tpu.matmul %255, %257, %cst_87 {dimension_numbers = #tpu.dot_dimension_numbers<[1], [1], [0], [0], [0, 0, 1, 0], [], []>} : vector<16x32xbf16>, vector<8x32xbf16>, vector<16x8xf32> -> vector<16x8xf32>
    %cst_88 = arith.constant 0.176776692 : f32
    %259 = vector.broadcast %cst_88 : f32 to vector<16x8xf32>
    %260 = arith.mulf %258, %259 : vector<16x8xf32>
    %261 = vector.broadcast %170 : vector<1x8xf32> to vector<16x8xf32>
    %262 = arith.addf %260, %261 : vector<16x8xf32>
    %cst_89 = arith.constant dense<0xFF800000> : vector<16xf32>
    %263 = vector.multi_reduction <maximumf>, %262, %cst_89 [1] : vector<16x8xf32> to vector<16xf32>
    %264 = vector.shape_cast %263 : vector<16xf32> to vector<16x1xf32>
    %265 = vector.broadcast %264 : vector<16x1xf32> to vector<16x8xf32>
    %266 = arith.subf %262, %265 : vector<16x8xf32>
    %267 = math.exp %266 : vector<16x8xf32>
    %cst_90 = arith.constant dense<0.000000e+00> : vector<16xf32>
    %268 = vector.multi_reduction <add>, %267, %cst_90 [1] : vector<16x8xf32> to vector<16xf32>
    %269 = vector.shape_cast %268 : vector<16xf32> to vector<16x1xf32>
    %270 = vector.broadcast %269 : vector<16x1xf32> to vector<16x8xf32>
    %271 = arith.divf %267, %270 : vector<16x8xf32>
    %272 = vector.extract_strided_slice %168 {offsets = [0, 96], sizes = [8, 32], strides = [1, 1]} : vector<8x128xf32> to vector<8x32xf32>
    %273 = arith.truncf %271 : vector<16x8xf32> to vector<16x8xbf16>
    %274 = arith.truncf %272 : vector<8x32xf32> to vector<8x32xbf16>
    %cst_91 = arith.constant dense<0.000000e+00> : vector<16x32xf32>
    %275 = tpu.matmul %273, %274, %cst_91 {dimension_numbers = #tpu.dot_dimension_numbers<[1], [0], [0], [1], [0, 0, 1, 1], [], []>} : vector<16x8xbf16>, vector<8x32xbf16>, vector<16x32xf32> -> vector<16x32xf32>
    %276 = vector.extract_strided_slice %171 {offsets = [96, 0], sizes = [32, 128], strides = [1, 1]} : vector<128x128xf32> to vector<32x128xf32>
    %277 = arith.truncf %275 : vector<16x32xf32> to vector<16x32xbf16>
    %278 = arith.truncf %276 : vector<32x128xf32> to vector<32x128xbf16>
    %cst_92 = arith.constant dense<0.000000e+00> : vector<16x128xf32>
    %279 = tpu.matmul %277, %278, %cst_92 {dimension_numbers = #tpu.dot_dimension_numbers<[1], [0], [0], [1], [0, 0, 1, 1], [], []>} : vector<16x32xbf16>, vector<32x128xbf16>, vector<16x128xf32> -> vector<16x128xf32>
    %280 = arith.addf %253, %279 : vector<16x128xf32>
    %c0_93 = arith.constant 0 : index
    %c0_94 = arith.constant 0 : index
    %281 = vector.load %arg19[%c0_93, %c0_94] : memref<1x128xf32, #tpu.memory_space<vmem>>, vector<1x128xf32>
    %282 = vector.broadcast %281 : vector<1x128xf32> to vector<16x128xf32>
    %283 = arith.addf %280, %282 : vector<16x128xf32>
    %284 = arith.addf %151, %283 : vector<16x128xf32>
    %285 = vector.extract_strided_slice %6 {offsets = [2, 0], sizes = [1, 128], strides = [1, 1]} : vector<8x128xf32> to vector<1x128xf32>
    %286 = vector.extract_strided_slice %6 {offsets = [3, 0], sizes = [1, 128], strides = [1, 1]} : vector<8x128xf32> to vector<1x128xf32>
    %cst_95 = arith.constant dense<0.000000e+00> : vector<16xf32>
    %287 = vector.multi_reduction <add>, %284, %cst_95 [1] : vector<16x128xf32> to vector<16xf32>
    %288 = vector.shape_cast %287 : vector<16xf32> to vector<16x1xf32>
    %cst_96 = arith.constant 1.280000e+02 : f32
    %289 = vector.broadcast %cst_96 : f32 to vector<16x1xf32>
    %290 = arith.divf %288, %289 : vector<16x1xf32>
    %291 = vector.broadcast %290 : vector<16x1xf32> to vector<16x128xf32>
    %292 = arith.subf %284, %291 : vector<16x128xf32>
    %293 = arith.mulf %292, %292 : vector<16x128xf32>
    %cst_97 = arith.constant dense<0.000000e+00> : vector<16xf32>
    %294 = vector.multi_reduction <add>, %293, %cst_97 [1] : vector<16x128xf32> to vector<16xf32>
    %295 = vector.shape_cast %294 : vector<16xf32> to vector<16x1xf32>
    %cst_98 = arith.constant 1.280000e+02 : f32
    %296 = vector.broadcast %cst_98 : f32 to vector<16x1xf32>
    %297 = arith.divf %295, %296 : vector<16x1xf32>
    %cst_99 = arith.constant 9.99999974E-6 : f32
    %298 = vector.broadcast %cst_99 : f32 to vector<16x1xf32>
    %299 = arith.addf %297, %298 : vector<16x1xf32>
    %300 = math.rsqrt %299 : vector<16x1xf32>
    %301 = vector.broadcast %300 : vector<16x1xf32> to vector<16x128xf32>
    %302 = arith.mulf %292, %301 : vector<16x128xf32>
    %303 = vector.broadcast %285 : vector<1x128xf32> to vector<16x128xf32>
    %304 = arith.mulf %302, %303 : vector<16x128xf32>
    %305 = vector.broadcast %286 : vector<1x128xf32> to vector<16x128xf32>
    %306 = arith.addf %304, %305 : vector<16x128xf32>
    %307 = arith.addf %306, %3 : vector<16x128xf32>
    %c0_100 = arith.constant 0 : index
    %c0_101 = arith.constant 0 : index
    %c0_102 = arith.constant 0 : index
    %308 = vector.load %arg5[%c0_100, %c0_101, %c0_102] : memref<1x8x128xf32, #tpu.memory_space<vmem>>, vector<1x8x128xf32>
    %309 = vector.shape_cast %308 : vector<1x8x128xf32> to vector<8x128xf32>
    %c0_103 = arith.constant 0 : index
    %c0_104 = arith.constant 0 : index
    %310 = vector.load %arg20[%c0_103, %c0_104] : memref<128x128xf32, #tpu.memory_space<vmem>>, vector<128x128xf32>
    %311 = arith.truncf %309 : vector<8x128xf32> to vector<8x128xbf16>
    %312 = arith.truncf %310 : vector<128x128xf32> to vector<128x128xbf16>
    %cst_105 = arith.constant dense<0.000000e+00> : vector<8x128xf32>
    %313 = tpu.matmul %311, %312, %cst_105 {dimension_numbers = #tpu.dot_dimension_numbers<[1], [0], [0], [1], [0, 0, 1, 1], [], []>} : vector<8x128xbf16>, vector<128x128xbf16>, vector<8x128xf32> -> vector<8x128xf32>
    %c0_106 = arith.constant 0 : index
    %c0_107 = arith.constant 0 : index
    %314 = vector.load %arg21[%c0_106, %c0_107] : memref<1x128xf32, #tpu.memory_space<vmem>>, vector<1x128xf32>
    %315 = vector.broadcast %314 : vector<1x128xf32> to vector<8x128xf32>
    %316 = arith.addf %313, %315 : vector<8x128xf32>
    %c0_108 = arith.constant 0 : index
    %c0_109 = arith.constant 0 : index
    %c0_110 = arith.constant 0 : index
    %317 = vector.load %arg6[%c0_108, %c0_109, %c0_110] : memref<1x8x1xf32, #tpu.memory_space<vmem>>, vector<1x8x1xf32>
    %318 = vector.shape_cast %317 : vector<1x8x1xf32> to vector<8x1xf32>
    %319 = vector.broadcast %318 : vector<8x1xf32> to vector<8x128xf32>
    %320 = arith.mulf %316, %319 : vector<8x128xf32>
    %cst_111 = arith.constant dense<0.000000e+00> : vector<128xf32>
    %321 = vector.multi_reduction <add>, %320, %cst_111 [0] : vector<8x128xf32> to vector<128xf32>
    %322 = vector.shape_cast %321 : vector<128xf32> to vector<1x128xf32>
    %c0_112 = arith.constant 0 : index
    %c0_113 = arith.constant 0 : index
    %323 = vector.load %arg22[%c0_112, %c0_113] : memref<128x32xf32, #tpu.memory_space<vmem>>, vector<128x32xf32>
    %324 = arith.truncf %307 : vector<16x128xf32> to vector<16x128xbf16>
    %325 = arith.truncf %323 : vector<128x32xf32> to vector<128x32xbf16>
    %cst_114 = arith.constant dense<0.000000e+00> : vector<16x32xf32>
    %326 = tpu.matmul %324, %325, %cst_114 {dimension_numbers = #tpu.dot_dimension_numbers<[1], [0], [0], [1], [0, 0, 1, 1], [], []>} : vector<16x128xbf16>, vector<128x32xbf16>, vector<16x32xf32> -> vector<16x32xf32>
    %c0_115 = arith.constant 0 : index
    %c0_116 = arith.constant 0 : index
    %327 = vector.load %arg23[%c0_115, %c0_116] : memref<1x32xf32, #tpu.memory_space<vmem>>, vector<1x32xf32>
    %328 = vector.broadcast %327 : vector<1x32xf32> to vector<16x32xf32>
    %329 = arith.addf %326, %328 : vector<16x32xf32>
    %c0_117 = arith.constant 0 : index
    %c0_118 = arith.constant 0 : index
    %c0_119 = arith.constant 0 : index
    %330 = vector.load %arg7[%c0_117, %c0_118, %c0_119] : memref<1x16x2xf32, #tpu.memory_space<vmem>>, vector<1x16x1xf32>
    %331 = vector.shape_cast %330 : vector<1x16x1xf32> to vector<16x1xf32>
    %c0_120 = arith.constant 0 : index
    %c0_121 = arith.constant 0 : index
    %c1 = arith.constant 1 : index
    %332 = vector.load %arg7[%c0_120, %c0_121, %c1] : memref<1x16x2xf32, #tpu.memory_space<vmem>>, vector<1x16x1xf32>
    %333 = vector.shape_cast %332 : vector<1x16x1xf32> to vector<16x1xf32>
    %c0_122 = arith.constant 0 : index
    %c0_123 = arith.constant 0 : index
    %334 = vector.load %arg24[%c0_122, %c0_123] : memref<128x128xf32, #tpu.memory_space<vmem>>, vector<128x128xf32>
    %cst_124 = arith.constant 0.000000e+00 : f32
    %335 = vector.broadcast %cst_124 : f32 to vector<16x128xf32>
    %336 = vector.extract_strided_slice %329 {offsets = [0, 0], sizes = [16, 4], strides = [1, 1]} : vector<16x32xf32> to vector<16x4xf32>
    %337 = vector.extract_strided_slice %329 {offsets = [0, 16], sizes = [16, 4], strides = [1, 1]} : vector<16x32xf32> to vector<16x4xf32>
    %cst_125 = arith.constant dense<0xFF800000> : vector<16xf32>
    %338 = vector.multi_reduction <maximumf>, %337, %cst_125 [1] : vector<16x4xf32> to vector<16xf32>
    %339 = vector.shape_cast %338 : vector<16xf32> to vector<16x1xf32>
    %340 = vector.broadcast %339 : vector<16x1xf32> to vector<16x4xf32>
    %341 = arith.subf %337, %340 : vector<16x4xf32>
    %342 = math.exp %341 : vector<16x4xf32>
    %cst_126 = arith.constant dense<0.000000e+00> : vector<16xf32>
    %343 = vector.multi_reduction <add>, %342, %cst_126 [1] : vector<16x4xf32> to vector<16xf32>
    %344 = vector.shape_cast %343 : vector<16xf32> to vector<16x1xf32>
    %345 = vector.broadcast %344 : vector<16x1xf32> to vector<16x4xf32>
    %346 = arith.divf %342, %345 : vector<16x4xf32>
    %347 = vector.broadcast %333 : vector<16x1xf32> to vector<16x4xf32>
    %348 = arith.divf %336, %347 : vector<16x4xf32>
    %349 = vector.broadcast %331 : vector<16x1xf32> to vector<16x4xf32>
    %350 = arith.addf %349, %348 : vector<16x4xf32>
    %cst_127 = arith.constant 5.000000e-01 : f32
    %351 = vector.broadcast %cst_127 : f32 to vector<16x4xf32>
    %352 = arith.subf %350, %351 : vector<16x4xf32>
    %353 = math.absf %352 : vector<16x4xf32>
    %cst_128 = arith.constant 1.000000e+00 : f32
    %354 = vector.broadcast %cst_128 : f32 to vector<16x4xf32>
    %355 = arith.subf %354, %353 : vector<16x4xf32>
    %cst_129 = arith.constant 0.000000e+00 : f32
    %356 = vector.broadcast %cst_129 : f32 to vector<16x4xf32>
    %357 = arith.maximumf %356, %355 : vector<16x4xf32>
    %358 = arith.mulf %346, %357 : vector<16x4xf32>
    %cst_130 = arith.constant dense<0.000000e+00> : vector<16xf32>
    %359 = vector.multi_reduction <add>, %358, %cst_130 [1] : vector<16x4xf32> to vector<16xf32>
    %360 = vector.shape_cast %359 : vector<16xf32> to vector<16x1xf32>
    %361 = vector.extract_strided_slice %322 {offsets = [0, 0], sizes = [1, 32], strides = [1, 1]} : vector<1x128xf32> to vector<1x32xf32>
    %362 = vector.broadcast %360 : vector<16x1xf32> to vector<16x32xf32>
    %363 = vector.broadcast %361 : vector<1x32xf32> to vector<16x32xf32>
    %364 = arith.mulf %362, %363 : vector<16x32xf32>
    %365 = vector.extract_strided_slice %334 {offsets = [0, 0], sizes = [32, 128], strides = [1, 1]} : vector<128x128xf32> to vector<32x128xf32>
    %366 = arith.truncf %364 : vector<16x32xf32> to vector<16x32xbf16>
    %367 = arith.truncf %365 : vector<32x128xf32> to vector<32x128xbf16>
    %cst_131 = arith.constant dense<0.000000e+00> : vector<16x128xf32>
    %368 = tpu.matmul %366, %367, %cst_131 {dimension_numbers = #tpu.dot_dimension_numbers<[1], [0], [0], [1], [0, 0, 1, 1], [], []>} : vector<16x32xbf16>, vector<32x128xbf16>, vector<16x128xf32> -> vector<16x128xf32>
    %369 = arith.addf %335, %368 : vector<16x128xf32>
    %370 = vector.extract_strided_slice %329 {offsets = [0, 4], sizes = [16, 4], strides = [1, 1]} : vector<16x32xf32> to vector<16x4xf32>
    %371 = vector.extract_strided_slice %329 {offsets = [0, 20], sizes = [16, 4], strides = [1, 1]} : vector<16x32xf32> to vector<16x4xf32>
    %cst_132 = arith.constant dense<0xFF800000> : vector<16xf32>
    %372 = vector.multi_reduction <maximumf>, %371, %cst_132 [1] : vector<16x4xf32> to vector<16xf32>
    %373 = vector.shape_cast %372 : vector<16xf32> to vector<16x1xf32>
    %374 = vector.broadcast %373 : vector<16x1xf32> to vector<16x4xf32>
    %375 = arith.subf %371, %374 : vector<16x4xf32>
    %376 = math.exp %375 : vector<16x4xf32>
    %cst_133 = arith.constant dense<0.000000e+00> : vector<16xf32>
    %377 = vector.multi_reduction <add>, %376, %cst_133 [1] : vector<16x4xf32> to vector<16xf32>
    %378 = vector.shape_cast %377 : vector<16xf32> to vector<16x1xf32>
    %379 = vector.broadcast %378 : vector<16x1xf32> to vector<16x4xf32>
    %380 = arith.divf %376, %379 : vector<16x4xf32>
    %381 = vector.broadcast %333 : vector<16x1xf32> to vector<16x4xf32>
    %382 = arith.divf %370, %381 : vector<16x4xf32>
    %383 = vector.broadcast %331 : vector<16x1xf32> to vector<16x4xf32>
    %384 = arith.addf %383, %382 : vector<16x4xf32>
    %cst_134 = arith.constant 5.000000e-01 : f32
    %385 = vector.broadcast %cst_134 : f32 to vector<16x4xf32>
    %386 = arith.subf %384, %385 : vector<16x4xf32>
    %387 = math.absf %386 : vector<16x4xf32>
    %cst_135 = arith.constant 1.000000e+00 : f32
    %388 = vector.broadcast %cst_135 : f32 to vector<16x4xf32>
    %389 = arith.subf %388, %387 : vector<16x4xf32>
    %cst_136 = arith.constant 0.000000e+00 : f32
    %390 = vector.broadcast %cst_136 : f32 to vector<16x4xf32>
    %391 = arith.maximumf %390, %389 : vector<16x4xf32>
    %392 = arith.mulf %380, %391 : vector<16x4xf32>
    %cst_137 = arith.constant dense<0.000000e+00> : vector<16xf32>
    %393 = vector.multi_reduction <add>, %392, %cst_137 [1] : vector<16x4xf32> to vector<16xf32>
    %394 = vector.shape_cast %393 : vector<16xf32> to vector<16x1xf32>
    %395 = vector.extract_strided_slice %322 {offsets = [0, 32], sizes = [1, 32], strides = [1, 1]} : vector<1x128xf32> to vector<1x32xf32>
    %396 = vector.broadcast %394 : vector<16x1xf32> to vector<16x32xf32>
    %397 = vector.broadcast %395 : vector<1x32xf32> to vector<16x32xf32>
    %398 = arith.mulf %396, %397 : vector<16x32xf32>
    %399 = vector.extract_strided_slice %334 {offsets = [32, 0], sizes = [32, 128], strides = [1, 1]} : vector<128x128xf32> to vector<32x128xf32>
    %400 = arith.truncf %398 : vector<16x32xf32> to vector<16x32xbf16>
    %401 = arith.truncf %399 : vector<32x128xf32> to vector<32x128xbf16>
    %cst_138 = arith.constant dense<0.000000e+00> : vector<16x128xf32>
    %402 = tpu.matmul %400, %401, %cst_138 {dimension_numbers = #tpu.dot_dimension_numbers<[1], [0], [0], [1], [0, 0, 1, 1], [], []>} : vector<16x32xbf16>, vector<32x128xbf16>, vector<16x128xf32> -> vector<16x128xf32>
    %403 = arith.addf %369, %402 : vector<16x128xf32>
    %404 = vector.extract_strided_slice %329 {offsets = [0, 8], sizes = [16, 4], strides = [1, 1]} : vector<16x32xf32> to vector<16x4xf32>
    %405 = vector.extract_strided_slice %329 {offsets = [0, 24], sizes = [16, 4], strides = [1, 1]} : vector<16x32xf32> to vector<16x4xf32>
    %cst_139 = arith.constant dense<0xFF800000> : vector<16xf32>
    %406 = vector.multi_reduction <maximumf>, %405, %cst_139 [1] : vector<16x4xf32> to vector<16xf32>
    %407 = vector.shape_cast %406 : vector<16xf32> to vector<16x1xf32>
    %408 = vector.broadcast %407 : vector<16x1xf32> to vector<16x4xf32>
    %409 = arith.subf %405, %408 : vector<16x4xf32>
    %410 = math.exp %409 : vector<16x4xf32>
    %cst_140 = arith.constant dense<0.000000e+00> : vector<16xf32>
    %411 = vector.multi_reduction <add>, %410, %cst_140 [1] : vector<16x4xf32> to vector<16xf32>
    %412 = vector.shape_cast %411 : vector<16xf32> to vector<16x1xf32>
    %413 = vector.broadcast %412 : vector<16x1xf32> to vector<16x4xf32>
    %414 = arith.divf %410, %413 : vector<16x4xf32>
    %415 = vector.broadcast %333 : vector<16x1xf32> to vector<16x4xf32>
    %416 = arith.divf %404, %415 : vector<16x4xf32>
    %417 = vector.broadcast %331 : vector<16x1xf32> to vector<16x4xf32>
    %418 = arith.addf %417, %416 : vector<16x4xf32>
    %cst_141 = arith.constant 5.000000e-01 : f32
    %419 = vector.broadcast %cst_141 : f32 to vector<16x4xf32>
    %420 = arith.subf %418, %419 : vector<16x4xf32>
    %421 = math.absf %420 : vector<16x4xf32>
    %cst_142 = arith.constant 1.000000e+00 : f32
    %422 = vector.broadcast %cst_142 : f32 to vector<16x4xf32>
    %423 = arith.subf %422, %421 : vector<16x4xf32>
    %cst_143 = arith.constant 0.000000e+00 : f32
    %424 = vector.broadcast %cst_143 : f32 to vector<16x4xf32>
    %425 = arith.maximumf %424, %423 : vector<16x4xf32>
    %426 = arith.mulf %414, %425 : vector<16x4xf32>
    %cst_144 = arith.constant dense<0.000000e+00> : vector<16xf32>
    %427 = vector.multi_reduction <add>, %426, %cst_144 [1] : vector<16x4xf32> to vector<16xf32>
    %428 = vector.shape_cast %427 : vector<16xf32> to vector<16x1xf32>
    %429 = vector.extract_strided_slice %322 {offsets = [0, 64], sizes = [1, 32], strides = [1, 1]} : vector<1x128xf32> to vector<1x32xf32>
    %430 = vector.broadcast %428 : vector<16x1xf32> to vector<16x32xf32>
    %431 = vector.broadcast %429 : vector<1x32xf32> to vector<16x32xf32>
    %432 = arith.mulf %430, %431 : vector<16x32xf32>
    %433 = vector.extract_strided_slice %334 {offsets = [64, 0], sizes = [32, 128], strides = [1, 1]} : vector<128x128xf32> to vector<32x128xf32>
    %434 = arith.truncf %432 : vector<16x32xf32> to vector<16x32xbf16>
    %435 = arith.truncf %433 : vector<32x128xf32> to vector<32x128xbf16>
    %cst_145 = arith.constant dense<0.000000e+00> : vector<16x128xf32>
    %436 = tpu.matmul %434, %435, %cst_145 {dimension_numbers = #tpu.dot_dimension_numbers<[1], [0], [0], [1], [0, 0, 1, 1], [], []>} : vector<16x32xbf16>, vector<32x128xbf16>, vector<16x128xf32> -> vector<16x128xf32>
    %437 = arith.addf %403, %436 : vector<16x128xf32>
    %438 = vector.extract_strided_slice %329 {offsets = [0, 12], sizes = [16, 4], strides = [1, 1]} : vector<16x32xf32> to vector<16x4xf32>
    %439 = vector.extract_strided_slice %329 {offsets = [0, 28], sizes = [16, 4], strides = [1, 1]} : vector<16x32xf32> to vector<16x4xf32>
    %cst_146 = arith.constant dense<0xFF800000> : vector<16xf32>
    %440 = vector.multi_reduction <maximumf>, %439, %cst_146 [1] : vector<16x4xf32> to vector<16xf32>
    %441 = vector.shape_cast %440 : vector<16xf32> to vector<16x1xf32>
    %442 = vector.broadcast %441 : vector<16x1xf32> to vector<16x4xf32>
    %443 = arith.subf %439, %442 : vector<16x4xf32>
    %444 = math.exp %443 : vector<16x4xf32>
    %cst_147 = arith.constant dense<0.000000e+00> : vector<16xf32>
    %445 = vector.multi_reduction <add>, %444, %cst_147 [1] : vector<16x4xf32> to vector<16xf32>
    %446 = vector.shape_cast %445 : vector<16xf32> to vector<16x1xf32>
    %447 = vector.broadcast %446 : vector<16x1xf32> to vector<16x4xf32>
    %448 = arith.divf %444, %447 : vector<16x4xf32>
    %449 = vector.broadcast %333 : vector<16x1xf32> to vector<16x4xf32>
    %450 = arith.divf %438, %449 : vector<16x4xf32>
    %451 = vector.broadcast %331 : vector<16x1xf32> to vector<16x4xf32>
    %452 = arith.addf %451, %450 : vector<16x4xf32>
    %cst_148 = arith.constant 5.000000e-01 : f32
    %453 = vector.broadcast %cst_148 : f32 to vector<16x4xf32>
    %454 = arith.subf %452, %453 : vector<16x4xf32>
    %455 = math.absf %454 : vector<16x4xf32>
    %cst_149 = arith.constant 1.000000e+00 : f32
    %456 = vector.broadcast %cst_149 : f32 to vector<16x4xf32>
    %457 = arith.subf %456, %455 : vector<16x4xf32>
    %cst_150 = arith.constant 0.000000e+00 : f32
    %458 = vector.broadcast %cst_150 : f32 to vector<16x4xf32>
    %459 = arith.maximumf %458, %457 : vector<16x4xf32>
    %460 = arith.mulf %448, %459 : vector<16x4xf32>
    %cst_151 = arith.constant dense<0.000000e+00> : vector<16xf32>
    %461 = vector.multi_reduction <add>, %460, %cst_151 [1] : vector<16x4xf32> to vector<16xf32>
    %462 = vector.shape_cast %461 : vector<16xf32> to vector<16x1xf32>
    %463 = vector.extract_strided_slice %322 {offsets = [0, 96], sizes = [1, 32], strides = [1, 1]} : vector<1x128xf32> to vector<1x32xf32>
    %464 = vector.broadcast %462 : vector<16x1xf32> to vector<16x32xf32>
    %465 = vector.broadcast %463 : vector<1x32xf32> to vector<16x32xf32>
    %466 = arith.mulf %464, %465 : vector<16x32xf32>
    %467 = vector.extract_strided_slice %334 {offsets = [96, 0], sizes = [32, 128], strides = [1, 1]} : vector<128x128xf32> to vector<32x128xf32>
    %468 = arith.truncf %466 : vector<16x32xf32> to vector<16x32xbf16>
    %469 = arith.truncf %467 : vector<32x128xf32> to vector<32x128xbf16>
    %cst_152 = arith.constant dense<0.000000e+00> : vector<16x128xf32>
    %470 = tpu.matmul %468, %469, %cst_152 {dimension_numbers = #tpu.dot_dimension_numbers<[1], [0], [0], [1], [0, 0, 1, 1], [], []>} : vector<16x32xbf16>, vector<32x128xbf16>, vector<16x128xf32> -> vector<16x128xf32>
    %471 = arith.addf %437, %470 : vector<16x128xf32>
    %c0_153 = arith.constant 0 : index
    %c0_154 = arith.constant 0 : index
    %472 = vector.load %arg25[%c0_153, %c0_154] : memref<1x128xf32, #tpu.memory_space<vmem>>, vector<1x128xf32>
    %473 = vector.broadcast %472 : vector<1x128xf32> to vector<16x128xf32>
    %474 = arith.addf %471, %473 : vector<16x128xf32>
    %475 = arith.addf %306, %474 : vector<16x128xf32>
    %476 = vector.extract_strided_slice %6 {offsets = [4, 0], sizes = [1, 128], strides = [1, 1]} : vector<8x128xf32> to vector<1x128xf32>
    %477 = vector.extract_strided_slice %6 {offsets = [5, 0], sizes = [1, 128], strides = [1, 1]} : vector<8x128xf32> to vector<1x128xf32>
    %cst_155 = arith.constant dense<0.000000e+00> : vector<16xf32>
    %478 = vector.multi_reduction <add>, %475, %cst_155 [1] : vector<16x128xf32> to vector<16xf32>
    %479 = vector.shape_cast %478 : vector<16xf32> to vector<16x1xf32>
    %cst_156 = arith.constant 1.280000e+02 : f32
    %480 = vector.broadcast %cst_156 : f32 to vector<16x1xf32>
    %481 = arith.divf %479, %480 : vector<16x1xf32>
    %482 = vector.broadcast %481 : vector<16x1xf32> to vector<16x128xf32>
    %483 = arith.subf %475, %482 : vector<16x128xf32>
    %484 = arith.mulf %483, %483 : vector<16x128xf32>
    %cst_157 = arith.constant dense<0.000000e+00> : vector<16xf32>
    %485 = vector.multi_reduction <add>, %484, %cst_157 [1] : vector<16x128xf32> to vector<16xf32>
    %486 = vector.shape_cast %485 : vector<16xf32> to vector<16x1xf32>
    %cst_158 = arith.constant 1.280000e+02 : f32
    %487 = vector.broadcast %cst_158 : f32 to vector<16x1xf32>
    %488 = arith.divf %486, %487 : vector<16x1xf32>
    %cst_159 = arith.constant 9.99999974E-6 : f32
    %489 = vector.broadcast %cst_159 : f32 to vector<16x1xf32>
    %490 = arith.addf %488, %489 : vector<16x1xf32>
    %491 = math.rsqrt %490 : vector<16x1xf32>
    %492 = vector.broadcast %491 : vector<16x1xf32> to vector<16x128xf32>
    %493 = arith.mulf %483, %492 : vector<16x128xf32>
    %494 = vector.broadcast %476 : vector<1x128xf32> to vector<16x128xf32>
    %495 = arith.mulf %493, %494 : vector<16x128xf32>
    %496 = vector.broadcast %477 : vector<1x128xf32> to vector<16x128xf32>
    %497 = arith.addf %495, %496 : vector<16x128xf32>
    %c0_160 = arith.constant 0 : index
    %c0_161 = arith.constant 0 : index
    %498 = vector.load %arg26[%c0_160, %c0_161] : memref<128x256xf32, #tpu.memory_space<vmem>>, vector<128x256xf32>
    %499 = arith.truncf %497 : vector<16x128xf32> to vector<16x128xbf16>
    %500 = arith.truncf %498 : vector<128x256xf32> to vector<128x256xbf16>
    %cst_162 = arith.constant dense<0.000000e+00> : vector<16x256xf32>
    %501 = tpu.matmul %499, %500, %cst_162 {dimension_numbers = #tpu.dot_dimension_numbers<[1], [0], [0], [1], [0, 0, 1, 1], [], []>} : vector<16x128xbf16>, vector<128x256xbf16>, vector<16x256xf32> -> vector<16x256xf32>
    %c0_163 = arith.constant 0 : index
    %c0_164 = arith.constant 0 : index
    %502 = vector.load %arg27[%c0_163, %c0_164] : memref<1x256xf32, #tpu.memory_space<vmem>>, vector<1x256xf32>
    %503 = vector.broadcast %502 : vector<1x256xf32> to vector<16x256xf32>
    %504 = arith.addf %501, %503 : vector<16x256xf32>
    %cst_165 = arith.constant 0.000000e+00 : f32
    %505 = vector.broadcast %cst_165 : f32 to vector<16x256xf32>
    %506 = arith.maximumf %504, %505 : vector<16x256xf32>
    %c0_166 = arith.constant 0 : index
    %c0_167 = arith.constant 0 : index
    %507 = vector.load %arg28[%c0_166, %c0_167] : memref<256x128xf32, #tpu.memory_space<vmem>>, vector<256x128xf32>
    %508 = arith.truncf %506 : vector<16x256xf32> to vector<16x256xbf16>
    %509 = arith.truncf %507 : vector<256x128xf32> to vector<256x128xbf16>
    %cst_168 = arith.constant dense<0.000000e+00> : vector<16x128xf32>
    %510 = tpu.matmul %508, %509, %cst_168 {dimension_numbers = #tpu.dot_dimension_numbers<[1], [0], [0], [1], [0, 0, 1, 1], [], []>} : vector<16x256xbf16>, vector<256x128xbf16>, vector<16x128xf32> -> vector<16x128xf32>
    %c0_169 = arith.constant 0 : index
    %c0_170 = arith.constant 0 : index
    %511 = vector.load %arg29[%c0_169, %c0_170] : memref<1x128xf32, #tpu.memory_space<vmem>>, vector<1x128xf32>
    %512 = vector.broadcast %511 : vector<1x128xf32> to vector<16x128xf32>
    %513 = arith.addf %510, %512 : vector<16x128xf32>
    %514 = arith.addf %497, %513 : vector<16x128xf32>
    %515 = vector.extract_strided_slice %6 {offsets = [6, 0], sizes = [1, 128], strides = [1, 1]} : vector<8x128xf32> to vector<1x128xf32>
    %516 = vector.extract_strided_slice %6 {offsets = [7, 0], sizes = [1, 128], strides = [1, 1]} : vector<8x128xf32> to vector<1x128xf32>
    %cst_171 = arith.constant dense<0.000000e+00> : vector<16xf32>
    %517 = vector.multi_reduction <add>, %514, %cst_171 [1] : vector<16x128xf32> to vector<16xf32>
    %518 = vector.shape_cast %517 : vector<16xf32> to vector<16x1xf32>
    %cst_172 = arith.constant 1.280000e+02 : f32
    %519 = vector.broadcast %cst_172 : f32 to vector<16x1xf32>
    %520 = arith.divf %518, %519 : vector<16x1xf32>
    %521 = vector.broadcast %520 : vector<16x1xf32> to vector<16x128xf32>
    %522 = arith.subf %514, %521 : vector<16x128xf32>
    %523 = arith.mulf %522, %522 : vector<16x128xf32>
    %cst_173 = arith.constant dense<0.000000e+00> : vector<16xf32>
    %524 = vector.multi_reduction <add>, %523, %cst_173 [1] : vector<16x128xf32> to vector<16xf32>
    %525 = vector.shape_cast %524 : vector<16xf32> to vector<16x1xf32>
    %cst_174 = arith.constant 1.280000e+02 : f32
    %526 = vector.broadcast %cst_174 : f32 to vector<16x1xf32>
    %527 = arith.divf %525, %526 : vector<16x1xf32>
    %cst_175 = arith.constant 9.99999974E-6 : f32
    %528 = vector.broadcast %cst_175 : f32 to vector<16x1xf32>
    %529 = arith.addf %527, %528 : vector<16x1xf32>
    %530 = math.rsqrt %529 : vector<16x1xf32>
    %531 = vector.broadcast %530 : vector<16x1xf32> to vector<16x128xf32>
    %532 = arith.mulf %522, %531 : vector<16x128xf32>
    %533 = vector.broadcast %515 : vector<1x128xf32> to vector<16x128xf32>
    %534 = arith.mulf %532, %533 : vector<16x128xf32>
    %535 = vector.broadcast %516 : vector<1x128xf32> to vector<16x128xf32>
    %536 = arith.addf %534, %535 : vector<16x128xf32>
    %c0_176 = arith.constant 0 : index
    %c0_177 = arith.constant 0 : index
    %c0_178 = arith.constant 0 : index
    %537 = vector.load %arg31[%c0_176, %c0_177, %c0_178] : memref<1x16x128xf32, #tpu.memory_space<vmem>>, vector<1x16x128xf32>
    %538 = vector.shape_cast %537 : vector<1x16x128xf32> to vector<16x128xf32>
    %539 = vector.shape_cast %536 : vector<16x128xf32> to vector<1x16x128xf32>
    tpu.vector_store %arg31[%c0_176, %c0_177, %c0_178], %539 {strides = array<i32>} : memref<1x16x128xf32, #tpu.memory_space<vmem>>, vector<1x16x128xf32>,
    return
  }
  func.func @transform_0(%arg0: i32) -> (i32, i32, i32) {
    %c0_i32 = arith.constant 0 : i32
    %c0_i32_0 = arith.constant 0 : i32
    %c0_i32_1 = arith.constant 0 : i32
    return %arg0, %c0_i32, %c0_i32_0 : i32, i32, i32
  }
  func.func @transform_1(%arg0: i32) -> (i32, i32, i32) {
    %c0_i32 = arith.constant 0 : i32
    %c0_i32_0 = arith.constant 0 : i32
    %c0_i32_1 = arith.constant 0 : i32
    return %arg0, %c0_i32, %c0_i32_0 : i32, i32, i32
  }
  func.func @transform_2(%arg0: i32) -> (i32, i32, i32) {
    %c0_i32 = arith.constant 0 : i32
    %c0_i32_0 = arith.constant 0 : i32
    %c0_i32_1 = arith.constant 0 : i32
    return %arg0, %c0_i32, %c0_i32_0 : i32, i32, i32
  }
  func.func @transform_3(%arg0: i32) -> (i32, i32, i32) {
    %c0_i32 = arith.constant 0 : i32
    %c0_i32_0 = arith.constant 0 : i32
    %c0_i32_1 = arith.constant 0 : i32
    return %arg0, %c0_i32, %c0_i32_0 : i32, i32, i32
  }
  func.func @transform_4(%arg0: i32) -> (i32, i32, i32) {
    %c0_i32 = arith.constant 0 : i32
    %c0_i32_0 = arith.constant 0 : i32
    %c0_i32_1 = arith.constant 0 : i32
    return %arg0, %c0_i32, %c0_i32_0 : i32, i32, i32
  }
  func.func @transform_5(%arg0: i32) -> (i32, i32, i32) {
    %c0_i32 = arith.constant 0 : i32
    %c0_i32_0 = arith.constant 0 : i32
    %c0_i32_1 = arith.constant 0 : i32
    return %arg0, %c0_i32, %c0_i32_0 : i32, i32, i32
  }
  func.func @transform_6(%arg0: i32) -> (i32, i32, i32) {
    %c0_i32 = arith.constant 0 : i32
    %c0_i32_0 = arith.constant 0 : i32
    %c0_i32_1 = arith.constant 0 : i32
    return %arg0, %c0_i32, %c0_i32_0 : i32, i32, i32
  }
  func.func @transform_7(%arg0: i32) -> (i32, i32) {
    %c0_i32 = arith.constant 0 : i32
    %c0_i32_0 = arith.constant 0 : i32
    %c0_i32_1 = arith.constant 0 : i32
    return %c0_i32, %c0_i32_0 : i32, i32
  }
  func.func @transform_8(%arg0: i32) -> (i32, i32) {
    %c0_i32 = arith.constant 0 : i32
    %c0_i32_0 = arith.constant 0 : i32
    %c0_i32_1 = arith.constant 0 : i32
    return %c0_i32, %c0_i32_0 : i32, i32
  }
  func.func @transform_9(%arg0: i32) -> (i32, i32) {
    %c0_i32 = arith.constant 0 : i32
    %c0_i32_0 = arith.constant 0 : i32
    %c0_i32_1 = arith.constant 0 : i32
    return %c0_i32, %c0_i32_0 : i32, i32
  }
  func.func @transform_10(%arg0: i32) -> (i32, i32) {
    %c0_i32 = arith.constant 0 : i32
    %c0_i32_0 = arith.constant 0 : i32
    %c0_i32_1 = arith.constant 0 : i32
    return %c0_i32, %c0_i32_0 : i32, i32
  }
  func.func @transform_11(%arg0: i32) -> (i32, i32) {
    %c0_i32 = arith.constant 0 : i32
    %c0_i32_0 = arith.constant 0 : i32
    %c0_i32_1 = arith.constant 0 : i32
    return %c0_i32, %c0_i32_0 : i32, i32
  }
  func.func @transform_12(%arg0: i32) -> (i32, i32) {
    %c0_i32 = arith.constant 0 : i32
    %c0_i32_0 = arith.constant 0 : i32
    %c0_i32_1 = arith.constant 0 : i32
    return %c0_i32, %c0_i32_0 : i32, i32
  }
  func.func @transform_13(%arg0: i32) -> (i32, i32) {
    %c0_i32 = arith.constant 0 : i32
    %c0_i32_0 = arith.constant 0 : i32
    %c0_i32_1 = arith.constant 0 : i32
    return %c0_i32, %c0_i32_0 : i32, i32
  }
  func.func @transform_14(%arg0: i32) -> (i32, i32) {
    %c0_i32 = arith.constant 0 : i32
    %c0_i32_0 = arith.constant 0 : i32
    %c0_i32_1 = arith.constant 0 : i32
    return %c0_i32, %c0_i32_0 : i32, i32
  }
  func.func @transform_15(%arg0: i32) -> (i32, i32) {
    %c0_i32 = arith.constant 0 : i32
    %c0_i32_0 = arith.constant 0 : i32
    %c0_i32_1 = arith.constant 0 : i32
    return %c0_i32, %c0_i32_0 : i32, i32
  }
  func.func @transform_16(%arg0: i32) -> (i32, i32) {
    %c0_i32 = arith.constant 0 : i32
    %c0_i32_0 = arith.constant 0 : i32
    %c0_i32_1 = arith.constant 0 : i32
    return %c0_i32, %c0_i32_0 : i32, i32
  }
  func.func @transform_17(%arg0: i32) -> (i32, i32) {
    %c0_i32 = arith.constant 0 : i32
    %c0_i32_0 = arith.constant 0 : i32
    %c0_i32_1 = arith.constant 0 : i32
    return %c0_i32, %c0_i32_0 : i32, i32
  }
  func.func @transform_18(%arg0: i32) -> (i32, i32) {
    %c0_i32 = arith.constant 0 : i32
    %c0_i32_0 = arith.constant 0 : i32
    %c0_i32_1 = arith.constant 0 : i32
    return %c0_i32, %c0_i32_0 : i32, i32
  }
  func.func @transform_19(%arg0: i32) -> (i32, i32) {
    %c0_i32 = arith.constant 0 : i32
    %c0_i32_0 = arith.constant 0 : i32
    %c0_i32_1 = arith.constant 0 : i32
    return %c0_i32, %c0_i32_0 : i32, i32
  }
  func.func @transform_20(%arg0: i32) -> (i32, i32) {
    %c0_i32 = arith.constant 0 : i32
    %c0_i32_0 = arith.constant 0 : i32
    %c0_i32_1 = arith.constant 0 : i32
    return %c0_i32, %c0_i32_0 : i32, i32
  }
  func.func @transform_21(%arg0: i32) -> (i32, i32) {
    %c0_i32 = arith.constant 0 : i32
    %c0_i32_0 = arith.constant 0 : i32
    %c0_i32_1 = arith.constant 0 : i32
    return %c0_i32, %c0_i32_0 : i32, i32
  }
  func.func @transform_22(%arg0: i32) -> (i32, i32) {
    %c0_i32 = arith.constant 0 : i32
    %c0_i32_0 = arith.constant 0 : i32
    %c0_i32_1 = arith.constant 0 : i32
    return %c0_i32, %c0_i32_0 : i32, i32
  }
  func.func @transform_23(%arg0: i32) -> (i32, i32) {
    %c0_i32 = arith.constant 0 : i32
    %c0_i32_0 = arith.constant 0 : i32
    %c0_i32_1 = arith.constant 0 : i32
    return %c0_i32, %c0_i32_0 : i32, i32
  }
  func.func @transform_24(%arg0: i32) -> (i32, i32) {
    %c0_i32 = arith.constant 0 : i32
    %c0_i32_0 = arith.constant 0 : i32
    %c0_i32_1 = arith.constant 0 : i32
    return %c0_i32, %c0_i32_0 : i32, i32
  }
  func.func @transform_25(%arg0: i32) -> (i32, i32) {
    %c0_i32 = arith.constant 0 : i32
    %c0_i32_0 = arith.constant 0 : i32
    %c0_i32_1 = arith.constant 0 : i32
    return %c0_i32, %c0_i32_0 : i32, i32
  }
  func.func @transform_26(%arg0: i32) -> (i32, i32) {
    %c0_i32 = arith.constant 0 : i32
    %c0_i32_0 = arith.constant 0 : i32
    %c0_i32_1 = arith.constant 0 : i32
    return %c0_i32, %c0_i32_0 : i32, i32
  }
  func.func @transform_27(%arg0: i32) -> (i32, i32) {
    %c0_i32 = arith.constant 0 : i32
    %c0_i32_0 = arith.constant 0 : i32
    %c0_i32_1 = arith.constant 0 : i32
    return %c0_i32, %c0_i32_0 : i32, i32
  }
  func.func @transform_28(%arg0: i32) -> (i32, i32) {
    %c0_i32 = arith.constant 0 : i32
    %c0_i32_0 = arith.constant 0 : i32
    %c0_i32_1 = arith.constant 0 : i32
    return %c0_i32, %c0_i32_0 : i32, i32
  }
  func.func @transform_29(%arg0: i32) -> (i32, i32) {
    %c0_i32 = arith.constant 0 : i32
    %c0_i32_0 = arith.constant 0 : i32
    %c0_i32_1 = arith.constant 0 : i32
    return %c0_i32, %c0_i32_0 : i32, i32
  }
  func.func @transform_30(%arg0: i32) -> (i32, i32, i32) {
    %c0_i32 = arith.constant 0 : i32
    %c0_i32_0 = arith.constant 0 : i32
    %c0_i32_1 = arith.constant 0 : i32
    return %arg0, %c0_i32, %c0_i32_0 : i32, i32, i32
  }
}

</mosaic_0001>

<llo_original>
// kernel: decoder_layer_forward.1
$region0: #{decoder_layer_forward.1}
  #allocation0 [shape = 'u32[]', space=smem, size = 0x4, offset = 0x4, fixed_abs, tag = 'smem constant byte address 0x4 - core index']
  #allocation1 [shape = 'u32[144,128]{1,0:T(1,128)}', space=vmem, size = 0x12000, scoped, tag = 'internal scratch']
  %s0 = inlined_call_operand.smem [shape: u32[31], index: -1, kind: input, shape index: {}]
  %s1 = sld [smem:[%s0]]
  %s2 = scalar_lea.smem %s0, 1
  %s3 = sld [smem:[%s2]]
  %s4 = scalar_lea.smem %s0, 2
  %s5 = sld [smem:[%s4]]
  %s6 = scalar_lea.smem %s0, 3
  %s7 = sld [smem:[%s6]]
  %s8 = scalar_lea.smem %s0, 4
  %s9 = sld [smem:[%s8]]
  %s10 = scalar_lea.smem %s0, 5
  %s11 = sld [smem:[%s10]]
  %s12 = scalar_lea.smem %s0, 6
  %s13 = sld [smem:[%s12]]
  %s14 = scalar_lea.smem %s0, 7
  %s15 = sld [smem:[%s14]]
  %s16 = scalar_lea.smem %s0, 8
  %s17 = sld [smem:[%s16]]
  %s18 = scalar_lea.smem %s0, 9
  %s19 = sld [smem:[%s18]]
  %s20 = scalar_lea.smem %s0, 10
  %s21 = sld [smem:[%s20]]
  %s22 = scalar_lea.smem %s0, 11
  %s23 = sld [smem:[%s22]]
  %s24 = scalar_lea.smem %s0, 12
  %s25 = sld [smem:[%s24]]
  %s26 = scalar_lea.smem %s0, 13
  %s27 = sld [smem:[%s26]]
  %s28 = scalar_lea.smem %s0, 14
  %s29 = sld [smem:[%s28]]
  %s30 = scalar_lea.smem %s0, 15
  %s31 = sld [smem:[%s30]]
  %s32 = scalar_lea.smem %s0, 16
  %s33 = sld [smem:[%s32]]
  %s34 = scalar_lea.smem %s0, 17
  %s35 = sld [smem:[%s34]]
  %s36 = scalar_lea.smem %s0, 18
  %s37 = sld [smem:[%s36]]
  %s38 = scalar_lea.smem %s0, 19
  %s39 = sld [smem:[%s38]]
  %s40 = scalar_lea.smem %s0, 20
  %s41 = sld [smem:[%s40]]
  %s42 = scalar_lea.smem %s0, 21
  %s43 = sld [smem:[%s42]]
  %s44 = scalar_lea.smem %s0, 22
  %s45 = sld [smem:[%s44]]
  %s46 = scalar_lea.smem %s0, 23
  %s47 = sld [smem:[%s46]]
  %s48 = scalar_lea.smem %s0, 24
  %s49 = sld [smem:[%s48]]
  %s50 = scalar_lea.smem %s0, 25
  %s51 = sld [smem:[%s50]]
  %s52 = scalar_lea.smem %s0, 26
  %s53 = sld [smem:[%s52]]
  %s54 = scalar_lea.smem %s0, 27
  %s55 = sld [smem:[%s54]]
  %s56 = scalar_lea.smem %s0, 28
  %s57 = sld [smem:[%s56]]
  %s58 = scalar_lea.smem %s0, 29
  %s59 = sld [smem:[%s58]]
  %s60 = scalar_lea.smem %s0, 30
  %s61 = sld [smem:[%s60]]
  %s62 = sld [smem:[#allocation0]]
  $region229: #{decoder_layer_forward.1} parent=0
    _
  %s64 = ssub.s32 1, %s62
  %s65 = scalar_select 0, %s64, %s62
  $region1: #{decoder_layer_forward.1} parent=0
    #allocation2 [shape = 'u8[1024]{0}', space=vmem, size = 0x400, scoped, tag = 'input window, operand 8, single buffered']
    #allocation3 [shape = 's32[2]{0}', space=sflag, size = 0x8, scoped, tag = 'scoped memory for decoder_layer_forward.1']
    #allocation4 [shape = 's32[2]{0}', space=sflag, size = 0x8, scoped, tag = 'scoped memory for decoder_layer_forward.1']
    #allocation5 [shape = 'u8[512]{0}', space=vmem, size = 0x400, scoped, tag = 'input window, operand 10, single buffered']
    #allocation6 [shape = 's32[1]{0}', space=sflag, size = 0x4, scoped, tag = 'scoped memory for decoder_layer_forward.1']
    #allocation7 [shape = 'u8[65536]{0}', space=vmem, size = 0x10000, scoped, tag = 'input window, operand 11, single buffered']
    #allocation8 [shape = 'u8[512]{0}', space=vmem, size = 0x400, scoped, tag = 'input window, operand 12, single buffered']
    #allocation9 [shape = 's32[1]{0}', space=sflag, size = 0x4, scoped, tag = 'scoped memory for decoder_layer_forward.1']
    #allocation10 [shape = 'u8[65536]{0}', space=vmem, size = 0x10000, scoped, tag = 'input window, operand 13, single buffered']
    #allocation11 [shape = 'u8[512]{0}', space=vmem, size = 0x400, scoped, tag = 'input window, operand 14, single buffered']
    #allocation12 [shape = 's32[1]{0}', space=sflag, size = 0x4, scoped, tag = 'scoped memory for decoder_layer_forward.1']
    #allocation13 [shape = 'u8[131072]{0}', space=vmem, size = 0x20000, scoped, tag = 'input window, operand 15, single buffered']
    #allocation14 [shape = 'u8[1024]{0}', space=vmem, size = 0x400, scoped, tag = 'input window, operand 16, single buffered']
    #allocation15 [shape = 's32[1]{0}', space=sflag, size = 0x4, scoped, tag = 'scoped memory for decoder_layer_forward.1']
    #allocation16 [shape = 'u8[65536]{0}', space=vmem, size = 0x10000, scoped, tag = 'input window, operand 17, single buffered']
    #allocation17 [shape = 'u8[512]{0}', space=vmem, size = 0x400, scoped, tag = 'input window, operand 18, single buffered']
    #allocation18 [shape = 's32[1]{0}', space=sflag, size = 0x4, scoped, tag = 'scoped memory for decoder_layer_forward.1']
    #allocation19 [shape = 'u8[65536]{0}', space=vmem, size = 0x10000, scoped, tag = 'input window, operand 19, single buffered']
    #allocation20 [shape = 'u8[512]{0}', space=vmem, size = 0x400, scoped, tag = 'input window, operand 20, single buffered']
    #allocation21 [shape = 's32[1]{0}', space=sflag, size = 0x4, scoped, tag = 'scoped memory for decoder_layer_forward.1']
    #allocation22 [shape = 'u8[512]{0}', space=vmem, size = 0x400, scoped, tag = 'input window, operand 22, single buffered']
    #allocation23 [shape = 'u8[65536]{0}', space=vmem, size = 0x10000, scoped, tag = 'input window, operand 23, single buffered']
    #allocation24 [shape = 's32[1]{0}', space=sflag, size = 0x4, scoped, tag = 'scoped memory for decoder_layer_forward.1']
    #allocation25 [shape = 'u8[512]{0}', space=vmem, size = 0x400, scoped, tag = 'input window, operand 24, single buffered']
    #allocation26 [shape = 'u8[131072]{0}', space=vmem, size = 0x20000, scoped, tag = 'input window, operand 25, single buffered']
    #allocation27 [shape = 's32[1]{0}', space=sflag, size = 0x4, scoped, tag = 'scoped memory for decoder_layer_forward.1']
    #allocation28 [shape = 'u8[1024]{0}', space=vmem, size = 0x400, scoped, tag = 'input window, operand 26, single buffered']
    #allocation29 [shape = 'u8[131072]{0}', space=vmem, size = 0x20000, scoped, tag = 'input window, operand 27, single buffered']
    #allocation30 [shape = 's32[1]{0}', space=sflag, size = 0x4, scoped, tag = 'scoped memory for decoder_layer_forward.1']
    #allocation31 [shape = 'u8[512]{0}', space=vmem, size = 0x400, scoped, tag = 'input window, operand 28, single buffered']
    #allocation32 [shape = 'u8[16384]{0}', space=vmem, size = 0x4000, scoped, tag = 'output window, operand 0']
    %66 = vsyncpa [#allocation3], 0
    %67 = vsyncpa [#allocation6], 0
    %68 = vsyncpa [#allocation9], 0
    %69 = vsyncpa [#allocation12], 0
    %70 = vsyncpa [#allocation15], 0
    %71 = vsyncpa [#allocation18], 0
    %72 = vsyncpa [#allocation21], 0
    %73 = vsyncpa [#allocation24], 0
    %74 = vsyncpa [#allocation27], 0
    %75 = vsyncpa [#allocation30], 0
    %76 = vsyncpa [#allocation4], 0
    %s77 = scalar_lea.sflag [#allocation4], 1
    %78 = vsyncpa %s77, 0
    loop: start=0, step=1, limit=4
    $region2: #{decoder_layer_forward.1} parent=1 // loop_pre_header
      _
    $region3: #{decoder_layer_forward.1} parent=1 // loop_header
      %s80 = sphi 0, %s84
      %p81 = scmp.ge.s32.totalorder %s80, 4
      %s90 = sphi 0, %s92
      %s93 = sphi 0, %s90
      %s94 = sphi 0, %s93
      %s110 = sphi 0, %s94
      %s116 = sphi 0, %s118
      %s119 = sphi 0, %s116
      %s120 = sphi 0, %s119
      %s136 = sphi 0, %s120
      %s142 = sphi 0, %s144
      %s145 = sphi 0, %s142
      %s146 = sphi 0, %s145
      %s162 = sphi 0, %s146
      %s168 = sphi 0, %s170
      %s171 = sphi 0, %s168
      %s172 = sphi 0, %s171
      %s188 = sphi 0, %s172
      %s194 = sphi 0, %s196
      %s197 = sphi 0, %s194
      %s198 = sphi 0, %s197
      %s214 = sphi 0, %s198
      %s220 = sphi 0, %s222
      %s223 = sphi 0, %s220
      %s224 = sphi 0, %s223
      %s240 = sphi 0, %s224
      %s246 = sphi 0, %s248
      %s249 = sphi 0, %s246
      %s250 = sphi 0, %s249
      %s266 = sphi 0, %s250
      %s270 = sphi 0, %s270
      %s272 = sphi 0, %s270
      %s273 = sphi 0, %s272
      %s287 = sphi 0, %s273
      %s291 = sphi 0, %s291
      %s293 = sphi 0, %s291
      %s294 = sphi 0, %s293
      %s308 = sphi 0, %s294
      %s312 = sphi 0, %s312
      %s314 = sphi 0, %s312
      %s315 = sphi 0, %s314
      %s329 = sphi 0, %s315
      %s333 = sphi 0, %s333
      %s335 = sphi 0, %s333
      %s336 = sphi 0, %s335
      %s350 = sphi 0, %s336
      %s354 = sphi 0, %s354
      %s356 = sphi 0, %s354
      %s357 = sphi 0, %s356
      %s371 = sphi 0, %s357
      %s375 = sphi 0, %s375
      %s377 = sphi 0, %s375
      %s378 = sphi 0, %s377
      %s392 = sphi 0, %s378
      %s396 = sphi 0, %s396
      %s398 = sphi 0, %s396
      %s399 = sphi 0, %s398
      %s413 = sphi 0, %s399
      %s417 = sphi 0, %s417
      %s419 = sphi 0, %s417
      %s420 = sphi 0, %s419
      %s434 = sphi 0, %s420
      %s438 = sphi 0, %s438
      %s440 = sphi 0, %s438
      %s441 = sphi 0, %s440
      %s455 = sphi 0, %s441
      %s459 = sphi 0, %s459
      %s461 = sphi 0, %s459
      %s462 = sphi 0, %s461
      %s476 = sphi 0, %s462
      %s480 = sphi 0, %s480
      %s482 = sphi 0, %s480
      %s483 = sphi 0, %s482
      %s497 = sphi 0, %s483
      %s501 = sphi 0, %s501
      %s503 = sphi 0, %s501
      %s504 = sphi 0, %s503
      %s518 = sphi 0, %s504
      %s522 = sphi 0, %s522
      %s524 = sphi 0, %s522
      %s525 = sphi 0, %s524
      %s539 = sphi 0, %s525
      %s543 = sphi 0, %s543
      %s545 = sphi 0, %s543
      %s546 = sphi 0, %s545
      %s560 = sphi 0, %s546
      %s564 = sphi 0, %s564
      %s566 = sphi 0, %s564
      %s567 = sphi 0, %s566
      %s581 = sphi 0, %s567
      %s585 = sphi 0, %s585
      %s587 = sphi 0, %s585
      %s588 = sphi 0, %s587
      %s602 = sphi 0, %s588
      %s606 = sphi 0, %s606
      %s608 = sphi 0, %s606
      %s609 = sphi 0, %s608
      %s623 = sphi 0, %s609
      %s627 = sphi 0, %s627
      %s629 = sphi 0, %s627
      %s630 = sphi 0, %s629
      %s644 = sphi 0, %s630
      %s648 = sphi 0, %s648
      %s650 = sphi 0, %s648
      %s651 = sphi 0, %s650
      %s665 = sphi 0, %s651
      %s669 = sphi 0, %s669
      %s671 = sphi 0, %s669
      %s672 = sphi 0, %s671
      %s686 = sphi 0, %s672
      %s690 = sphi 0, %s690
      %s692 = sphi 0, %s690
      %s693 = sphi 0, %s692
      %s707 = sphi 0, %s693
      %s711 = sphi 0, %s711
      %s713 = sphi 0, %s711
      %s714 = sphi 0, %s713
      %s728 = sphi 0, %s714
      %s732 = sphi 0, %s732
      %s734 = sphi 0, %s732
      %s735 = sphi 0, %s734
      %s749 = sphi 0, %s735
      %s755 = sphi 0, %s757
      %s758 = sphi 0, %s755
      %s759 = sphi 0, %s758
      %s775 = sphi 0, %s759
    $region4: #{decoder_layer_forward.1} parent=1 // loop_header_branch
      %83 = sbr.rel (%p81) target = $region8
    $region5: #{decoder_layer_forward.1} parent=1 // loop_body
      %s85 = ssub.s32 %s80, 1
      %s86 = ssub.s32 %s80, 2
      %s87 = sadd.s32 %s80, 1
      %s88 = ssub.s32 %s80, %s87
      %p89 = scmp.eq.s32.totalorder %s88, 0
      %s91 = sadd.s32 %s90, 1
      %s92 = scalar_select %p89, %s90, %s91
      %p95 = pneg %p89
      %p96 = scmp.eq.s32.totalorder %s80, 1
      %p97 = por %p95, %p96
      %p98 = scmp.ne.s32.totalorder %s90, %s93
      %p99 = scmp.eq.s32.totalorder %s80, 0
      %p100 = por %p98, %p99
      %p101 = scmp.ne.s32.totalorder %s90, %s93
      %p102 = scmp.eq.s32.totalorder %s85, 1
      %p103 = por %p101, %p102
      %p104 = scmp.ne.s32.totalorder %s93, %s94
      %p105 = scmp.eq.s32.totalorder %s85, 0
      %p106 = por %p104, %p105
      %p107 = scmp.ne.s32.totalorder %s93, %s94
      %p108 = scmp.eq.s32.totalorder %s86, 1
      %p109 = por %p107, %p108
      %p111 = scmp.ne.s32.totalorder %s94, %s110
      %p112 = scmp.eq.s32.totalorder %s86, 0
      %p113 = por %p111, %p112
      %s114 = ssub.s32 %s80, %s87
      %p115 = scmp.eq.s32.totalorder %s114, 0
      %s117 = sadd.s32 %s116, 1
      %s118 = scalar_select %p115, %s116, %s117
      %p121 = pneg %p115
      %p122 = scmp.eq.s32.totalorder %s80, 1
      %p123 = por %p121, %p122
      %p124 = scmp.ne.s32.totalorder %s116, %s119
      %p125 = scmp.eq.s32.totalorder %s80, 0
      %p126 = por %p124, %p125
      %p127 = scmp.ne.s32.totalorder %s116, %s119
      %p128 = scmp.eq.s32.totalorder %s85, 1
      %p129 = por %p127, %p128
      %p130 = scmp.ne.s32.totalorder %s119, %s120
      %p131 = scmp.eq.s32.totalorder %s85, 0
      %p132 = por %p130, %p131
      %p133 = scmp.ne.s32.totalorder %s119, %s120
      %p134 = scmp.eq.s32.totalorder %s86, 1
      %p135 = por %p133, %p134
      %p137 = scmp.ne.s32.totalorder %s120, %s136
      %p138 = scmp.eq.s32.totalorder %s86, 0
      %p139 = por %p137, %p138
      %s140 = ssub.s32 %s80, %s87
      %p141 = scmp.eq.s32.totalorder %s140, 0
      %s143 = sadd.s32 %s142, 1
      %s144 = scalar_select %p141, %s142, %s143
      %p147 = pneg %p141
      %p148 = scmp.eq.s32.totalorder %s80, 1
      %p149 = por %p147, %p148
      %p150 = scmp.ne.s32.totalorder %s142, %s145
      %p151 = scmp.eq.s32.totalorder %s80, 0
      %p152 = por %p150, %p151
      %p153 = scmp.ne.s32.totalorder %s142, %s145
      %p154 = scmp.eq.s32.totalorder %s85, 1
      %p155 = por %p153, %p154
      %p156 = scmp.ne.s32.totalorder %s145, %s146
      %p157 = scmp.eq.s32.totalorder %s85, 0
      %p158 = por %p156, %p157
      %p159 = scmp.ne.s32.totalorder %s145, %s146
      %p160 = scmp.eq.s32.totalorder %s86, 1
      %p161 = por %p159, %p160
      %p163 = scmp.ne.s32.totalorder %s146, %s162
      %p164 = scmp.eq.s32.totalorder %s86, 0
      %p165 = por %p163, %p164
      %s166 = ssub.s32 %s80, %s87
      %p167 = scmp.eq.s32.totalorder %s166, 0
      %s169 = sadd.s32 %s168, 1
      %s170 = scalar_select %p167, %s168, %s169
      %p173 = pneg %p167
      %p174 = scmp.eq.s32.totalorder %s80, 1
      %p175 = por %p173, %p174
      %p176 = scmp.ne.s32.totalorder %s168, %s171
      %p177 = scmp.eq.s32.totalorder %s80, 0
      %p178 = por %p176, %p177
      %p179 = scmp.ne.s32.totalorder %s168, %s171
      %p180 = scmp.eq.s32.totalorder %s85, 1
      %p181 = por %p179, %p180
      %p182 = scmp.ne.s32.totalorder %s171, %s172
      %p183 = scmp.eq.s32.totalorder %s85, 0
      %p184 = por %p182, %p183
      %p185 = scmp.ne.s32.totalorder %s171, %s172
      %p186 = scmp.eq.s32.totalorder %s86, 1
      %p187 = por %p185, %p186
      %p189 = scmp.ne.s32.totalorder %s172, %s188
      %p190 = scmp.eq.s32.totalorder %s86, 0
      %p191 = por %p189, %p190
      %s192 = ssub.s32 %s80, %s87
      %p193 = scmp.eq.s32.totalorder %s192, 0
      %s195 = sadd.s32 %s194, 1
      %s196 = scalar_select %p193, %s194, %s195
      %p199 = pneg %p193
      %p200 = scmp.eq.s32.totalorder %s80, 1
      %p201 = por %p199, %p200
      %p202 = scmp.ne.s32.totalorder %s194, %s197
      %p203 = scmp.eq.s32.totalorder %s80, 0
      %p204 = por %p202, %p203
      %p205 = scmp.ne.s32.totalorder %s194, %s197
      %p206 = scmp.eq.s32.totalorder %s85, 1
      %p207 = por %p205, %p206
      %p208 = scmp.ne.s32.totalorder %s197, %s198
      %p209 = scmp.eq.s32.totalorder %s85, 0
      %p210 = por %p208, %p209
      %p211 = scmp.ne.s32.totalorder %s197, %s198
      %p212 = scmp.eq.s32.totalorder %s86, 1
      %p213 = por %p211, %p212
      %p215 = scmp.ne.s32.totalorder %s198, %s214
      %p216 = scmp.eq.s32.totalorder %s86, 0
      %p217 = por %p215, %p216
      %s218 = ssub.s32 %s80, %s87
      %p219 = scmp.eq.s32.totalorder %s218, 0
      %s221 = sadd.s32 %s220, 1
      %s222 = scalar_select %p219, %s220, %s221
      %p225 = pneg %p219
      %p226 = scmp.eq.s32.totalorder %s80, 1
      %p227 = por %p225, %p226
      %p228 = scmp.ne.s32.totalorder %s220, %s223
      %p229 = scmp.eq.s32.totalorder %s80, 0
      %p230 = por %p228, %p229
      %p231 = scmp.ne.s32.totalorder %s220, %s223
      %p232 = scmp.eq.s32.totalorder %s85, 1
      %p233 = por %p231, %p232
      %p234 = scmp.ne.s32.totalorder %s223, %s224
      %p235 = scmp.eq.s32.totalorder %s85, 0
      %p236 = por %p234, %p235
      %p237 = scmp.ne.s32.totalorder %s223, %s224
      %p238 = scmp.eq.s32.totalorder %s86, 1
      %p239 = por %p237, %p238
      %p241 = scmp.ne.s32.totalorder %s224, %s240
      %p242 = scmp.eq.s32.totalorder %s86, 0
      %p243 = por %p241, %p242
      %s244 = ssub.s32 %s80, %s87
      %p245 = scmp.eq.s32.totalorder %s244, 0
      %s247 = sadd.s32 %s246, 1
      %s248 = scalar_select %p245, %s246, %s247
      %p251 = pneg %p245
      %p252 = scmp.eq.s32.totalorder %s80, 1
      %p253 = por %p251, %p252
      %p254 = scmp.ne.s32.totalorder %s246, %s249
      %p255 = scmp.eq.s32.totalorder %s80, 0
      %p256 = por %p254, %p255
      %p257 = scmp.ne.s32.totalorder %s246, %s249
      %p258 = scmp.eq.s32.totalorder %s85, 1
      %p259 = por %p257, %p258
      %p260 = scmp.ne.s32.totalorder %s249, %s250
      %p261 = scmp.eq.s32.totalorder %s85, 0
      %p262 = por %p260, %p261
      %p263 = scmp.ne.s32.totalorder %s249, %s250
      %p264 = scmp.eq.s32.totalorder %s86, 1
      %p265 = por %p263, %p264
      %p267 = scmp.ne.s32.totalorder %s250, %s266
      %p268 = scmp.eq.s32.totalorder %s86, 0
      %p269 = por %p267, %p268
      %s271 = sadd.s32 %s270, 1
      %p274 = scmp.eq.s32.totalorder %s80, 1
      %p275 = scmp.ne.s32.totalorder %s270, %s272
      %p276 = scmp.eq.s32.totalorder %s80, 0
      %p277 = por %p275, %p276
      %p278 = scmp.ne.s32.totalorder %s270, %s272
      %p279 = scmp.eq.s32.totalorder %s85, 1
      %p280 = por %p278, %p279
      %p281 = scmp.ne.s32.totalorder %s272, %s273
      %p282 = scmp.eq.s32.totalorder %s85, 0
      %p283 = por %p281, %p282
      %p284 = scmp.ne.s32.totalorder %s272, %s273
      %p285 = scmp.eq.s32.totalorder %s86, 1
      %p286 = por %p284, %p285
      %p288 = scmp.ne.s32.totalorder %s273, %s287
      %p289 = scmp.eq.s32.totalorder %s86, 0
      %p290 = por %p288, %p289
      %s292 = sadd.s32 %s291, 1
      %p295 = scmp.eq.s32.totalorder %s80, 1
      %p296 = scmp.ne.s32.totalorder %s291, %s293
      %p297 = scmp.eq.s32.totalorder %s80, 0
      %p298 = por %p296, %p297
      %p299 = scmp.ne.s32.totalorder %s291, %s293
      %p300 = scmp.eq.s32.totalorder %s85, 1
      %p301 = por %p299, %p300
      %p302 = scmp.ne.s32.totalorder %s293, %s294
      %p303 = scmp.eq.s32.totalorder %s85, 0
      %p304 = por %p302, %p303
      %p305 = scmp.ne.s32.totalorder %s293, %s294
      %p306 = scmp.eq.s32.totalorder %s86, 1
      %p307 = por %p305, %p306
      %p309 = scmp.ne.s32.totalorder %s294, %s308
      %p310 = scmp.eq.s32.totalorder %s86, 0
      %p311 = por %p309, %p310
      %s313 = sadd.s32 %s312, 1
      %p316 = scmp.eq.s32.totalorder %s80, 1
      %p317 = scmp.ne.s32.totalorder %s312, %s314
      %p318 = scmp.eq.s32.totalorder %s80, 0
      %p319 = por %p317, %p318
      %p320 = scmp.ne.s32.totalorder %s312, %s314
      %p321 = scmp.eq.s32.totalorder %s85, 1
      %p322 = por %p320, %p321
      %p323 = scmp.ne.s32.totalorder %s314, %s315
      %p324 = scmp.eq.s32.totalorder %s85, 0
      %p325 = por %p323, %p324
      %p326 = scmp.ne.s32.totalorder %s314, %s315
      %p327 = scmp.eq.s32.totalorder %s86, 1
      %p328 = por %p326, %p327
      %p330 = scmp.ne.s32.totalorder %s315, %s329
      %p331 = scmp.eq.s32.totalorder %s86, 0
      %p332 = por %p330, %p331
      %s334 = sadd.s32 %s333, 1
      %p337 = scmp.eq.s32.totalorder %s80, 1
      %p338 = scmp.ne.s32.totalorder %s333, %s335
      %p339 = scmp.eq.s32.totalorder %s80, 0
      %p340 = por %p338, %p339
      %p341 = scmp.ne.s32.totalorder %s333, %s335
      %p342 = scmp.eq.s32.totalorder %s85, 1
      %p343 = por %p341, %p342
      %p344 = scmp.ne.s32.totalorder %s335, %s336
      %p345 = scmp.eq.s32.totalorder %s85, 0
      %p346 = por %p344, %p345
      %p347 = scmp.ne.s32.totalorder %s335, %s336
      %p348 = scmp.eq.s32.totalorder %s86, 1
      %p349 = por %p347, %p348
      %p351 = scmp.ne.s32.totalorder %s336, %s350
      %p352 = scmp.eq.s32.totalorder %s86, 0
      %p353 = por %p351, %p352
      %s355 = sadd.s32 %s354, 1
      %p358 = scmp.eq.s32.totalorder %s80, 1
      %p359 = scmp.ne.s32.totalorder %s354, %s356
      %p360 = scmp.eq.s32.totalorder %s80, 0
      %p361 = por %p359, %p360
      %p362 = scmp.ne.s32.totalorder %s354, %s356
      %p363 = scmp.eq.s32.totalorder %s85, 1
      %p364 = por %p362, %p363
      %p365 = scmp.ne.s32.totalorder %s356, %s357
      %p366 = scmp.eq.s32.totalorder %s85, 0
      %p367 = por %p365, %p366
      %p368 = scmp.ne.s32.totalorder %s356, %s357
      %p369 = scmp.eq.s32.totalorder %s86, 1
      %p370 = por %p368, %p369
      %p372 = scmp.ne.s32.totalorder %s357, %s371
      %p373 = scmp.eq.s32.totalorder %s86, 0
      %p374 = por %p372, %p373
      %s376 = sadd.s32 %s375, 1
      %p379 = scmp.eq.s32.totalorder %s80, 1
      %p380 = scmp.ne.s32.totalorder %s375, %s377
      %p381 = scmp.eq.s32.totalorder %s80, 0
      %p382 = por %p380, %p381
      %p383 = scmp.ne.s32.totalorder %s375, %s377
      %p384 = scmp.eq.s32.totalorder %s85, 1
      %p385 = por %p383, %p384
      %p386 = scmp.ne.s32.totalorder %s377, %s378
      %p387 = scmp.eq.s32.totalorder %s85, 0
      %p388 = por %p386, %p387
      %p389 = scmp.ne.s32.totalorder %s377, %s378
      %p390 = scmp.eq.s32.totalorder %s86, 1
      %p391 = por %p389, %p390
      %p393 = scmp.ne.s32.totalorder %s378, %s392
      %p394 = scmp.eq.s32.totalorder %s86, 0
      %p395 = por %p393, %p394
      %s397 = sadd.s32 %s396, 1
      %p400 = scmp.eq.s32.totalorder %s80, 1
      %p401 = scmp.ne.s32.totalorder %s396, %s398
      %p402 = scmp.eq.s32.totalorder %s80, 0
      %p403 = por %p401, %p402
      %p404 = scmp.ne.s32.totalorder %s396, %s398
      %p405 = scmp.eq.s32.totalorder %s85, 1
      %p406 = por %p404, %p405
      %p407 = scmp.ne.s32.totalorder %s398, %s399
      %p408 = scmp.eq.s32.totalorder %s85, 0
      %p409 = por %p407, %p408
      %p410 = scmp.ne.s32.totalorder %s398, %s399
      %p411 = scmp.eq.s32.totalorder %s86, 1
      %p412 = por %p410, %p411
      %p414 = scmp.ne.s32.totalorder %s399, %s413
      %p415 = scmp.eq.s32.totalorder %s86, 0
      %p416 = por %p414, %p415
      %s418 = sadd.s32 %s417, 1
      %p421 = scmp.eq.s32.totalorder %s80, 1
      %p422 = scmp.ne.s32.totalorder %s417, %s419
      %p423 = scmp.eq.s32.totalorder %s80, 0
      %p424 = por %p422, %p423
      %p425 = scmp.ne.s32.totalorder %s417, %s419
      %p426 = scmp.eq.s32.totalorder %s85, 1
      %p427 = por %p425, %p426
      %p428 = scmp.ne.s32.totalorder %s419, %s420
      %p429 = scmp.eq.s32.totalorder %s85, 0
      %p430 = por %p428, %p429
      %p431 = scmp.ne.s32.totalorder %s419, %s420
      %p432 = scmp.eq.s32.totalorder %s86, 1
      %p433 = por %p431, %p432
      %p435 = scmp.ne.s32.totalorder %s420, %s434
      %p436 = scmp.eq.s32.totalorder %s86, 0
      %p437 = por %p435, %p436
      %s439 = sadd.s32 %s438, 1
      %p442 = scmp.eq.s32.totalorder %s80, 1
      %p443 = scmp.ne.s32.totalorder %s438, %s440
      %p444 = scmp.eq.s32.totalorder %s80, 0
      %p445 = por %p443, %p444
      %p446 = scmp.ne.s32.totalorder %s438, %s440
      %p447 = scmp.eq.s32.totalorder %s85, 1
      %p448 = por %p446, %p447
      %p449 = scmp.ne.s32.totalorder %s440, %s441
      %p450 = scmp.eq.s32.totalorder %s85, 0
      %p451 = por %p449, %p450
      %p452 = scmp.ne.s32.totalorder %s440, %s441
      %p453 = scmp.eq.s32.totalorder %s86, 1
      %p454 = por %p452, %p453
      %p456 = scmp.ne.s32.totalorder %s441, %s455
      %p457 = scmp.eq.s32.totalorder %s86, 0
      %p458 = por %p456, %p457
      %s460 = sadd.s32 %s459, 1
      %p463 = scmp.eq.s32.totalorder %s80, 1
      %p464 = scmp.ne.s32.totalorder %s459, %s461
      %p465 = scmp.eq.s32.totalorder %s80, 0
      %p466 = por %p464, %p465
      %p467 = scmp.ne.s32.totalorder %s459, %s461
      %p468 = scmp.eq.s32.totalorder %s85, 1
      %p469 = por %p467, %p468
      %p470 = scmp.ne.s32.totalorder %s461, %s462
      %p471 = scmp.eq.s32.totalorder %s85, 0
      %p472 = por %p470, %p471
      %p473 = scmp.ne.s32.totalorder %s461, %s462
      %p474 = scmp.eq.s32.totalorder %s86, 1
      %p475 = por %p473, %p474
      %p477 = scmp.ne.s32.totalorder %s462, %s476
      %p478 = scmp.eq.s32.totalorder %s86, 0
      %p479 = por %p477, %p478
      %s481 = sadd.s32 %s480, 1
      %p484 = scmp.eq.s32.totalorder %s80, 1
      %p485 = scmp.ne.s32.totalorder %s480, %s482
      %p486 = scmp.eq.s32.totalorder %s80, 0
      %p487 = por %p485, %p486
      %p488 = scmp.ne.s32.totalorder %s480, %s482
      %p489 = scmp.eq.s32.totalorder %s85, 1
      %p490 = por %p488, %p489
      %p491 = scmp.ne.s32.totalorder %s482, %s483
      %p492 = scmp.eq.s32.totalorder %s85, 0
      %p493 = por %p491, %p492
      %p494 = scmp.ne.s32.totalorder %s482, %s483
      %p495 = scmp.eq.s32.totalorder %s86, 1
      %p496 = por %p494, %p495
      %p498 = scmp.ne.s32.totalorder %s483, %s497
      %p499 = scmp.eq.s32.totalorder %s86, 0
      %p500 = por %p498, %p499
      %s502 = sadd.s32 %s501, 1
      %p505 = scmp.eq.s32.totalorder %s80, 1
      %p506 = scmp.ne.s32.totalorder %s501, %s503
      %p507 = scmp.eq.s32.totalorder %s80, 0
      %p508 = por %p506, %p507
      %p509 = scmp.ne.s32.totalorder %s501, %s503
      %p510 = scmp.eq.s32.totalorder %s85, 1
      %p511 = por %p509, %p510
      %p512 = scmp.ne.s32.totalorder %s503, %s504
      %p513 = scmp.eq.s32.totalorder %s85, 0
      %p514 = por %p512, %p513
      %p515 = scmp.ne.s32.totalorder %s503, %s504
      %p516 = scmp.eq.s32.totalorder %s86, 1
      %p517 = por %p515, %p516
      %p519 = scmp.ne.s32.totalorder %s504, %s518
      %p520 = scmp.eq.s32.totalorder %s86, 0
      %p521 = por %p519, %p520
      %s523 = sadd.s32 %s522, 1
      %p526 = scmp.eq.s32.totalorder %s80, 1
      %p527 = scmp.ne.s32.totalorder %s522, %s524
      %p528 = scmp.eq.s32.totalorder %s80, 0
      %p529 = por %p527, %p528
      %p530 = scmp.ne.s32.totalorder %s522, %s524
      %p531 = scmp.eq.s32.totalorder %s85, 1
      %p532 = por %p530, %p531
      %p533 = scmp.ne.s32.totalorder %s524, %s525
      %p534 = scmp.eq.s32.totalorder %s85, 0
      %p535 = por %p533, %p534
      %p536 = scmp.ne.s32.totalorder %s524, %s525
      %p537 = scmp.eq.s32.totalorder %s86, 1
      %p538 = por %p536, %p537
      %p540 = scmp.ne.s32.totalorder %s525, %s539
      %p541 = scmp.eq.s32.totalorder %s86, 0
      %p542 = por %p540, %p541
      %s544 = sadd.s32 %s543, 1
      %p547 = scmp.eq.s32.totalorder %s80, 1
      %p548 = scmp.ne.s32.totalorder %s543, %s545
      %p549 = scmp.eq.s32.totalorder %s80, 0
      %p550 = por %p548, %p549
      %p551 = scmp.ne.s32.totalorder %s543, %s545
      %p552 = scmp.eq.s32.totalorder %s85, 1
      %p553 = por %p551, %p552
      %p554 = scmp.ne.s32.totalorder %s545, %s546
      %p555 = scmp.eq.s32.totalorder %s85, 0
      %p556 = por %p554, %p555
      %p557 = scmp.ne.s32.totalorder %s545, %s546
      %p558 = scmp.eq.s32.totalorder %s86, 1
      %p559 = por %p557, %p558
      %p561 = scmp.ne.s32.totalorder %s546, %s560
      %p562 = scmp.eq.s32.totalorder %s86, 0
      %p563 = por %p561, %p562
      %s565 = sadd.s32 %s564, 1
      %p568 = scmp.eq.s32.totalorder %s80, 1
      %p569 = scmp.ne.s32.totalorder %s564, %s566
      %p570 = scmp.eq.s32.totalorder %s80, 0
      %p571 = por %p569, %p570
      %p572 = scmp.ne.s32.totalorder %s564, %s566
      %p573 = scmp.eq.s32.totalorder %s85, 1
      %p574 = por %p572, %p573
      %p575 = scmp.ne.s32.totalorder %s566, %s567
      %p576 = scmp.eq.s32.totalorder %s85, 0
      %p577 = por %p575, %p576
      %p578 = scmp.ne.s32.totalorder %s566, %s567
      %p579 = scmp.eq.s32.totalorder %s86, 1
      %p580 = por %p578, %p579
      %p582 = scmp.ne.s32.totalorder %s567, %s581
      %p583 = scmp.eq.s32.totalorder %s86, 0
      %p584 = por %p582, %p583
      %s586 = sadd.s32 %s585, 1
      %p589 = scmp.eq.s32.totalorder %s80, 1
      %p590 = scmp.ne.s32.totalorder %s585, %s587
      %p591 = scmp.eq.s32.totalorder %s80, 0
      %p592 = por %p590, %p591
      %p593 = scmp.ne.s32.totalorder %s585, %s587
      %p594 = scmp.eq.s32.totalorder %s85, 1
      %p595 = por %p593, %p594
      %p596 = scmp.ne.s32.totalorder %s587, %s588
      %p597 = scmp.eq.s32.totalorder %s85, 0
      %p598 = por %p596, %p597
      %p599 = scmp.ne.s32.totalorder %s587, %s588
      %p600 = scmp.eq.s32.totalorder %s86, 1
      %p601 = por %p599, %p600
      %p603 = scmp.ne.s32.totalorder %s588, %s602
      %p604 = scmp.eq.s32.totalorder %s86, 0
      %p605 = por %p603, %p604
      %s607 = sadd.s32 %s606, 1
      %p610 = scmp.eq.s32.totalorder %s80, 1
      %p611 = scmp.ne.s32.totalorder %s606, %s608
      %p612 = scmp.eq.s32.totalorder %s80, 0
      %p613 = por %p611, %p612
      %p614 = scmp.ne.s32.totalorder %s606, %s608
      %p615 = scmp.eq.s32.totalorder %s85, 1
      %p616 = por %p614, %p615
      %p617 = scmp.ne.s32.totalorder %s608, %s609
      %p618 = scmp.eq.s32.totalorder %s85, 0
      %p619 = por %p617, %p618
      %p620 = scmp.ne.s32.totalorder %s608, %s609
      %p621 = scmp.eq.s32.totalorder %s86, 1
      %p622 = por %p620, %p621
      %p624 = scmp.ne.s32.totalorder %s609, %s623
      %p625 = scmp.eq.s32.totalorder %s86, 0
      %p626 = por %p624, %p625
      %s628 = sadd.s32 %s627, 1
      %p631 = scmp.eq.s32.totalorder %s80, 1
      %p632 = scmp.ne.s32.totalorder %s627, %s629
      %p633 = scmp.eq.s32.totalorder %s80, 0
      %p634 = por %p632, %p633
      %p635 = scmp.ne.s32.totalorder %s627, %s629
      %p636 = scmp.eq.s32.totalorder %s85, 1
      %p637 = por %p635, %p636
      %p638 = scmp.ne.s32.totalorder %s629, %s630
      %p639 = scmp.eq.s32.totalorder %s85, 0
      %p640 = por %p638, %p639
      %p641 = scmp.ne.s32.totalorder %s629, %s630
      %p642 = scmp.eq.s32.totalorder %s86, 1
      %p643 = por %p641, %p642
      %p645 = scmp.ne.s32.totalorder %s630, %s644
      %p646 = scmp.eq.s32.totalorder %s86, 0
      %p647 = por %p645, %p646
      %s649 = sadd.s32 %s648, 1
      %p652 = scmp.eq.s32.totalorder %s80, 1
      %p653 = scmp.ne.s32.totalorder %s648, %s650
      %p654 = scmp.eq.s32.totalorder %s80, 0
      %p655 = por %p653, %p654
      %p656 = scmp.ne.s32.totalorder %s648, %s650
      %p657 = scmp.eq.s32.totalorder %s85, 1
      %p658 = por %p656, %p657
      %p659 = scmp.ne.s32.totalorder %s650, %s651
      %p660 = scmp.eq.s32.totalorder %s85, 0
      %p661 = por %p659, %p660
      %p662 = scmp.ne.s32.totalorder %s650, %s651
      %p663 = scmp.eq.s32.totalorder %s86, 1
      %p664 = por %p662, %p663
      %p666 = scmp.ne.s32.totalorder %s651, %s665
      %p667 = scmp.eq.s32.totalorder %s86, 0
      %p668 = por %p666, %p667
      %s670 = sadd.s32 %s669, 1
      %p673 = scmp.eq.s32.totalorder %s80, 1
      %p674 = scmp.ne.s32.totalorder %s669, %s671
      %p675 = scmp.eq.s32.totalorder %s80, 0
      %p676 = por %p674, %p675
      %p677 = scmp.ne.s32.totalorder %s669, %s671
      %p678 = scmp.eq.s32.totalorder %s85, 1
      %p679 = por %p677, %p678
      %p680 = scmp.ne.s32.totalorder %s671, %s672
      %p681 = scmp.eq.s32.totalorder %s85, 0
      %p682 = por %p680, %p681
      %p683 = scmp.ne.s32.totalorder %s671, %s672
      %p684 = scmp.eq.s32.totalorder %s86, 1
      %p685 = por %p683, %p684
      %p687 = scmp.ne.s32.totalorder %s672, %s686
      %p688 = scmp.eq.s32.totalorder %s86, 0
      %p689 = por %p687, %p688
      %s691 = sadd.s32 %s690, 1
      %p694 = scmp.eq.s32.totalorder %s80, 1
      %p695 = scmp.ne.s32.totalorder %s690, %s692
      %p696 = scmp.eq.s32.totalorder %s80, 0
      %p697 = por %p695, %p696
      %p698 = scmp.ne.s32.totalorder %s690, %s692
      %p699 = scmp.eq.s32.totalorder %s85, 1
      %p700 = por %p698, %p699
      %p701 = scmp.ne.s32.totalorder %s692, %s693
      %p702 = scmp.eq.s32.totalorder %s85, 0
      %p703 = por %p701, %p702
      %p704 = scmp.ne.s32.totalorder %s692, %s693
      %p705 = scmp.eq.s32.totalorder %s86, 1
      %p706 = por %p704, %p705
      %p708 = scmp.ne.s32.totalorder %s693, %s707
      %p709 = scmp.eq.s32.totalorder %s86, 0
      %p710 = por %p708, %p709
      %s712 = sadd.s32 %s711, 1
      %p715 = scmp.eq.s32.totalorder %s80, 1
      %p716 = scmp.ne.s32.totalorder %s711, %s713
      %p717 = scmp.eq.s32.totalorder %s80, 0
      %p718 = por %p716, %p717
      %p719 = scmp.ne.s32.totalorder %s711, %s713
      %p720 = scmp.eq.s32.totalorder %s85, 1
      %p721 = por %p719, %p720
      %p722 = scmp.ne.s32.totalorder %s713, %s714
      %p723 = scmp.eq.s32.totalorder %s85, 0
      %p724 = por %p722, %p723
      %p725 = scmp.ne.s32.totalorder %s713, %s714
      %p726 = scmp.eq.s32.totalorder %s86, 1
      %p727 = por %p725, %p726
      %p729 = scmp.ne.s32.totalorder %s714, %s728
      %p730 = scmp.eq.s32.totalorder %s86, 0
      %p731 = por %p729, %p730
      %s733 = sadd.s32 %s732, 1
      %p736 = scmp.eq.s32.totalorder %s80, 1
      %p737 = scmp.ne.s32.totalorder %s732, %s734
      %p738 = scmp.eq.s32.totalorder %s80, 0
      %p739 = por %p737, %p738
      %p740 = scmp.ne.s32.totalorder %s732, %s734
      %p741 = scmp.eq.s32.totalorder %s85, 1
      %p742 = por %p740, %p741
      %p743 = scmp.ne.s32.totalorder %s734, %s735
      %p744 = scmp.eq.s32.totalorder %s85, 0
      %p745 = por %p743, %p744
      %p746 = scmp.ne.s32.totalorder %s734, %s735
      %p747 = scmp.eq.s32.totalorder %s86, 1
      %p748 = por %p746, %p747
      %p750 = scmp.ne.s32.totalorder %s735, %s749
      %p751 = scmp.eq.s32.totalorder %s86, 0
      %p752 = por %p750, %p751
      %s753 = ssub.s32 %s80, %s87
      %p754 = scmp.eq.s32.totalorder %s753, 0
      %s756 = sadd.s32 %s755, 1
      %s757 = scalar_select %p754, %s755, %s756
      %p760 = pneg %p754
      %p761 = scmp.eq.s32.totalorder %s80, 1
      %p762 = por %p760, %p761
      %p763 = scmp.ne.s32.totalorder %s755, %s758
      %p764 = scmp.eq.s32.totalorder %s80, 0
      %p765 = por %p763, %p764
      %p766 = scmp.ne.s32.totalorder %s755, %s758
      %p767 = scmp.eq.s32.totalorder %s85, 1
      %p768 = por %p766, %p767
      %p769 = scmp.ne.s32.totalorder %s758, %s759
      %p770 = scmp.eq.s32.totalorder %s85, 0
      %p771 = por %p769, %p770
      %p772 = scmp.ne.s32.totalorder %s758, %s759
      %p773 = scmp.eq.s32.totalorder %s86, 1
      %p774 = por %p772, %p773
      %p776 = scmp.ne.s32.totalorder %s759, %s775
      %p777 = scmp.eq.s32.totalorder %s86, 0
      %p778 = por %p776, %p777
      %p779 = scmp.le.s32.totalorder 1, %s80
      %p780 = scmp.lt.s32.totalorder %s80, 3
      %p781 = pnand %p779, %p780
      %p782 = pneg %p781
      // Predicated region
      $region9: #{decoder_layer_forward.1} parent=5 // pred_check
        _
      $region10: #{decoder_layer_forward.1} parent=5 // pred_check_branch
        %784 = sbr.rel (%p781) target = $region12
      $region11: #{decoder_layer_forward.1} parent=5 // pred_region
        %s785 = ssub.s32 %s80, 1
        // Predicated region
        $region13: #{decoder_layer_forward.1} parent=11 // pred_check
          %p786 = pneg %p283
        $region14: #{decoder_layer_forward.1} parent=11 // pred_check_branch
          %788 = sbr.rel (%p786) target = $region16
        $region15: #{decoder_layer_forward.1} parent=11 // pred_region
          _
        $region16: #{decoder_layer_forward.1} parent=11 // pred_fallthru
          _
        // Predicated region
        $region17: #{decoder_layer_forward.1} parent=11 // pred_check
          %p789 = pneg %p304
        $region18: #{decoder_layer_forward.1} parent=11 // pred_check_branch
          %791 = sbr.rel (%p789) target = $region20
        $region19: #{decoder_layer_forward.1} parent=11 // pred_region
          %s793 = ssub.s32 32, 32
          %794 = vsyncadd [#allocation3], %s793
          %s796 = sshll.u32 [#allocation2], 4
          %s797 = int_to_ptr.vmem [resolvable:$true] %s796
          %799 = dma.hbm_to_vmem [thread:$0]  %s17, 32, %s797, [#allocation3]
        $region20: #{decoder_layer_forward.1} parent=11 // pred_fallthru
          _
        // Predicated region
        $region21: #{decoder_layer_forward.1} parent=11 // pred_check
          %p800 = pneg %p325
        $region22: #{decoder_layer_forward.1} parent=11 // pred_check_branch
          %802 = sbr.rel (%p800) target = $region24
        $region23: #{decoder_layer_forward.1} parent=11 // pred_region
          _
        $region24: #{decoder_layer_forward.1} parent=11 // pred_fallthru
          _
        // Predicated region
        $region25: #{decoder_layer_forward.1} parent=11 // pred_check
          %p803 = pneg %p346
        $region26: #{decoder_layer_forward.1} parent=11 // pred_check_branch
          %805 = sbr.rel (%p803) target = $region28
        $region27: #{decoder_layer_forward.1} parent=11 // pred_region
          %s807 = ssub.s32 16, 16
          %808 = vsyncadd [#allocation6], %s807
          %s810 = sshll.u32 [#allocation5], 4
          %s811 = int_to_ptr.vmem [resolvable:$true] %s810
          %813 = dma.hbm_to_vmem [thread:$0]  %s21, 16, %s811, [#allocation6]
        $region28: #{decoder_layer_forward.1} parent=11 // pred_fallthru
          _
        // Predicated region
        $region29: #{decoder_layer_forward.1} parent=11 // pred_check
          %p814 = pneg %p367
        $region30: #{decoder_layer_forward.1} parent=11 // pred_check_branch
          %816 = sbr.rel (%p814) target = $region32
        $region31: #{decoder_layer_forward.1} parent=11 // pred_region
          %s818 = ssub.s32 2048, 2048
          %819 = vsyncadd [#allocation6], %s818
          %s820 = sshll.u32 [#allocation7], 4
          %s821 = int_to_ptr.vmem [resolvable:$true] %s820
          %826 = dma.hbm_to_vmem [thread:$0]  %s23, 2048, %s821, [#allocation6], 128, 128, 8
        $region32: #{decoder_layer_forward.1} parent=11 // pred_fallthru
          _
        // Predicated region
        $region33: #{decoder_layer_forward.1} parent=11 // pred_check
          %p827 = pneg %p388
        $region34: #{decoder_layer_forward.1} parent=11 // pred_check_branch
          %829 = sbr.rel (%p827) target = $region36
        $region35: #{decoder_layer_forward.1} parent=11 // pred_region
          %s831 = ssub.s32 16, 16
          %832 = vsyncadd [#allocation9], %s831
          %s834 = sshll.u32 [#allocation8], 4
          %s835 = int_to_ptr.vmem [resolvable:$true] %s834
          %837 = dma.hbm_to_vmem [thread:$0]  %s25, 16, %s835, [#allocation9]
        $region36: #{decoder_layer_forward.1} parent=11 // pred_fallthru
          _
        // Predicated region
        $region37: #{decoder_layer_forward.1} parent=11 // pred_check
          %p838 = pneg %p409
        $region38: #{decoder_layer_forward.1} parent=11 // pred_check_branch
          %840 = sbr.rel (%p838) target = $region40
        $region39: #{decoder_layer_forward.1} parent=11 // pred_region
          %s842 = ssub.s32 2048, 2048
          %843 = vsyncadd [#allocation9], %s842
          %s844 = sshll.u32 [#allocation10], 4
          %s845 = int_to_ptr.vmem [resolvable:$true] %s844
          %850 = dma.hbm_to_vmem [thread:$0]  %s27, 2048, %s845, [#allocation9], 128, 128, 8
        $region40: #{decoder_layer_forward.1} parent=11 // pred_fallthru
          _
        // Predicated region
        $region41: #{decoder_layer_forward.1} parent=11 // pred_check
          %p851 = pneg %p430
        $region42: #{decoder_layer_forward.1} parent=11 // pred_check_branch
          %853 = sbr.rel (%p851) target = $region44
        $region43: #{decoder_layer_forward.1} parent=11 // pred_region
          %s855 = ssub.s32 16, 16
          %856 = vsyncadd [#allocation12], %s855
          %s858 = sshll.u32 [#allocation11], 4
          %s859 = int_to_ptr.vmem [resolvable:$true] %s858
          %861 = dma.hbm_to_vmem [thread:$0]  %s29, 16, %s859, [#allocation12]
        $region44: #{decoder_layer_forward.1} parent=11 // pred_fallthru
          _
        // Predicated region
        $region45: #{decoder_layer_forward.1} parent=11 // pred_check
          %p862 = pneg %p451
        $region46: #{decoder_layer_forward.1} parent=11 // pred_check_branch
          %864 = sbr.rel (%p862) target = $region48
        $region47: #{decoder_layer_forward.1} parent=11 // pred_region
          %s866 = ssub.s32 4096, 4096
          %867 = vsyncadd [#allocation12], %s866
          %s868 = sshll.u32 [#allocation13], 4
          %s869 = int_to_ptr.vmem [resolvable:$true] %s868
          %874 = dma.hbm_to_vmem [thread:$0]  %s31, 4096, %s869, [#allocation12], 256, 256, 16
        $region48: #{decoder_layer_forward.1} parent=11 // pred_fallthru
          _
        // Predicated region
        $region49: #{decoder_layer_forward.1} parent=11 // pred_check
          %p875 = pneg %p472
        $region50: #{decoder_layer_forward.1} parent=11 // pred_check_branch
          %877 = sbr.rel (%p875) target = $region52
        $region51: #{decoder_layer_forward.1} parent=11 // pred_region
          %s879 = ssub.s32 32, 32
          %880 = vsyncadd [#allocation15], %s879
          %s882 = sshll.u32 [#allocation14], 4
          %s883 = int_to_ptr.vmem [resolvable:$true] %s882
          %885 = dma.hbm_to_vmem [thread:$0]  %s33, 32, %s883, [#allocation15]
        $region52: #{decoder_layer_forward.1} parent=11 // pred_fallthru
          _
        // Predicated region
        $region53: #{decoder_layer_forward.1} parent=11 // pred_check
          %p886 = pneg %p493
        $region54: #{decoder_layer_forward.1} parent=11 // pred_check_branch
          %888 = sbr.rel (%p886) target = $region56
        $region55: #{decoder_layer_forward.1} parent=11 // pred_region
          %s890 = ssub.s32 2048, 2048
          %891 = vsyncadd [#allocation15], %s890
          %s892 = sshll.u32 [#allocation16], 4
          %s893 = int_to_ptr.vmem [resolvable:$true] %s892
          %898 = dma.hbm_to_vmem [thread:$0]  %s35, 2048, %s893, [#allocation15], 128, 128, 8
        $region56: #{decoder_layer_forward.1} parent=11 // pred_fallthru
          _
        // Predicated region
        $region57: #{decoder_layer_forward.1} parent=11 // pred_check
          %p899 = pneg %p514
        $region58: #{decoder_layer_forward.1} parent=11 // pred_check_branch
          %901 = sbr.rel (%p899) target = $region60
        $region59: #{decoder_layer_forward.1} parent=11 // pred_region
          %s903 = ssub.s32 16, 16
          %904 = vsyncadd [#allocation18], %s903
          %s906 = sshll.u32 [#allocation17], 4
          %s907 = int_to_ptr.vmem [resolvable:$true] %s906
          %909 = dma.hbm_to_vmem [thread:$0]  %s37, 16, %s907, [#allocation18]
        $region60: #{decoder_layer_forward.1} parent=11 // pred_fallthru
          _
        // Predicated region
        $region61: #{decoder_layer_forward.1} parent=11 // pred_check
          %p910 = pneg %p535
        $region62: #{decoder_layer_forward.1} parent=11 // pred_check_branch
          %912 = sbr.rel (%p910) target = $region64
        $region63: #{decoder_layer_forward.1} parent=11 // pred_region
          %s914 = ssub.s32 2048, 2048
          %915 = vsyncadd [#allocation18], %s914
          %s916 = sshll.u32 [#allocation19], 4
          %s917 = int_to_ptr.vmem [resolvable:$true] %s916
          %922 = dma.hbm_to_vmem [thread:$0]  %s39, 2048, %s917, [#allocation18], 128, 128, 8
        $region64: #{decoder_layer_forward.1} parent=11 // pred_fallthru
          _
        // Predicated region
        $region65: #{decoder_layer_forward.1} parent=11 // pred_check
          %p923 = pneg %p556
        $region66: #{decoder_layer_forward.1} parent=11 // pred_check_branch
          %925 = sbr.rel (%p923) target = $region68
        $region67: #{decoder_layer_forward.1} parent=11 // pred_region
          %s927 = ssub.s32 16, 16
          %928 = vsyncadd [#allocation21], %s927
          %s930 = sshll.u32 [#allocation20], 4
          %s931 = int_to_ptr.vmem [resolvable:$true] %s930
          %933 = dma.hbm_to_vmem [thread:$0]  %s41, 16, %s931, [#allocation21]
        $region68: #{decoder_layer_forward.1} parent=11 // pred_fallthru
          _
        // Predicated region
        $region69: #{decoder_layer_forward.1} parent=11 // pred_check
          %p934 = pneg %p577
        $region70: #{decoder_layer_forward.1} parent=11 // pred_check_branch
          %936 = sbr.rel (%p934) target = $region72
        $region71: #{decoder_layer_forward.1} parent=11 // pred_region
          _
        $region72: #{decoder_layer_forward.1} parent=11 // pred_fallthru
          _
        // Predicated region
        $region73: #{decoder_layer_forward.1} parent=11 // pred_check
          %p937 = pneg %p598
        $region74: #{decoder_layer_forward.1} parent=11 // pred_check_branch
          %939 = sbr.rel (%p937) target = $region76
        $region75: #{decoder_layer_forward.1} parent=11 // pred_region
          %s941 = ssub.s32 16, 16
          %942 = vsyncadd [#allocation21], %s941
          %s944 = sshll.u32 [#allocation22], 4
          %s945 = int_to_ptr.vmem [resolvable:$true] %s944
          %947 = dma.hbm_to_vmem [thread:$0]  %s45, 16, %s945, [#allocation21]
        $region76: #{decoder_layer_forward.1} parent=11 // pred_fallthru
          _
        // Predicated region
        $region77: #{decoder_layer_forward.1} parent=11 // pred_check
          %p948 = pneg %p619
        $region78: #{decoder_layer_forward.1} parent=11 // pred_check_branch
          %950 = sbr.rel (%p948) target = $region80
        $region79: #{decoder_layer_forward.1} parent=11 // pred_region
          %s952 = ssub.s32 2048, 2048
          %953 = vsyncadd [#allocation24], %s952
          %s954 = sshll.u32 [#allocation23], 4
          %s955 = int_to_ptr.vmem [resolvable:$true] %s954
          %960 = dma.hbm_to_vmem [thread:$0]  %s47, 2048, %s955, [#allocation24], 128, 128, 8
        $region80: #{decoder_layer_forward.1} parent=11 // pred_fallthru
          _
        // Predicated region
        $region81: #{decoder_layer_forward.1} parent=11 // pred_check
          %p961 = pneg %p640
        $region82: #{decoder_layer_forward.1} parent=11 // pred_check_branch
          %963 = sbr.rel (%p961) target = $region84
        $region83: #{decoder_layer_forward.1} parent=11 // pred_region
          %s965 = ssub.s32 16, 16
          %966 = vsyncadd [#allocation24], %s965
          %s968 = sshll.u32 [#allocation25], 4
          %s969 = int_to_ptr.vmem [resolvable:$true] %s968
          %971 = dma.hbm_to_vmem [thread:$0]  %s49, 16, %s969, [#allocation24]
        $region84: #{decoder_layer_forward.1} parent=11 // pred_fallthru
          _
        // Predicated region
        $region85: #{decoder_layer_forward.1} parent=11 // pred_check
          %p972 = pneg %p661
        $region86: #{decoder_layer_forward.1} parent=11 // pred_check_branch
          %974 = sbr.rel (%p972) target = $region88
        $region87: #{decoder_layer_forward.1} parent=11 // pred_region
          %s976 = ssub.s32 4096, 4096
          %977 = vsyncadd [#allocation27], %s976
          %s978 = sshll.u32 [#allocation26], 4
          %s979 = int_to_ptr.vmem [resolvable:$true] %s978
          %984 = dma.hbm_to_vmem [thread:$0]  %s51, 4096, %s979, [#allocation27], 256, 256, 16
        $region88: #{decoder_layer_forward.1} parent=11 // pred_fallthru
          _
        // Predicated region
        $region89: #{decoder_layer_forward.1} parent=11 // pred_check
          %p985 = pneg %p682
        $region90: #{decoder_layer_forward.1} parent=11 // pred_check_branch
          %987 = sbr.rel (%p985) target = $region92
        $region91: #{decoder_layer_forward.1} parent=11 // pred_region
          %s989 = ssub.s32 32, 32
          %990 = vsyncadd [#allocation27], %s989
          %s992 = sshll.u32 [#allocation28], 4
          %s993 = int_to_ptr.vmem [resolvable:$true] %s992
          %995 = dma.hbm_to_vmem [thread:$0]  %s53, 32, %s993, [#allocation27]
        $region92: #{decoder_layer_forward.1} parent=11 // pred_fallthru
          _
        // Predicated region
        $region93: #{decoder_layer_forward.1} parent=11 // pred_check
          %p996 = pneg %p703
        $region94: #{decoder_layer_forward.1} parent=11 // pred_check_branch
          %998 = sbr.rel (%p996) target = $region96
        $region95: #{decoder_layer_forward.1} parent=11 // pred_region
          %s1000 = ssub.s32 4096, 4096
          %1001 = vsyncadd [#allocation30], %s1000
          %s1002 = sshll.u32 [#allocation29], 4
          %s1003 = int_to_ptr.vmem [resolvable:$true] %s1002
          %1008 = dma.hbm_to_vmem [thread:$0]  %s55, 4096, %s1003, [#allocation30], 128, 128, 8
        $region96: #{decoder_layer_forward.1} parent=11 // pred_fallthru
          _
        // Predicated region
        $region97: #{decoder_layer_forward.1} parent=11 // pred_check
          %p1009 = pneg %p724
        $region98: #{decoder_layer_forward.1} parent=11 // pred_check_branch
          %1011 = sbr.rel (%p1009) target = $region100
        $region99: #{decoder_layer_forward.1} parent=11 // pred_region
          %s1013 = ssub.s32 16, 16
          %1014 = vsyncadd [#allocation30], %s1013
          %s1016 = sshll.u32 [#allocation31], 4
          %s1017 = int_to_ptr.vmem [resolvable:$true] %s1016
          %1019 = dma.hbm_to_vmem [thread:$0]  %s57, 16, %s1017, [#allocation30]
        $region100: #{decoder_layer_forward.1} parent=11 // pred_fallthru
          _
        // Predicated region
        $region101: #{decoder_layer_forward.1} parent=11 // pred_check
          %p1020 = pneg %p745
        $region102: #{decoder_layer_forward.1} parent=11 // pred_check_branch
          %1022 = sbr.rel (%p1020) target = $region104
        $region103: #{decoder_layer_forward.1} parent=11 // pred_region
          _
        $region104: #{decoder_layer_forward.1} parent=11 // pred_fallthru
          _
      $region12: #{decoder_layer_forward.1} parent=5 // pred_fallthru
        _
      %p1023 = scmp.lt.s32.totalorder %s80, 2
      // Predicated region
      $region105: #{decoder_layer_forward.1} parent=5 // pred_check
        %p1024 = pneg %p1023
      $region106: #{decoder_layer_forward.1} parent=5 // pred_check_branch
        %1026 = sbr.rel (%p1024) target = $region108
      $region107: #{decoder_layer_forward.1} parent=5 // pred_region
        // Predicated region
        $region109: #{decoder_layer_forward.1} parent=107 // pred_check
          %p1027 = pneg %p100
        $region110: #{decoder_layer_forward.1} parent=107 // pred_check_branch
          %1029 = sbr.rel (%p1027) target = $region112
        $region111: #{decoder_layer_forward.1} parent=107 // pred_region
          %p1030 = scmp.lt.s32.totalorder %s80, 1
          %s1031 = scalar_select %p1030, %s80, 1
          %s1032 = smul.addr %s1031, 2
          %s1033 = smul.addr %s1032, 8
          %s1034 = scalar_lea.vmem %s1, %s1033
        $region112: #{decoder_layer_forward.1} parent=107 // pred_fallthru
          _
        // Predicated region
        $region113: #{decoder_layer_forward.1} parent=107 // pred_check
          %p1035 = pneg %p126
        $region114: #{decoder_layer_forward.1} parent=107 // pred_check_branch
          %1037 = sbr.rel (%p1035) target = $region116
        $region115: #{decoder_layer_forward.1} parent=107 // pred_region
          %p1038 = scmp.lt.s32.totalorder %s80, 1
          %s1039 = scalar_select %p1038, %s80, 1
          %s1040 = smul.addr %s1039, 2
          %s1041 = smul.addr %s1040, 8
          %s1042 = scalar_lea.vmem %s3, %s1041
        $region116: #{decoder_layer_forward.1} parent=107 // pred_fallthru
          _
        // Predicated region
        $region117: #{decoder_layer_forward.1} parent=107 // pred_check
          %p1043 = pneg %p152
        $region118: #{decoder_layer_forward.1} parent=107 // pred_check_branch
          %1045 = sbr.rel (%p1043) target = $region120
        $region119: #{decoder_layer_forward.1} parent=107 // pred_region
          %p1046 = scmp.lt.s32.totalorder %s80, 1
          %s1047 = scalar_select %p1046, %s80, 1
          %s1048 = smul.addr %s1047, 8
          %s1049 = scalar_lea.vmem %s5, %s1048
        $region120: #{decoder_layer_forward.1} parent=107 // pred_fallthru
          _
        // Predicated region
        $region121: #{decoder_layer_forward.1} parent=107 // pred_check
          %p1050 = pneg %p178
        $region122: #{decoder_layer_forward.1} parent=107 // pred_check_branch
          %1052 = sbr.rel (%p1050) target = $region124
        $region123: #{decoder_layer_forward.1} parent=107 // pred_region
          %p1053 = scmp.lt.s32.totalorder %s80, 1
          %s1054 = scalar_select %p1053, %s80, 1
          %s1055 = scalar_lea.vmem %s7, %s1054
        $region124: #{decoder_layer_forward.1} parent=107 // pred_fallthru
          _
        // Predicated region
        $region125: #{decoder_layer_forward.1} parent=107 // pred_check
          %p1056 = pneg %p204
        $region126: #{decoder_layer_forward.1} parent=107 // pred_check_branch
          %1058 = sbr.rel (%p1056) target = $region128
        $region127: #{decoder_layer_forward.1} parent=107 // pred_region
          %p1059 = scmp.lt.s32.totalorder %s80, 1
          %s1060 = scalar_select %p1059, %s80, 1
          %s1061 = smul.addr %s1060, 8
          %s1062 = scalar_lea.vmem %s9, %s1061
        $region128: #{decoder_layer_forward.1} parent=107 // pred_fallthru
          _
        // Predicated region
        $region129: #{decoder_layer_forward.1} parent=107 // pred_check
          %p1063 = pneg %p230
        $region130: #{decoder_layer_forward.1} parent=107 // pred_check_branch
          %1065 = sbr.rel (%p1063) target = $region132
        $region131: #{decoder_layer_forward.1} parent=107 // pred_region
          %p1066 = scmp.lt.s32.totalorder %s80, 1
          %s1067 = scalar_select %p1066, %s80, 1
          %s1068 = smul.addr %s1067, 8
          %s1069 = scalar_lea.vmem %s11, %s1068
        $region132: #{decoder_layer_forward.1} parent=107 // pred_fallthru
          _
        // Predicated region
        $region133: #{decoder_layer_forward.1} parent=107 // pred_check
          %p1070 = pneg %p256
        $region134: #{decoder_layer_forward.1} parent=107 // pred_check_branch
          %1072 = sbr.rel (%p1070) target = $region136
        $region135: #{decoder_layer_forward.1} parent=107 // pred_region
          %p1073 = scmp.lt.s32.totalorder %s80, 1
          %s1074 = scalar_select %p1073, %s80, 1
          %s1075 = smul.addr %s1074, 2
          %s1076 = smul.addr %s1075, 8
          %s1077 = scalar_lea.vmem %s13, %s1076
        $region136: #{decoder_layer_forward.1} parent=107 // pred_fallthru
          _
      $region108: #{decoder_layer_forward.1} parent=5 // pred_fallthru
        _
      %p1078 = scmp.le.s32.totalorder 1, %s80
      %p1079 = scmp.lt.s32.totalorder %s80, 3
      %p1080 = pnand %p1078, %p1079
      %p1081 = pneg %p1080
      // Predicated region
      $region137: #{decoder_layer_forward.1} parent=5 // pred_check
        _
      $region138: #{decoder_layer_forward.1} parent=5 // pred_check_branch
        %1083 = sbr.rel (%p1080) target = $region140
      $region139: #{decoder_layer_forward.1} parent=5 // pred_region
        %s1084 = ssub.s32 %s80, 1
        // Predicated region
        $region141: #{decoder_layer_forward.1} parent=139 // pred_check
          %p1085 = pneg %p304
        $region142: #{decoder_layer_forward.1} parent=139 // pred_check_branch
          %1087 = sbr.rel (%p1085) target = $region144
        $region143: #{decoder_layer_forward.1} parent=139 // pred_region
          %1088 = dma.done [#allocation3], 32
        $region144: #{decoder_layer_forward.1} parent=139 // pred_fallthru
          _
        // Predicated region
        $region145: #{decoder_layer_forward.1} parent=139 // pred_check
          %p1089 = pneg %p346
        $region146: #{decoder_layer_forward.1} parent=139 // pred_check_branch
          %1091 = sbr.rel (%p1089) target = $region148
        $region147: #{decoder_layer_forward.1} parent=139 // pred_region
          %1092 = dma.done [#allocation6], 16
        $region148: #{decoder_layer_forward.1} parent=139 // pred_fallthru
          _
        // Predicated region
        $region149: #{decoder_layer_forward.1} parent=139 // pred_check
          %p1093 = pneg %p367
        $region150: #{decoder_layer_forward.1} parent=139 // pred_check_branch
          %1095 = sbr.rel (%p1093) target = $region152
        $region151: #{decoder_layer_forward.1} parent=139 // pred_region
          %1096 = dma.done [#allocation6], 2048
        $region152: #{decoder_layer_forward.1} parent=139 // pred_fallthru
          _
        // Predicated region
        $region153: #{decoder_layer_forward.1} parent=139 // pred_check
          %p1097 = pneg %p388
        $region154: #{decoder_layer_forward.1} parent=139 // pred_check_branch
          %1099 = sbr.rel (%p1097) target = $region156
        $region155: #{decoder_layer_forward.1} parent=139 // pred_region
          %1100 = dma.done [#allocation9], 16
        $region156: #{decoder_layer_forward.1} parent=139 // pred_fallthru
          _
        // Predicated region
        $region157: #{decoder_layer_forward.1} parent=139 // pred_check
          %p1101 = pneg %p409
        $region158: #{decoder_layer_forward.1} parent=139 // pred_check_branch
          %1103 = sbr.rel (%p1101) target = $region160
        $region159: #{decoder_layer_forward.1} parent=139 // pred_region
          %1104 = dma.done [#allocation9], 2048
        $region160: #{decoder_layer_forward.1} parent=139 // pred_fallthru
          _
        // Predicated region
        $region161: #{decoder_layer_forward.1} parent=139 // pred_check
          %p1105 = pneg %p430
        $region162: #{decoder_layer_forward.1} parent=139 // pred_check_branch
          %1107 = sbr.rel (%p1105) target = $region164
        $region163: #{decoder_layer_forward.1} parent=139 // pred_region
          %1108 = dma.done [#allocation12], 16
        $region164: #{decoder_layer_forward.1} parent=139 // pred_fallthru
          _
        // Predicated region
        $region165: #{decoder_layer_forward.1} parent=139 // pred_check
          %p1109 = pneg %p451
        $region166: #{decoder_layer_forward.1} parent=139 // pred_check_branch
          %1111 = sbr.rel (%p1109) target = $region168
        $region167: #{decoder_layer_forward.1} parent=139 // pred_region
          %1112 = dma.done [#allocation12], 4096
        $region168: #{decoder_layer_forward.1} parent=139 // pred_fallthru
          _
        // Predicated region
        $region169: #{decoder_layer_forward.1} parent=139 // pred_check
          %p1113 = pneg %p472
        $region170: #{decoder_layer_forward.1} parent=139 // pred_check_branch
          %1115 = sbr.rel (%p1113) target = $region172
        $region171: #{decoder_layer_forward.1} parent=139 // pred_region
          %1116 = dma.done [#allocation15], 32
        $region172: #{decoder_layer_forward.1} parent=139 // pred_fallthru
          _
        // Predicated region
        $region173: #{decoder_layer_forward.1} parent=139 // pred_check
          %p1117 = pneg %p493
        $region174: #{decoder_layer_forward.1} parent=139 // pred_check_branch
          %1119 = sbr.rel (%p1117) target = $region176
        $region175: #{decoder_layer_forward.1} parent=139 // pred_region
          %1120 = dma.done [#allocation15], 2048
        $region176: #{decoder_layer_forward.1} parent=139 // pred_fallthru
          _
        // Predicated region
        $region177: #{decoder_layer_forward.1} parent=139 // pred_check
          %p1121 = pneg %p514
        $region178: #{decoder_layer_forward.1} parent=139 // pred_check_branch
          %1123 = sbr.rel (%p1121) target = $region180
        $region179: #{decoder_layer_forward.1} parent=139 // pred_region
          %1124 = dma.done [#allocation18], 16
        $region180: #{decoder_layer_forward.1} parent=139 // pred_fallthru
          _
        // Predicated region
        $region181: #{decoder_layer_forward.1} parent=139 // pred_check
          %p1125 = pneg %p535
        $region182: #{decoder_layer_forward.1} parent=139 // pred_check_branch
          %1127 = sbr.rel (%p1125) target = $region184
        $region183: #{decoder_layer_forward.1} parent=139 // pred_region
          %1128 = dma.done [#allocation18], 2048
        $region184: #{decoder_layer_forward.1} parent=139 // pred_fallthru
          _
        // Predicated region
        $region185: #{decoder_layer_forward.1} parent=139 // pred_check
          %p1129 = pneg %p556
        $region186: #{decoder_layer_forward.1} parent=139 // pred_check_branch
          %1131 = sbr.rel (%p1129) target = $region188
        $region187: #{decoder_layer_forward.1} parent=139 // pred_region
          %1132 = dma.done [#allocation21], 16
        $region188: #{decoder_layer_forward.1} parent=139 // pred_fallthru
          _
        // Predicated region
        $region189: #{decoder_layer_forward.1} parent=139 // pred_check
          %p1133 = pneg %p598
        $region190: #{decoder_layer_forward.1} parent=139 // pred_check_branch
          %1135 = sbr.rel (%p1133) target = $region192
        $region191: #{decoder_layer_forward.1} parent=139 // pred_region
          %1136 = dma.done [#allocation21], 16
        $region192: #{decoder_layer_forward.1} parent=139 // pred_fallthru
          _
        // Predicated region
        $region193: #{decoder_layer_forward.1} parent=139 // pred_check
          %p1137 = pneg %p619
        $region194: #{decoder_layer_forward.1} parent=139 // pred_check_branch
          %1139 = sbr.rel (%p1137) target = $region196
        $region195: #{decoder_layer_forward.1} parent=139 // pred_region
          %1140 = dma.done [#allocation24], 2048
        $region196: #{decoder_layer_forward.1} parent=139 // pred_fallthru
          _
        // Predicated region
        $region197: #{decoder_layer_forward.1} parent=139 // pred_check
          %p1141 = pneg %p640
        $region198: #{decoder_layer_forward.1} parent=139 // pred_check_branch
          %1143 = sbr.rel (%p1141) target = $region200
        $region199: #{decoder_layer_forward.1} parent=139 // pred_region
          %1144 = dma.done [#allocation24], 16
        $region200: #{decoder_layer_forward.1} parent=139 // pred_fallthru
          _
        // Predicated region
        $region201: #{decoder_layer_forward.1} parent=139 // pred_check
          %p1145 = pneg %p661
        $region202: #{decoder_layer_forward.1} parent=139 // pred_check_branch
          %1147 = sbr.rel (%p1145) target = $region204
        $region203: #{decoder_layer_forward.1} parent=139 // pred_region
          %1148 = dma.done [#allocation27], 4096
        $region204: #{decoder_layer_forward.1} parent=139 // pred_fallthru
          _
        // Predicated region
        $region205: #{decoder_layer_forward.1} parent=139 // pred_check
          %p1149 = pneg %p682
        $region206: #{decoder_layer_forward.1} parent=139 // pred_check_branch
          %1151 = sbr.rel (%p1149) target = $region208
        $region207: #{decoder_layer_forward.1} parent=139 // pred_region
          %1152 = dma.done [#allocation27], 32
        $region208: #{decoder_layer_forward.1} parent=139 // pred_fallthru
          _
        // Predicated region
        $region209: #{decoder_layer_forward.1} parent=139 // pred_check
          %p1153 = pneg %p703
        $region210: #{decoder_layer_forward.1} parent=139 // pred_check_branch
          %1155 = sbr.rel (%p1153) target = $region212
        $region211: #{decoder_layer_forward.1} parent=139 // pred_region
          %1156 = dma.done [#allocation30], 4096
        $region212: #{decoder_layer_forward.1} parent=139 // pred_fallthru
          _
        // Predicated region
        $region213: #{decoder_layer_forward.1} parent=139 // pred_check
          %p1157 = pneg %p724
        $region214: #{decoder_layer_forward.1} parent=139 // pred_check_branch
          %1159 = sbr.rel (%p1157) target = $region216
        $region215: #{decoder_layer_forward.1} parent=139 // pred_region
          %1160 = dma.done [#allocation30], 16
        $region216: #{decoder_layer_forward.1} parent=139 // pred_fallthru
          _
        %p1161 = scmp.lt.s32.totalorder %s85, 1
        %s1162 = scalar_select %p1161, %s85, 1
        %s1163 = smul.addr %s1162, 2
        %s1164 = smul.addr %s1163, 8
        %s1165 = scalar_lea.vmem %s1, %s1164
        %p1166 = pneg %p106
        %p1167 = pneg %p103
        %p1168 = scmp.lt.s32.totalorder %s85, 1
        %s1169 = scalar_select %p1168, %s85, 1
        %s1170 = smul.addr %s1169, 2
        %s1171 = smul.addr %s1170, 8
        %s1172 = scalar_lea.vmem %s3, %s1171
        %p1173 = pneg %p132
        %p1174 = pneg %p129
        %p1175 = scmp.lt.s32.totalorder %s85, 1
        %s1176 = scalar_select %p1175, %s85, 1
        %s1177 = smul.addr %s1176, 8
        %s1178 = scalar_lea.vmem %s5, %s1177
        %p1179 = pneg %p158
        %p1180 = pneg %p155
        %p1181 = scmp.lt.s32.totalorder %s85, 1
        %s1182 = scalar_select %p1181, %s85, 1
        %s1183 = scalar_lea.vmem %s7, %s1182
        %p1184 = pneg %p184
        %p1185 = pneg %p181
        %p1186 = scmp.lt.s32.totalorder %s85, 1
        %s1187 = scalar_select %p1186, %s85, 1
        %s1188 = smul.addr %s1187, 8
        %s1189 = scalar_lea.vmem %s9, %s1188
        %p1190 = pneg %p210
        %p1191 = pneg %p207
        %p1192 = scmp.lt.s32.totalorder %s85, 1
        %s1193 = scalar_select %p1192, %s85, 1
        %s1194 = smul.addr %s1193, 8
        %s1195 = scalar_lea.vmem %s11, %s1194
        %p1196 = pneg %p236
        %p1197 = pneg %p233
        %p1198 = scmp.lt.s32.totalorder %s85, 1
        %s1199 = scalar_select %p1198, %s85, 1
        %s1200 = smul.addr %s1199, 2
        %s1201 = smul.addr %s1200, 8
        %s1202 = scalar_lea.vmem %s13, %s1201
        %p1203 = pneg %p262
        %p1204 = pneg %p259
        %p1205 = pneg %p283
        %p1206 = pneg %p280
        %p1207 = pneg %p304
        %p1208 = pneg %p301
        %p1209 = pneg %p325
        %p1210 = pneg %p322
        %p1211 = pneg %p346
        %p1212 = pneg %p343
        %p1213 = pneg %p367
        %p1214 = pneg %p364
        %p1215 = pneg %p388
        %p1216 = pneg %p385
        %p1217 = pneg %p409
        %p1218 = pneg %p406
        %p1219 = pneg %p430
        %p1220 = pneg %p427
        %p1221 = pneg %p451
        %p1222 = pneg %p448
        %p1223 = pneg %p472
        %p1224 = pneg %p469
        %p1225 = pneg %p493
        %p1226 = pneg %p490
        %p1227 = pneg %p514
        %p1228 = pneg %p511
        %p1229 = pneg %p535
        %p1230 = pneg %p532
        %p1231 = pneg %p556
        %p1232 = pneg %p553
        %p1233 = pneg %p577
        %p1234 = pneg %p574
        %p1235 = pneg %p598
        %p1236 = pneg %p595
        %p1237 = pneg %p619
        %p1238 = pneg %p616
        %p1239 = pneg %p640
        %p1240 = pneg %p637
        %p1241 = pneg %p661
        %p1242 = pneg %p658
        %p1243 = pneg %p682
        %p1244 = pneg %p679
        %p1245 = pneg %p703
        %p1246 = pneg %p700
        %p1247 = pneg %p724
        %p1248 = pneg %p721
        %p1249 = pneg %p745
        %p1250 = pneg %p742
        %p1251 = pneg %p771
        %p1252 = pneg %p768
        %s1253 = sand.u32 %s758, 1
        %s1254 = scalar_lea.sflag [#allocation4], %s1253
        %s1255 = sand.u32 %s758, 1
        %s1256 = smul.addr %s1255, 16
        %s1257 = scalar_lea.vmem [#allocation32], %s1256
        %p1258 = scmp.lt.s32.totalorder %s85, 1
        %s1259 = scalar_select %p1258, %s85, 1
        %s1260 = smul.addr %s1259, 2
        %s1261 = smul.addr %s1260, 8
        %s1262 = scalar_lea.vmem %s1, %s1261
        %p1263 = scmp.lt.s32.totalorder %s85, 1
        %s1264 = scalar_select %p1263, %s85, 1
        %s1265 = smul.addr %s1264, 2
        %s1266 = smul.addr %s1265, 8
        %s1267 = scalar_lea.vmem %s3, %s1266
        %p1268 = scmp.lt.s32.totalorder %s85, 1
        %s1269 = scalar_select %p1268, %s85, 1
        %s1270 = smul.addr %s1269, 8
        %s1271 = scalar_lea.vmem %s5, %s1270
        %p1272 = scmp.lt.s32.totalorder %s85, 1
        %s1273 = scalar_select %p1272, %s85, 1
        %s1274 = scalar_lea.vmem %s7, %s1273
        %p1275 = scmp.lt.s32.totalorder %s85, 1
        %s1276 = scalar_select %p1275, %s85, 1
        %s1277 = smul.addr %s1276, 8
        %s1278 = scalar_lea.vmem %s9, %s1277
        %p1279 = scmp.lt.s32.totalorder %s85, 1
        %s1280 = scalar_select %p1279, %s85, 1
        %s1281 = smul.addr %s1280, 8
        %s1282 = scalar_lea.vmem %s11, %s1281
        %p1283 = scmp.lt.s32.totalorder %s85, 1
        %s1284 = scalar_select %p1283, %s85, 1
        %s1285 = smul.addr %s1284, 2
        %s1286 = smul.addr %s1285, 8
        %s1287 = scalar_lea.vmem %s13, %s1286
        %v1289 = vld [vmem:[%s1262] sm:$0xff]
        %v1290 = vld [vmem:[%s1262 + $0x8] sm:$0xff]
        %v1291 = vld [vmem:[%s1267] sm:$0xff]
        %v1292 = vld [vmem:[%s1267 + $0x8] sm:$0xff]
        %v1293 = vld [vmem:[%s1271] sm:$0xff]
        %v1294 = vld [vmem:[%s59] sm:$0xff]
        %v1295 = vadd.f32 %v1289, %v1291
        %v1296 = vadd.f32 %v1290, %v1292
        %v1297 = vld [vmem:[%s15] sm:$0xff]
        %v1298 = vld [vmem:[%s15 + $0x8] sm:$0xff]
        %v1299 = vld [vmem:[%s15 + $0x10] sm:$0xff]
        %v1300 = vld [vmem:[%s15 + $0x18] sm:$0xff]
        %v1301 = vld [vmem:[%s15 + $0x20] sm:$0xff]
        %v1302 = vld [vmem:[%s15 + $0x28] sm:$0xff]
        %v1303 = vld [vmem:[%s15 + $0x30] sm:$0xff]
        %v1304 = vld [vmem:[%s15 + $0x38] sm:$0xff]
        %v1305 = vld [vmem:[%s15 + $0x40] sm:$0xff]
        %v1306 = vld [vmem:[%s15 + $0x48] sm:$0xff]
        %v1307 = vld [vmem:[%s15 + $0x50] sm:$0xff]
        %v1308 = vld [vmem:[%s15 + $0x58] sm:$0xff]
        %v1309 = vld [vmem:[%s15 + $0x60] sm:$0xff]
        %v1310 = vld [vmem:[%s15 + $0x68] sm:$0xff]
        %v1311 = vld [vmem:[%s15 + $0x70] sm:$0xff]
        %v1312 = vld [vmem:[%s15 + $0x78] sm:$0xff]
        %v1313 = vld [vmem:[%s15 + $0x80] sm:$0xff]
        %v1314 = vld [vmem:[%s15 + $0x88] sm:$0xff]
        %v1315 = vld [vmem:[%s15 + $0x90] sm:$0xff]
        %v1316 = vld [vmem:[%s15 + $0x98] sm:$0xff]
        %v1317 = vld [vmem:[%s15 + $0xa0] sm:$0xff]
        %v1318 = vld [vmem:[%s15 + $0xa8] sm:$0xff]
        %v1319 = vld [vmem:[%s15 + $0xb0] sm:$0xff]
        %v1320 = vld [vmem:[%s15 + $0xb8] sm:$0xff]
        %v1321 = vld [vmem:[%s15 + $0xc0] sm:$0xff]
        %v1322 = vld [vmem:[%s15 + $0xc8] sm:$0xff]
        %v1323 = vld [vmem:[%s15 + $0xd0] sm:$0xff]
        %v1324 = vld [vmem:[%s15 + $0xd8] sm:$0xff]
        %v1325 = vld [vmem:[%s15 + $0xe0] sm:$0xff]
        %v1326 = vld [vmem:[%s15 + $0xe8] sm:$0xff]
        %v1327 = vld [vmem:[%s15 + $0xf0] sm:$0xff]
        %v1328 = vld [vmem:[%s15 + $0xf8] sm:$0xff]
        %v1329 = vpack.c.bf16 %v1296, %v1295
        %v1330 = vpack.c.bf16 %v1299, %v1297
        %v1331 = vpack.c.bf16 %v1300, %v1298
        %v1332 = vpack.c.bf16 %v1303, %v1301
        %v1333 = vpack.c.bf16 %v1304, %v1302
        %v1334 = vpack.c.bf16 %v1307, %v1305
        %v1335 = vpack.c.bf16 %v1308, %v1306
        %v1336 = vpack.c.bf16 %v1311, %v1309
        %v1337 = vpack.c.bf16 %v1312, %v1310
        %v1338 = vpack.c.bf16 %v1315, %v1313
        %v1339 = vpack.c.bf16 %v1316, %v1314
        %v1340 = vpack.c.bf16 %v1319, %v1317
        %v1341 = vpack.c.bf16 %v1320, %v1318
        %v1342 = vpack.c.bf16 %v1323, %v1321
        %v1343 = vpack.c.bf16 %v1324, %v1322
        %v1344 = vpack.c.bf16 %v1327, %v1325
        %v1345 = vpack.c.bf16 %v1328, %v1326
        %v1346 = vld [vmem:[#allocation2] sm:$0x3]
        %v1348 = vlaneseq
        %v1349 = vshrl.u32 %v1348, 7
        %v1350 = vsub.s32 0, %v1349
        %v1351 = vrot.slane %v1346, %v1350
        %v1352 = vlaneseq
        %v1353 = vshrl.u32 %v1352, 7
        %v1354 = vsub.s32 1, %v1353
        %v1355 = vrot.slane %v1346, %v1354
        %1358 = vmatprep.subr.bf16.mxu0 %v1331
        %1359 = vmatpush1.bf16.msra.mxu0 %v1330
        %1360 = vmatprep.subr.bf16.mxu0 %v1333
        %1361 = vmatpush1.bf16.msra.mxu0 %v1332
        %1362 = vmatprep.subr.bf16.mxu0 %v1335
        %1363 = vmatpush1.bf16.msra.mxu0 %v1334
        %1364 = vmatprep.subr.bf16.mxu0 %v1337
        %1365 = vmatpush1.bf16.msra.mxu0 %v1336
        %1366 = vmatprep.subr.bf16.mxu0 %v1339
        %1367 = vmatpush1.bf16.msra.mxu0 %v1338
        %1368 = vmatprep.subr.bf16.mxu0 %v1341
        %1369 = vmatpush1.bf16.msra.mxu0 %v1340
        %1370 = vmatprep.subr.bf16.mxu0 %v1343
        %1371 = vmatpush1.bf16.msra.mxu0 %v1342
        %1372 = vmatprep.subr.bf16.mxu0 %v1345
        %1373 = vmatpush1.bf16.msra.mxu0 %v1344
        %1374 = vmatprep.subr.bf16.mxu0 0
        %1375 = vmatpush1.bf16.msra.mxu0 0
        %1376 = vmatprep.subr.bf16.mxu0 0
        %1377 = vmatpush1.bf16.msra.mxu0 0
        %1378 = vmatprep.subr.bf16.mxu0 0
        %1379 = vmatpush1.bf16.msra.mxu0 0
        %1380 = vmatprep.subr.bf16.mxu0 0
        %1381 = vmatpush1.bf16.msra.mxu0 0
        %1382 = vmatprep.subr.bf16.mxu0 0
        %1383 = vmatpush1.bf16.msra.mxu0 0
        %1384 = vmatprep.subr.bf16.mxu0 0
        %1385 = vmatpush1.bf16.msra.mxu0 0
        %1386 = vmatprep.subr.bf16.mxu0 0
        %1387 = vmatpush1.bf16.msra.mxu0 0
        %1388 = vmatprep.subr.bf16.mxu0 0
        %1389 = vmatpush1.bf16.msra.mxu0 0
        %1390 = vmatprep.mubr.bf16.mxu0 0
        %1391 = vmatmul.mubr.bf16.gmra.mrb[0].mxu0 %v1329
        %v1392 = vpop.f32.mrb[0].mxu0
        %v1393 = vadd.f32 %v1351, %v1392
        %v1394 = vpop.f32.mrb[0].mxu0
        %v1395 = vadd.f32 %v1355, %v1394
        %v1396 = vpop.f32.mrb[0].mxu0
        %v1397 = vadd.f32 %v1351, %v1396
        %v1398 = vpop.f32.mrb[0].mxu0
        %v1399 = vadd.f32 %v1355, %v1398
        %1400 = vdwg.mxu0
        %v1401 = vld [vmem:[%s19] sm:$0xff]
        %v1402 = vld [vmem:[%s19 + $0x8] sm:$0xff]
        %v1403 = vld [vmem:[%s19 + $0x10] sm:$0xff]
        %v1404 = vld [vmem:[%s19 + $0x18] sm:$0xff]
        %v1405 = vld [vmem:[%s19 + $0x20] sm:$0xff]
        %v1406 = vld [vmem:[%s19 + $0x28] sm:$0xff]
        %v1407 = vld [vmem:[%s19 + $0x30] sm:$0xff]
        %v1408 = vld [vmem:[%s19 + $0x38] sm:$0xff]
        %v1409 = vld [vmem:[%s19 + $0x40] sm:$0xff]
        %v1410 = vld [vmem:[%s19 + $0x48] sm:$0xff]
        %v1411 = vld [vmem:[%s19 + $0x50] sm:$0xff]
        %v1412 = vld [vmem:[%s19 + $0x58] sm:$0xff]
        %v1413 = vld [vmem:[%s19 + $0x60] sm:$0xff]
        %v1414 = vld [vmem:[%s19 + $0x68] sm:$0xff]
        %v1415 = vld [vmem:[%s19 + $0x70] sm:$0xff]
        %v1416 = vld [vmem:[%s19 + $0x78] sm:$0xff]
        %v1417 = vpack.c.bf16 %v1290, %v1289
        %v1418 = vpack.c.bf16 %v1402, %v1401
        %v1419 = vpack.c.bf16 %v1404, %v1403
        %v1420 = vpack.c.bf16 %v1406, %v1405
        %v1421 = vpack.c.bf16 %v1408, %v1407
        %v1422 = vpack.c.bf16 %v1410, %v1409
        %v1423 = vpack.c.bf16 %v1412, %v1411
        %v1424 = vpack.c.bf16 %v1414, %v1413
        %v1425 = vpack.c.bf16 %v1416, %v1415
        %v1426 = vld [vmem:[#allocation5] sm:$0x1]
        %v1428 = vlaneseq
        %v1429 = vshrl.u32 %v1428, 7
        %v1430 = vsub.s32 0, %v1429
        %v1431 = vrot.slane %v1426, %v1430
        %1433 = vmatprep.subr.bf16.mxu0 0
        %1434 = vmatpush1.bf16.msra.mxu0 %v1418
        %1435 = vmatprep.subr.bf16.mxu0 0
        %1436 = vmatpush1.bf16.msra.mxu0 %v1419
        %1437 = vmatprep.subr.bf16.mxu0 0
        %1438 = vmatpush1.bf16.msra.mxu0 %v1420
        %1439 = vmatprep.subr.bf16.mxu0 0
        %1440 = vmatpush1.bf16.msra.mxu0 %v1421
        %1441 = vmatprep.subr.bf16.mxu0 0
        %1442 = vmatpush1.bf16.msra.mxu0 %v1422
        %1443 = vmatprep.subr.bf16.mxu0 0
        %1444 = vmatpush1.bf16.msra.mxu0 %v1423
        %1445 = vmatprep.subr.bf16.mxu0 0
        %1446 = vmatpush1.bf16.msra.mxu0 %v1424
        %1447 = vmatprep.subr.bf16.mxu0 0
        %1448 = vmatpush1.bf16.msra.mxu0 %v1425
        %1449 = vmatprep.subr.bf16.mxu0 0
        %1450 = vmatpush1.bf16.msra.mxu0 0
        %1451 = vmatprep.subr.bf16.mxu0 0
        %1452 = vmatpush1.bf16.msra.mxu0 0
        %1453 = vmatprep.subr.bf16.mxu0 0
        %1454 = vmatpush1.bf16.msra.mxu0 0
        %1455 = vmatprep.subr.bf16.mxu0 0
        %1456 = vmatpush1.bf16.msra.mxu0 0
        %1457 = vmatprep.subr.bf16.mxu0 0
        %1458 = vmatpush1.bf16.msra.mxu0 0
        %1459 = vmatprep.subr.bf16.mxu0 0
        %1460 = vmatpush1.bf16.msra.mxu0 0
        %1461 = vmatprep.subr.bf16.mxu0 0
        %1462 = vmatpush1.bf16.msra.mxu0 0
        %1463 = vmatprep.subr.bf16.mxu0 0
        %1464 = vmatpush1.bf16.msra.mxu0 0
        %1465 = vmatprep.mubr.bf16.mxu0 0
        %1466 = vmatmul.mubr.bf16.gmra.mrb[0].mxu0 %v1417
        %v1467 = vpop.f32.mrb[0].mxu0
        %v1468 = vadd.f32 %v1431, %v1467
        %v1469 = vpop.f32.mrb[0].mxu0
        %v1470 = vpop.f32.mrb[0].mxu0
        %v1471 = vadd.f32 %v1431, %v1470
        %v1472 = vpop.f32.mrb[0].mxu0
        %1473 = vdwg.mxu0
        %v1474 = vld [vmem:[#allocation7] sm:$0xff]
        %v1475 = vld [vmem:[#allocation7 + $0x8] sm:$0xff]
        %v1476 = vld [vmem:[#allocation7 + $0x10] sm:$0xff]
        %v1477 = vld [vmem:[#allocation7 + $0x18] sm:$0xff]
        %v1478 = vld [vmem:[#allocation7 + $0x20] sm:$0xff]
        %v1479 = vld [vmem:[#allocation7 + $0x28] sm:$0xff]
        %v1480 = vld [vmem:[#allocation7 + $0x30] sm:$0xff]
        %v1481 = vld [vmem:[#allocation7 + $0x38] sm:$0xff]
        %v1482 = vld [vmem:[#allocation7 + $0x40] sm:$0xff]
        %v1483 = vld [vmem:[#allocation7 + $0x48] sm:$0xff]
        %v1484 = vld [vmem:[#allocation7 + $0x50] sm:$0xff]
        %v1485 = vld [vmem:[#allocation7 + $0x58] sm:$0xff]
        %v1486 = vld [vmem:[#allocation7 + $0x60] sm:$0xff]
        %v1487 = vld [vmem:[#allocation7 + $0x68] sm:$0xff]
        %v1488 = vld [vmem:[#allocation7 + $0x70] sm:$0xff]
        %v1489 = vld [vmem:[#allocation7 + $0x78] sm:$0xff]
        %v1490 = vpack.c.bf16 %v1397, %v1393
        %v1491 = vpack.c.bf16 %v1399, %v1395
        %vm1492 = vcmask 261120
        %v1494 = vsel %vm1492, %v1490, 0
        %v1497 = vsel %vm1492, %v1491, 0
        %1499 = vmatprep.subr.bf16.mxu0 0
        %1500 = vmatpush1.bf16.xpose.msra.mxu0 %v1497
        %1501 = vmatprep.subr.bf16.mxu0 0
        %1502 = vmatpush1.bf16.xpose.msra.mxu0 0
        %1503 = vmatprep.subr.bf16.mxu0 0
        %1504 = vmatpush1.bf16.xpose.msra.mxu0 0
        %1505 = vmatprep.subr.bf16.mxu0 0
        %1506 = vmatpush1.bf16.xpose.msra.mxu0 0
        %1507 = vmatprep.subr.bf16.mxu0 0
        %1508 = vmatpush1.bf16.xpose.msra.mxu0 0
        %1509 = vmatprep.subr.bf16.mxu0 0
        %1510 = vmatpush1.bf16.xpose.msra.mxu0 0
        %1511 = vmatprep.subr.bf16.mxu0 0
        %1512 = vmatpush1.bf16.xpose.msra.mxu0 0
        %1513 = vmatprep.subr.bf16.mxu0 0
        %1514 = vmatpush1.bf16.xpose.msra.mxu0 0
        %1515 = vmatprep.subr.bf16.mxu0 0
        %1516 = vmatpush1.bf16.xpose.msra.mxu0 0
        %1517 = vmatprep.subr.bf16.mxu0 0
        %1518 = vmatpush1.bf16.xpose.msra.mxu0 0
        %1519 = vmatprep.subr.bf16.mxu0 0
        %1520 = vmatpush1.bf16.xpose.msra.mxu0 0
        %1521 = vmatprep.subr.bf16.mxu0 0
        %1522 = vmatpush1.bf16.xpose.msra.mxu0 0
        %1523 = vmatprep.subr.bf16.mxu0 0
        %1524 = vmatpush1.bf16.xpose.msra.mxu0 0
        %1525 = vmatprep.subr.bf16.mxu0 0
        %1526 = vmatpush1.bf16.xpose.msra.mxu0 0
        %1527 = vmatprep.subr.bf16.mxu0 0
        %1528 = vmatpush1.bf16.xpose.msra.mxu0 0
        %1529 = vmatprep.subr.bf16.mxu0 0
        %1530 = vmatpush1.bf16.xpose.msra.mxu0 0
        %1531 = vmatprep.mubr.bf16.mxu0 0
        %1532 = vmatmul.mubr.bf16.gmra.mrb[0].mxu0 %v1494
        %v1533 = vpop.f32.mrb[0].mxu0
        %v1534 = vadd.f32 0.0, %v1533
        %v1535 = vpop.f32.mrb[0].mxu0
        %v1536 = vpop.f32.mrb[0].mxu0
        %v1537 = vadd.f32 0.0, %v1536
        %v1538 = vpop.f32.mrb[0].mxu0
        %1539 = vdwg.mxu0
        %v1540 = vmul.f32 %v1534, 0.17677669
        %v1541 = vmul.f32 %v1537, 0.17677669
        %vm1542 = vcmask 130048
        %v1543 = vsel %vm1542, %v1540, -inf
        %1544 = vmax.xlane.f32.xlu0 %v1543
        %v1545 = vpop.xlane.xlu0 %1544
        %v1546 = vsel %vm1542, %v1541, -inf
        %1547 = vmax.xlane.f32.xlu0 %v1546
        %v1548 = vpop.xlane.xlu0 %1547
        %v1549 = vsub.f32 %v1540, %v1545
        %v1550 = vsub.f32 %v1541, %v1548
        %v1551 = vmul.f32 %v1549, 1.442695
        %v1552 = vpow.pop %v1551
        %v1553 = vmul.f32 %v1550, 1.442695
        %v1554 = vpow.pop %v1553
        %v1555 = vsel %vm1542, %v1552, 0.0
        %1556 = vadd.xlane.f32.xlu0 %v1555
        %v1557 = vpop.xlane.xlu0 %1556
        %v1558 = vsel %vm1542, %v1554, 0.0
        %1559 = vadd.xlane.f32.xlu0 %v1558
        %v1560 = vpop.xlane.xlu0 %1559
        %v1561 = vrcp.pop %v1557
        %v1562 = vmul.f32 %v1552, %v1561
        %v1563 = vrcp.pop %v1560
        %v1564 = vmul.f32 %v1554, %v1563
        %v1565 = vpack.c.bf16 %v1564, %v1562
        %v1566 = vpack.c.bf16 %v1471, %v1468
        %v1568 = vsel %vm1542, %v1565, 0
        %1570 = vmatprep.subr.bf16.mxu0 0
        %1571 = vmatpush1.bf16.msra.mxu0 %v1566
        %1572 = vmatprep.subr.bf16.mxu0 0
        %1573 = vmatpush1.bf16.msra.mxu0 0
        %1574 = vmatprep.subr.bf16.mxu0 0
        %1575 = vmatpush1.bf16.msra.mxu0 0
        %1576 = vmatprep.subr.bf16.mxu0 0
        %1577 = vmatpush1.bf16.msra.mxu0 0
        %1578 = vmatprep.subr.bf16.mxu0 0
        %1579 = vmatpush1.bf16.msra.mxu0 0
        %1580 = vmatprep.subr.bf16.mxu0 0
        %1581 = vmatpush1.bf16.msra.mxu0 0
        %1582 = vmatprep.subr.bf16.mxu0 0
        %1583 = vmatpush1.bf16.msra.mxu0 0
        %1584 = vmatprep.subr.bf16.mxu0 0
        %1585 = vmatpush1.bf16.msra.mxu0 0
        %1586 = vmatprep.subr.bf16.mxu0 0
        %1587 = vmatpush1.bf16.msra.mxu0 0
        %1588 = vmatprep.subr.bf16.mxu0 0
        %1589 = vmatpush1.bf16.msra.mxu0 0
        %1590 = vmatprep.subr.bf16.mxu0 0
        %1591 = vmatpush1.bf16.msra.mxu0 0
        %1592 = vmatprep.subr.bf16.mxu0 0
        %1593 = vmatpush1.bf16.msra.mxu0 0
        %1594 = vmatprep.subr.bf16.mxu0 0
        %1595 = vmatpush1.bf16.msra.mxu0 0
        %1596 = vmatprep.subr.bf16.mxu0 0
        %1597 = vmatpush1.bf16.msra.mxu0 0
        %1598 = vmatprep.subr.bf16.mxu0 0
        %1599 = vmatpush1.bf16.msra.mxu0 0
        %1600 = vmatprep.subr.bf16.mxu0 0
        %1601 = vmatpush1.bf16.msra.mxu0 0
        %1602 = vmatprep.mubr.bf16.mxu0 0
        %1603 = vmatmul.mubr.bf16.gmra.mrb[0].mxu0 %v1568
        %v1604 = vpop.f32.mrb[0].mxu0
        %v1605 = vadd.f32 0.0, %v1604
        %v1606 = vpop.f32.mrb[0].mxu0
        %v1607 = vpop.f32.mrb[0].mxu0
        %v1608 = vadd.f32 0.0, %v1607
        %v1609 = vpop.f32.mrb[0].mxu0
        %1610 = vdwg.mxu0
        %v1611 = vpack.c.bf16 %v1608, %v1605
        %v1612 = vpack.c.bf16 %v1475, %v1474
        %v1613 = vpack.c.bf16 %v1477, %v1476
        %1615 = vrot.lane.b32.xlu0 %v1490, 96
        %v1616 = vpop.permute.xlu0 %1615
        %1618 = vrot.lane.b32.xlu0 %v1491, 96
        %v1619 = vpop.permute.xlu0 %1618
        %v1621 = vsel %vm1492, %v1616, 0
        %v1624 = vsel %vm1492, %v1619, 0
        %1626 = vmatprep.subr.bf16.mxu0 0
        %1627 = vmatpush1.bf16.xpose.msra.mxu0 %v1624
        %1628 = vmatprep.subr.bf16.mxu0 0
        %1629 = vmatpush1.bf16.xpose.msra.mxu0 0
        %1630 = vmatprep.subr.bf16.mxu0 0
        %1631 = vmatpush1.bf16.xpose.msra.mxu0 0
        %1632 = vmatprep.subr.bf16.mxu0 0
        %1633 = vmatpush1.bf16.xpose.msra.mxu0 0
        %1634 = vmatprep.subr.bf16.mxu0 0
        %1635 = vmatpush1.bf16.xpose.msra.mxu0 0
        %1636 = vmatprep.subr.bf16.mxu0 0
        %1637 = vmatpush1.bf16.xpose.msra.mxu0 0
        %1638 = vmatprep.subr.bf16.mxu0 0
        %1639 = vmatpush1.bf16.xpose.msra.mxu0 0
        %1640 = vmatprep.subr.bf16.mxu0 0
        %1641 = vmatpush1.bf16.xpose.msra.mxu0 0
        %1642 = vmatprep.subr.bf16.mxu0 0
        %1643 = vmatpush1.bf16.xpose.msra.mxu0 0
        %1644 = vmatprep.subr.bf16.mxu0 0
        %1645 = vmatpush1.bf16.xpose.msra.mxu0 0
        %1646 = vmatprep.subr.bf16.mxu0 0
        %1647 = vmatpush1.bf16.xpose.msra.mxu0 0
        %1648 = vmatprep.subr.bf16.mxu0 0
        %1649 = vmatpush1.bf16.xpose.msra.mxu0 0
        %1650 = vmatprep.subr.bf16.mxu0 0
        %1651 = vmatpush1.bf16.xpose.msra.mxu0 0
        %1652 = vmatprep.subr.bf16.mxu0 0
        %1653 = vmatpush1.bf16.xpose.msra.mxu0 0
        %1654 = vmatprep.subr.bf16.mxu0 0
        %1655 = vmatpush1.bf16.xpose.msra.mxu0 0
        %1656 = vmatprep.subr.bf16.mxu0 0
        %1657 = vmatpush1.bf16.xpose.msra.mxu0 0
        %1658 = vmatprep.mubr.bf16.mxu0 0
        %1659 = vmatmul.mubr.bf16.gmra.mrb[0].mxu0 %v1621
        %v1660 = vpop.f32.mrb[0].mxu0
        %v1661 = vadd.f32 0.0, %v1660
        %v1662 = vpop.f32.mrb[0].mxu0
        %v1663 = vpop.f32.mrb[0].mxu0
        %v1664 = vadd.f32 0.0, %v1663
        %v1665 = vpop.f32.mrb[0].mxu0
        %1666 = vdwg.mxu0
        %v1667 = vmul.f32 %v1661, 0.17677669
        %v1668 = vmul.f32 %v1664, 0.17677669
        %v1669 = vsel %vm1542, %v1667, -inf
        %1670 = vmax.xlane.f32.xlu0 %v1669
        %v1671 = vpop.xlane.xlu0 %1670
        %v1672 = vsel %vm1542, %v1668, -inf
        %1673 = vmax.xlane.f32.xlu0 %v1672
        %v1674 = vpop.xlane.xlu0 %1673
        %v1675 = vsub.f32 %v1667, %v1671
        %v1676 = vsub.f32 %v1668, %v1674
        %v1677 = vmul.f32 %v1675, 1.442695
        %v1678 = vpow.pop %v1677
        %v1679 = vmul.f32 %v1676, 1.442695
        %v1680 = vpow.pop %v1679
        %v1681 = vsel %vm1542, %v1678, 0.0
        %1682 = vadd.xlane.f32.xlu0 %v1681
        %v1683 = vpop.xlane.xlu0 %1682
        %v1684 = vsel %vm1542, %v1680, 0.0
        %1685 = vadd.xlane.f32.xlu0 %v1684
        %v1686 = vpop.xlane.xlu0 %1685
        %v1687 = vrcp.pop %v1683
        %v1688 = vmul.f32 %v1678, %v1687
        %v1689 = vrcp.pop %v1686
        %v1690 = vmul.f32 %v1680, %v1689
        %v1691 = vpack.c.bf16 %v1690, %v1688
        %1693 = vrot.lane.b32.xlu0 %v1566, 96
        %v1694 = vpop.permute.xlu0 %1693
        %v1697 = vsel %vm1542, %v1691, 0
        %1699 = vmatprep.subr.bf16.mxu0 0
        %1700 = vmatpush1.bf16.msra.mxu0 %v1694
        %1701 = vmatprep.subr.bf16.mxu0 0
        %1702 = vmatpush1.bf16.msra.mxu0 0
        %1703 = vmatprep.subr.bf16.mxu0 0
        %1704 = vmatpush1.bf16.msra.mxu0 0
        %1705 = vmatprep.subr.bf16.mxu0 0
        %1706 = vmatpush1.bf16.msra.mxu0 0
        %1707 = vmatprep.subr.bf16.mxu0 0
        %1708 = vmatpush1.bf16.msra.mxu0 0
        %1709 = vmatprep.subr.bf16.mxu0 0
        %1710 = vmatpush1.bf16.msra.mxu0 0
        %1711 = vmatprep.subr.bf16.mxu0 0
        %1712 = vmatpush1.bf16.msra.mxu0 0
        %1713 = vmatprep.subr.bf16.mxu0 0
        %1714 = vmatpush1.bf16.msra.mxu0 0
        %1715 = vmatprep.subr.bf16.mxu0 0
        %1716 = vmatpush1.bf16.msra.mxu0 0
        %1717 = vmatprep.subr.bf16.mxu0 0
        %1718 = vmatpush1.bf16.msra.mxu0 0
        %1719 = vmatprep.subr.bf16.mxu0 0
        %1720 = vmatpush1.bf16.msra.mxu0 0
        %1721 = vmatprep.subr.bf16.mxu0 0
        %1722 = vmatpush1.bf16.msra.mxu0 0
        %1723 = vmatprep.subr.bf16.mxu0 0
        %1724 = vmatpush1.bf16.msra.mxu0 0
        %1725 = vmatprep.subr.bf16.mxu0 0
        %1726 = vmatpush1.bf16.msra.mxu0 0
        %1727 = vmatprep.subr.bf16.mxu0 0
        %1728 = vmatpush1.bf16.msra.mxu0 0
        %1729 = vmatprep.subr.bf16.mxu0 0
        %1730 = vmatpush1.bf16.msra.mxu0 0
        %1731 = vmatprep.mubr.bf16.mxu0 0
        %1732 = vmatmul.mubr.bf16.gmra.mrb[0].mxu0 %v1697
        %v1733 = vpop.f32.mrb[0].mxu0
        %v1734 = vadd.f32 0.0, %v1733
        %v1735 = vpop.f32.mrb[0].mxu0
        %v1736 = vpop.f32.mrb[0].mxu0
        %v1737 = vadd.f32 0.0, %v1736
        %v1738 = vpop.f32.mrb[0].mxu0
        %1739 = vdwg.mxu0
        %v1740 = vpack.c.bf16 %v1737, %v1734
        %v1741 = vpack.c.bf16 %v1479, %v1478
        %v1742 = vpack.c.bf16 %v1481, %v1480
        %v1744 = vsel %vm1492, %v1740, 0
        %1746 = vmatprep.subr.bf16.mxu0 0
        %1747 = vmatpush1.bf16.msra.mxu0 %v1741
        %1748 = vmatprep.subr.bf16.mxu0 0
        %1749 = vmatpush1.bf16.msra.mxu0 %v1742
        %1750 = vmatprep.subr.bf16.mxu0 0
        %1751 = vmatpush1.bf16.msra.mxu0 0
        %1752 = vmatprep.subr.bf16.mxu0 0
        %1753 = vmatpush1.bf16.msra.mxu0 0
        %1754 = vmatprep.subr.bf16.mxu0 0
        %1755 = vmatpush1.bf16.msra.mxu0 0
        %1756 = vmatprep.subr.bf16.mxu0 0
        %1757 = vmatpush1.bf16.msra.mxu0 0
        %1758 = vmatprep.subr.bf16.mxu0 0
        %1759 = vmatpush1.bf16.msra.mxu0 0
        %1760 = vmatprep.subr.bf16.mxu0 0
        %1761 = vmatpush1.bf16.msra.mxu0 0
        %1762 = vmatprep.subr.bf16.mxu0 0
        %1763 = vmatpush1.bf16.msra.mxu0 0
        %1764 = vmatprep.subr.bf16.mxu0 0
        %1765 = vmatpush1.bf16.msra.mxu0 0
        %1766 = vmatprep.subr.bf16.mxu0 0
        %1767 = vmatpush1.bf16.msra.mxu0 0
        %1768 = vmatprep.subr.bf16.mxu0 0
        %1769 = vmatpush1.bf16.msra.mxu0 0
        %1770 = vmatprep.subr.bf16.mxu0 0
        %1771 = vmatpush1.bf16.msra.mxu0 0
        %1772 = vmatprep.subr.bf16.mxu0 0
        %1773 = vmatpush1.bf16.msra.mxu0 0
        %1774 = vmatprep.subr.bf16.mxu0 0
        %1775 = vmatpush1.bf16.msra.mxu0 0
        %1776 = vmatprep.subr.bf16.mxu0 0
        %1777 = vmatpush1.bf16.msra.mxu0 0
        %1778 = vmatprep.mubr.bf16.mxu0 0
        %1779 = vmatmul.mubr.bf16.gmra.mrb[0].mxu0 %v1744
        %v1780 = vpop.f32.mrb[0].mxu0
        %v1781 = vadd.f32 0.0, %v1780
        %v1782 = vpop.f32.mrb[0].mxu0
        %v1783 = vpop.f32.mrb[0].mxu0
        %v1784 = vadd.f32 0.0, %v1783
        %v1785 = vpop.f32.mrb[0].mxu0
        %1786 = vdwg.mxu0
        %v1788 = vsel %vm1492, %v1611, 0
        %1790 = vmatprep.subr.bf16.mxu0 0
        %1791 = vmatpush1.bf16.msra.mxu0 %v1612
        %1792 = vmatprep.subr.bf16.mxu0 0
        %1793 = vmatpush1.bf16.msra.mxu0 %v1613
        %1794 = vmatprep.subr.bf16.mxu0 0
        %1795 = vmatpush1.bf16.msra.mxu0 0
        %1796 = vmatprep.subr.bf16.mxu0 0
        %1797 = vmatpush1.bf16.msra.mxu0 0
        %1798 = vmatprep.subr.bf16.mxu0 0
        %1799 = vmatpush1.bf16.msra.mxu0 0
        %1800 = vmatprep.subr.bf16.mxu0 0
        %1801 = vmatpush1.bf16.msra.mxu0 0
        %1802 = vmatprep.subr.bf16.mxu0 0
        %1803 = vmatpush1.bf16.msra.mxu0 0
        %1804 = vmatprep.subr.bf16.mxu0 0
        %1805 = vmatpush1.bf16.msra.mxu0 0
        %1806 = vmatprep.subr.bf16.mxu0 0
        %1807 = vmatpush1.bf16.msra.mxu0 0
        %1808 = vmatprep.subr.bf16.mxu0 0
        %1809 = vmatpush1.bf16.msra.mxu0 0
        %1810 = vmatprep.subr.bf16.mxu0 0
        %1811 = vmatpush1.bf16.msra.mxu0 0
        %1812 = vmatprep.subr.bf16.mxu0 0
        %1813 = vmatpush1.bf16.msra.mxu0 0
        %1814 = vmatprep.subr.bf16.mxu0 0
        %1815 = vmatpush1.bf16.msra.mxu0 0
        %1816 = vmatprep.subr.bf16.mxu0 0
        %1817 = vmatpush1.bf16.msra.mxu0 0
        %1818 = vmatprep.subr.bf16.mxu0 0
        %1819 = vmatpush1.bf16.msra.mxu0 0
        %1820 = vmatprep.subr.bf16.mxu0 0
        %1821 = vmatpush1.bf16.msra.mxu0 0
        %1822 = vmatprep.mubr.bf16.mxu0 0
        %1823 = vmatmul.mubr.bf16.gmra.mrb[0].mxu0 %v1788
        %v1824 = vpop.f32.mrb[0].mxu0
        %v1825 = vadd.f32 %v1781, %v1824
        %v1826 = vpop.f32.mrb[0].mxu0
        %v1827 = vpop.f32.mrb[0].mxu0
        %v1828 = vadd.f32 %v1784, %v1827
        %v1829 = vpop.f32.mrb[0].mxu0
        %1830 = vdwg.mxu0
        %1831 = vrot.lane.b32.xlu0 %v1490, 64
        %v1832 = vpop.permute.xlu0 %1831
        %1833 = vrot.lane.b32.xlu0 %v1491, 64
        %v1834 = vpop.permute.xlu0 %1833
        %v1836 = vsel %vm1492, %v1832, 0
        %v1839 = vsel %vm1492, %v1834, 0
        %1841 = vmatprep.subr.bf16.mxu0 0
        %1842 = vmatpush1.bf16.xpose.msra.mxu0 %v1839
        %1843 = vmatprep.subr.bf16.mxu0 0
        %1844 = vmatpush1.bf16.xpose.msra.mxu0 0
        %1845 = vmatprep.subr.bf16.mxu0 0
        %1846 = vmatpush1.bf16.xpose.msra.mxu0 0
        %1847 = vmatprep.subr.bf16.mxu0 0
        %1848 = vmatpush1.bf16.xpose.msra.mxu0 0
        %1849 = vmatprep.subr.bf16.mxu0 0
        %1850 = vmatpush1.bf16.xpose.msra.mxu0 0
        %1851 = vmatprep.subr.bf16.mxu0 0
        %1852 = vmatpush1.bf16.xpose.msra.mxu0 0
        %1853 = vmatprep.subr.bf16.mxu0 0
        %1854 = vmatpush1.bf16.xpose.msra.mxu0 0
        %1855 = vmatprep.subr.bf16.mxu0 0
        %1856 = vmatpush1.bf16.xpose.msra.mxu0 0
        %1857 = vmatprep.subr.bf16.mxu0 0
        %1858 = vmatpush1.bf16.xpose.msra.mxu0 0
        %1859 = vmatprep.subr.bf16.mxu0 0
        %1860 = vmatpush1.bf16.xpose.msra.mxu0 0
        %1861 = vmatprep.subr.bf16.mxu0 0
        %1862 = vmatpush1.bf16.xpose.msra.mxu0 0
        %1863 = vmatprep.subr.bf16.mxu0 0
        %1864 = vmatpush1.bf16.xpose.msra.mxu0 0
        %1865 = vmatprep.subr.bf16.mxu0 0
        %1866 = vmatpush1.bf16.xpose.msra.mxu0 0
        %1867 = vmatprep.subr.bf16.mxu0 0
        %1868 = vmatpush1.bf16.xpose.msra.mxu0 0
        %1869 = vmatprep.subr.bf16.mxu0 0
        %1870 = vmatpush1.bf16.xpose.msra.mxu0 0
        %1871 = vmatprep.subr.bf16.mxu0 0
        %1872 = vmatpush1.bf16.xpose.msra.mxu0 0
        %1873 = vmatprep.mubr.bf16.mxu0 0
        %1874 = vmatmul.mubr.bf16.gmra.mrb[0].mxu0 %v1836
        %v1875 = vpop.f32.mrb[0].mxu0
        %v1876 = vadd.f32 0.0, %v1875
        %v1877 = vpop.f32.mrb[0].mxu0
        %v1878 = vpop.f32.mrb[0].mxu0
        %v1879 = vadd.f32 0.0, %v1878
        %v1880 = vpop.f32.mrb[0].mxu0
        %1881 = vdwg.mxu0
        %v1882 = vmul.f32 %v1876, 0.17677669
        %v1883 = vmul.f32 %v1879, 0.17677669
        %v1884 = vsel %vm1542, %v1882, -inf
        %1885 = vmax.xlane.f32.xlu0 %v1884
        %v1886 = vpop.xlane.xlu0 %1885
        %v1887 = vsel %vm1542, %v1883, -inf
        %1888 = vmax.xlane.f32.xlu0 %v1887
        %v1889 = vpop.xlane.xlu0 %1888
        %v1890 = vsub.f32 %v1882, %v1886
        %v1891 = vsub.f32 %v1883, %v1889
        %v1892 = vmul.f32 %v1890, 1.442695
        %v1893 = vpow.pop %v1892
        %v1894 = vmul.f32 %v1891, 1.442695
        %v1895 = vpow.pop %v1894
        %v1896 = vsel %vm1542, %v1893, 0.0
        %1897 = vadd.xlane.f32.xlu0 %v1896
        %v1898 = vpop.xlane.xlu0 %1897
        %v1899 = vsel %vm1542, %v1895, 0.0
        %1900 = vadd.xlane.f32.xlu0 %v1899
        %v1901 = vpop.xlane.xlu0 %1900
        %v1902 = vrcp.pop %v1898
        %v1903 = vmul.f32 %v1893, %v1902
        %v1904 = vrcp.pop %v1901
        %v1905 = vmul.f32 %v1895, %v1904
        %v1906 = vpack.c.bf16 %v1905, %v1903
        %1907 = vrot.lane.b32.xlu0 %v1566, 64
        %v1908 = vpop.permute.xlu0 %1907
        %v1911 = vsel %vm1542, %v1906, 0
        %1913 = vmatprep.subr.bf16.mxu0 0
        %1914 = vmatpush1.bf16.msra.mxu0 %v1908
        %1915 = vmatprep.subr.bf16.mxu0 0
        %1916 = vmatpush1.bf16.msra.mxu0 0
        %1917 = vmatprep.subr.bf16.mxu0 0
        %1918 = vmatpush1.bf16.msra.mxu0 0
        %1919 = vmatprep.subr.bf16.mxu0 0
        %1920 = vmatpush1.bf16.msra.mxu0 0
        %1921 = vmatprep.subr.bf16.mxu0 0
        %1922 = vmatpush1.bf16.msra.mxu0 0
        %1923 = vmatprep.subr.bf16.mxu0 0
        %1924 = vmatpush1.bf16.msra.mxu0 0
        %1925 = vmatprep.subr.bf16.mxu0 0
        %1926 = vmatpush1.bf16.msra.mxu0 0
        %1927 = vmatprep.subr.bf16.mxu0 0
        %1928 = vmatpush1.bf16.msra.mxu0 0
        %1929 = vmatprep.subr.bf16.mxu0 0
        %1930 = vmatpush1.bf16.msra.mxu0 0
        %1931 = vmatprep.subr.bf16.mxu0 0
        %1932 = vmatpush1.bf16.msra.mxu0 0
        %1933 = vmatprep.subr.bf16.mxu0 0
        %1934 = vmatpush1.bf16.msra.mxu0 0
        %1935 = vmatprep.subr.bf16.mxu0 0
        %1936 = vmatpush1.bf16.msra.mxu0 0
        %1937 = vmatprep.subr.bf16.mxu0 0
        %1938 = vmatpush1.bf16.msra.mxu0 0
        %1939 = vmatprep.subr.bf16.mxu0 0
        %1940 = vmatpush1.bf16.msra.mxu0 0
        %1941 = vmatprep.subr.bf16.mxu0 0
        %1942 = vmatpush1.bf16.msra.mxu0 0
        %1943 = vmatprep.subr.bf16.mxu0 0
        %1944 = vmatpush1.bf16.msra.mxu0 0
        %1945 = vmatprep.mubr.bf16.mxu0 0
        %1946 = vmatmul.mubr.bf16.gmra.mrb[0].mxu0 %v1911
        %v1947 = vpop.f32.mrb[0].mxu0
        %v1948 = vadd.f32 0.0, %v1947
        %v1949 = vpop.f32.mrb[0].mxu0
        %v1950 = vpop.f32.mrb[0].mxu0
        %v1951 = vadd.f32 0.0, %v1950
        %v1952 = vpop.f32.mrb[0].mxu0
        %1953 = vdwg.mxu0
        %v1954 = vpack.c.bf16 %v1951, %v1948
        %v1955 = vpack.c.bf16 %v1483, %v1482
        %v1956 = vpack.c.bf16 %v1485, %v1484
        %v1958 = vsel %vm1492, %v1954, 0
        %1960 = vmatprep.subr.bf16.mxu0 0
        %1961 = vmatpush1.bf16.msra.mxu0 %v1955
        %1962 = vmatprep.subr.bf16.mxu0 0
        %1963 = vmatpush1.bf16.msra.mxu0 %v1956
        %1964 = vmatprep.subr.bf16.mxu0 0
        %1965 = vmatpush1.bf16.msra.mxu0 0
        %1966 = vmatprep.subr.bf16.mxu0 0
        %1967 = vmatpush1.bf16.msra.mxu0 0
        %1968 = vmatprep.subr.bf16.mxu0 0
        %1969 = vmatpush1.bf16.msra.mxu0 0
        %1970 = vmatprep.subr.bf16.mxu0 0
        %1971 = vmatpush1.bf16.msra.mxu0 0
        %1972 = vmatprep.subr.bf16.mxu0 0
        %1973 = vmatpush1.bf16.msra.mxu0 0
        %1974 = vmatprep.subr.bf16.mxu0 0
        %1975 = vmatpush1.bf16.msra.mxu0 0
        %1976 = vmatprep.subr.bf16.mxu0 0
        %1977 = vmatpush1.bf16.msra.mxu0 0
        %1978 = vmatprep.subr.bf16.mxu0 0
        %1979 = vmatpush1.bf16.msra.mxu0 0
        %1980 = vmatprep.subr.bf16.mxu0 0
        %1981 = vmatpush1.bf16.msra.mxu0 0
        %1982 = vmatprep.subr.bf16.mxu0 0
        %1983 = vmatpush1.bf16.msra.mxu0 0
        %1984 = vmatprep.subr.bf16.mxu0 0
        %1985 = vmatpush1.bf16.msra.mxu0 0
        %1986 = vmatprep.subr.bf16.mxu0 0
        %1987 = vmatpush1.bf16.msra.mxu0 0
        %1988 = vmatprep.subr.bf16.mxu0 0
        %1989 = vmatpush1.bf16.msra.mxu0 0
        %1990 = vmatprep.subr.bf16.mxu0 0
        %1991 = vmatpush1.bf16.msra.mxu0 0
        %1992 = vmatprep.mubr.bf16.mxu0 0
        %1993 = vmatmul.mubr.bf16.gmra.mrb[0].mxu0 %v1958
        %v1994 = vpop.f32.mrb[0].mxu0
        %v1995 = vadd.f32 0.0, %v1994
        %v1996 = vpop.f32.mrb[0].mxu0
        %v1997 = vpop.f32.mrb[0].mxu0
        %v1998 = vadd.f32 0.0, %v1997
        %v1999 = vpop.f32.mrb[0].mxu0
        %2000 = vdwg.mxu0
        %v2001 = vadd.f32 %v1825, %v1995
        %v2002 = vadd.f32 %v1828, %v1998
        %2003 = vrot.lane.b32.xlu0 %v1490, 32
        %v2004 = vpop.permute.xlu0 %2003
        %2005 = vrot.lane.b32.xlu0 %v1491, 32
        %v2006 = vpop.permute.xlu0 %2005
        %v2008 = vsel %vm1492, %v2004, 0
        %v2011 = vsel %vm1492, %v2006, 0
        %2013 = vmatprep.subr.bf16.mxu0 0
        %2014 = vmatpush1.bf16.xpose.msra.mxu0 %v2011
        %2015 = vmatprep.subr.bf16.mxu0 0
        %2016 = vmatpush1.bf16.xpose.msra.mxu0 0
        %2017 = vmatprep.subr.bf16.mxu0 0
        %2018 = vmatpush1.bf16.xpose.msra.mxu0 0
        %2019 = vmatprep.subr.bf16.mxu0 0
        %2020 = vmatpush1.bf16.xpose.msra.mxu0 0
        %2021 = vmatprep.subr.bf16.mxu0 0
        %2022 = vmatpush1.bf16.xpose.msra.mxu0 0
        %2023 = vmatprep.subr.bf16.mxu0 0
        %2024 = vmatpush1.bf16.xpose.msra.mxu0 0
        %2025 = vmatprep.subr.bf16.mxu0 0
        %2026 = vmatpush1.bf16.xpose.msra.mxu0 0
        %2027 = vmatprep.subr.bf16.mxu0 0
        %2028 = vmatpush1.bf16.xpose.msra.mxu0 0
        %2029 = vmatprep.subr.bf16.mxu0 0
        %2030 = vmatpush1.bf16.xpose.msra.mxu0 0
        %2031 = vmatprep.subr.bf16.mxu0 0
        %2032 = vmatpush1.bf16.xpose.msra.mxu0 0
        %2033 = vmatprep.subr.bf16.mxu0 0
        %2034 = vmatpush1.bf16.xpose.msra.mxu0 0
        %2035 = vmatprep.subr.bf16.mxu0 0
        %2036 = vmatpush1.bf16.xpose.msra.mxu0 0
        %2037 = vmatprep.subr.bf16.mxu0 0
        %2038 = vmatpush1.bf16.xpose.msra.mxu0 0
        %2039 = vmatprep.subr.bf16.mxu0 0
        %2040 = vmatpush1.bf16.xpose.msra.mxu0 0
        %2041 = vmatprep.subr.bf16.mxu0 0
        %2042 = vmatpush1.bf16.xpose.msra.mxu0 0
        %2043 = vmatprep.subr.bf16.mxu0 0
        %2044 = vmatpush1.bf16.xpose.msra.mxu0 0
        %2045 = vmatprep.mubr.bf16.mxu0 0
        %2046 = vmatmul.mubr.bf16.gmra.mrb[0].mxu0 %v2008
        %v2047 = vpop.f32.mrb[0].mxu0
        %v2048 = vadd.f32 0.0, %v2047
        %v2049 = vpop.f32.mrb[0].mxu0
        %v2050 = vpop.f32.mrb[0].mxu0
        %v2051 = vadd.f32 0.0, %v2050
        %v2052 = vpop.f32.mrb[0].mxu0
        %2053 = vdwg.mxu0
        %v2054 = vmul.f32 %v2048, 0.17677669
        %v2055 = vmul.f32 %v2051, 0.17677669
        %v2056 = vsel %vm1542, %v2054, -inf
        %2057 = vmax.xlane.f32.xlu0 %v2056
        %v2058 = vpop.xlane.xlu0 %2057
        %v2059 = vsel %vm1542, %v2055, -inf
        %2060 = vmax.xlane.f32.xlu0 %v2059
        %v2061 = vpop.xlane.xlu0 %2060
        %v2062 = vsub.f32 %v2054, %v2058
        %v2063 = vsub.f32 %v2055, %v2061
        %v2064 = vmul.f32 %v2062, 1.442695
        %v2065 = vpow.pop %v2064
        %v2066 = vmul.f32 %v2063, 1.442695
        %v2067 = vpow.pop %v2066
        %v2068 = vsel %vm1542, %v2065, 0.0
        %2069 = vadd.xlane.f32.xlu0 %v2068
        %v2070 = vpop.xlane.xlu0 %2069
        %v2071 = vsel %vm1542, %v2067, 0.0
        %2072 = vadd.xlane.f32.xlu0 %v2071
        %v2073 = vpop.xlane.xlu0 %2072
        %v2074 = vrcp.pop %v2070
        %v2075 = vmul.f32 %v2065, %v2074
        %v2076 = vrcp.pop %v2073
        %v2077 = vmul.f32 %v2067, %v2076
        %v2078 = vpack.c.bf16 %v2077, %v2075
        %2079 = vrot.lane.b32.xlu0 %v1566, 32
        %v2080 = vpop.permute.xlu0 %2079
        %v2083 = vsel %vm1542, %v2078, 0
        %2085 = vmatprep.subr.bf16.mxu0 0
        %2086 = vmatpush1.bf16.msra.mxu0 %v2080
        %2087 = vmatprep.subr.bf16.mxu0 0
        %2088 = vmatpush1.bf16.msra.mxu0 0
        %2089 = vmatprep.subr.bf16.mxu0 0
        %2090 = vmatpush1.bf16.msra.mxu0 0
        %2091 = vmatprep.subr.bf16.mxu0 0
        %2092 = vmatpush1.bf16.msra.mxu0 0
        %2093 = vmatprep.subr.bf16.mxu0 0
        %2094 = vmatpush1.bf16.msra.mxu0 0
        %2095 = vmatprep.subr.bf16.mxu0 0
        %2096 = vmatpush1.bf16.msra.mxu0 0
        %2097 = vmatprep.subr.bf16.mxu0 0
        %2098 = vmatpush1.bf16.msra.mxu0 0
        %2099 = vmatprep.subr.bf16.mxu0 0
        %2100 = vmatpush1.bf16.msra.mxu0 0
        %2101 = vmatprep.subr.bf16.mxu0 0
        %2102 = vmatpush1.bf16.msra.mxu0 0
        %2103 = vmatprep.subr.bf16.mxu0 0
        %2104 = vmatpush1.bf16.msra.mxu0 0
        %2105 = vmatprep.subr.bf16.mxu0 0
        %2106 = vmatpush1.bf16.msra.mxu0 0
        %2107 = vmatprep.subr.bf16.mxu0 0
        %2108 = vmatpush1.bf16.msra.mxu0 0
        %2109 = vmatprep.subr.bf16.mxu0 0
        %2110 = vmatpush1.bf16.msra.mxu0 0
        %2111 = vmatprep.subr.bf16.mxu0 0
        %2112 = vmatpush1.bf16.msra.mxu0 0
        %2113 = vmatprep.subr.bf16.mxu0 0
        %2114 = vmatpush1.bf16.msra.mxu0 0
        %2115 = vmatprep.subr.bf16.mxu0 0
        %2116 = vmatpush1.bf16.msra.mxu0 0
        %2117 = vmatprep.mubr.bf16.mxu0 0
        %2118 = vmatmul.mubr.bf16.gmra.mrb[0].mxu0 %v2083
        %v2119 = vpop.f32.mrb[0].mxu0
        %v2120 = vadd.f32 0.0, %v2119
        %v2121 = vpop.f32.mrb[0].mxu0
        %v2122 = vpop.f32.mrb[0].mxu0
        %v2123 = vadd.f32 0.0, %v2122
        %v2124 = vpop.f32.mrb[0].mxu0
        %2125 = vdwg.mxu0
        %v2126 = vpack.c.bf16 %v2123, %v2120
        %v2127 = vpack.c.bf16 %v1487, %v1486
        %v2128 = vpack.c.bf16 %v1489, %v1488
        %v2130 = vsel %vm1492, %v2126, 0
        %2132 = vmatprep.subr.bf16.mxu0 0
        %2133 = vmatpush1.bf16.msra.mxu0 %v2127
        %2134 = vmatprep.subr.bf16.mxu0 0
        %2135 = vmatpush1.bf16.msra.mxu0 %v2128
        %2136 = vmatprep.subr.bf16.mxu0 0
        %2137 = vmatpush1.bf16.msra.mxu0 0
        %2138 = vmatprep.subr.bf16.mxu0 0
        %2139 = vmatpush1.bf16.msra.mxu0 0
        %2140 = vmatprep.subr.bf16.mxu0 0
        %2141 = vmatpush1.bf16.msra.mxu0 0
        %2142 = vmatprep.subr.bf16.mxu0 0
        %2143 = vmatpush1.bf16.msra.mxu0 0
        %2144 = vmatprep.subr.bf16.mxu0 0
        %2145 = vmatpush1.bf16.msra.mxu0 0
        %2146 = vmatprep.subr.bf16.mxu0 0
        %2147 = vmatpush1.bf16.msra.mxu0 0
        %2148 = vmatprep.subr.bf16.mxu0 0
        %2149 = vmatpush1.bf16.msra.mxu0 0
        %2150 = vmatprep.subr.bf16.mxu0 0
        %2151 = vmatpush1.bf16.msra.mxu0 0
        %2152 = vmatprep.subr.bf16.mxu0 0
        %2153 = vmatpush1.bf16.msra.mxu0 0
        %2154 = vmatprep.subr.bf16.mxu0 0
        %2155 = vmatpush1.bf16.msra.mxu0 0
        %2156 = vmatprep.subr.bf16.mxu0 0
        %2157 = vmatpush1.bf16.msra.mxu0 0
        %2158 = vmatprep.subr.bf16.mxu0 0
        %2159 = vmatpush1.bf16.msra.mxu0 0
        %2160 = vmatprep.subr.bf16.mxu0 0
        %2161 = vmatpush1.bf16.msra.mxu0 0
        %2162 = vmatprep.subr.bf16.mxu0 0
        %2163 = vmatpush1.bf16.msra.mxu0 0
        %2164 = vmatprep.mubr.bf16.mxu0 0
        %2165 = vmatmul.mubr.bf16.gmra.mrb[0].mxu0 %v2130
        %v2166 = vpop.f32.mrb[0].mxu0
        %v2167 = vadd.f32 0.0, %v2166
        %v2168 = vpop.f32.mrb[0].mxu0
        %v2169 = vpop.f32.mrb[0].mxu0
        %v2170 = vadd.f32 0.0, %v2169
        %v2171 = vpop.f32.mrb[0].mxu0
        %2172 = vdwg.mxu0
        %v2173 = vadd.f32 %v2001, %v2167
        %v2174 = vadd.f32 %v2002, %v2170
        %v2175 = vld [vmem:[#allocation8] sm:$0x1]
        %v2177 = vlaneseq
        %v2178 = vshrl.u32 %v2177, 7
        %v2179 = vsub.s32 0, %v2178
        %v2180 = vrot.slane %v2175, %v2179
        %v2182 = vadd.f32 %v2173, %v2180
        %v2183 = vadd.f32 %v2174, %v2180
        %v2184 = vadd.f32 %v1289, %v2182
        %v2185 = vadd.f32 %v1290, %v2183
        %2186 = vadd.xlane.f32.xlu0 %v2184
        %v2187 = vpop.xlane.xlu0 %2186
        %2188 = vadd.xlane.f32.xlu0 %v2185
        %v2189 = vpop.xlane.xlu0 %2188
        %v2190 = vrcp.pop 128.0
        %v2191 = vmul.f32 %v2187, %v2190
        %v2192 = vmul.f32 %v2189, %v2190
        %v2193 = vsub.f32 %v2184, %v2191
        %v2194 = vsub.f32 %v2185, %v2192
        %v2195 = vmul.f32 %v2193, %v2193
        %v2196 = vmul.f32 %v2194, %v2194
        %2197 = vadd.xlane.f32.xlu0 %v2195
        %v2198 = vpop.xlane.xlu0 %2197
        %2199 = vadd.xlane.f32.xlu0 %v2196
        %v2200 = vpop.xlane.xlu0 %2199
        %v2201 = vmul.f32 %v2198, %v2190
        %v2202 = vmul.f32 %v2200, %v2190
        %v2203 = vadd.f32 %v2201, 1e-05
        %v2204 = vadd.f32 %v2202, 1e-05
        %v2205 = vrsqrt.pop %v2203
        %v2206 = vrsqrt.pop %v2204
        %v2207 = vmul.f32 %v2193, %v2205
        %v2208 = vmul.f32 %v2194, %v2206
        %v2209 = vlaneseq
        %v2210 = vshrl.u32 %v2209, 7
        %v2211 = vsub.s32 0, %v2210
        %v2212 = vrot.slane %v1294, %v2211
        %v2213 = vmul.f32 %v2207, %v2212
        %v2214 = vmul.f32 %v2208, %v2212
        %v2215 = vlaneseq
        %v2216 = vshrl.u32 %v2215, 7
        %v2217 = vsub.s32 1, %v2216
        %v2218 = vrot.slane %v1294, %v2217
        %v2219 = vadd.f32 %v2213, %v2218
        %v2220 = vadd.f32 %v2214, %v2218
        %v2221 = vadd.f32 %v2219, %v1291
        %v2222 = vadd.f32 %v2220, %v1292
        %v2223 = vld [vmem:[#allocation10] sm:$0xff]
        %v2224 = vld [vmem:[#allocation10 + $0x8] sm:$0xff]
        %v2225 = vld [vmem:[#allocation10 + $0x10] sm:$0xff]
        %v2226 = vld [vmem:[#allocation10 + $0x18] sm:$0xff]
        %v2227 = vld [vmem:[#allocation10 + $0x20] sm:$0xff]
        %v2228 = vld [vmem:[#allocation10 + $0x28] sm:$0xff]
        %v2229 = vld [vmem:[#allocation10 + $0x30] sm:$0xff]
        %v2230 = vld [vmem:[#allocation10 + $0x38] sm:$0xff]
        %v2231 = vld [vmem:[#allocation10 + $0x40] sm:$0xff]
        %v2232 = vld [vmem:[#allocation10 + $0x48] sm:$0xff]
        %v2233 = vld [vmem:[#allocation10 + $0x50] sm:$0xff]
        %v2234 = vld [vmem:[#allocation10 + $0x58] sm:$0xff]
        %v2235 = vld [vmem:[#allocation10 + $0x60] sm:$0xff]
        %v2236 = vld [vmem:[#allocation10 + $0x68] sm:$0xff]
        %v2237 = vld [vmem:[#allocation10 + $0x70] sm:$0xff]
        %v2238 = vld [vmem:[#allocation10 + $0x78] sm:$0xff]
        %v2239 = vpack.c.bf16 %v2222, %v2221
        %v2240 = vpack.c.bf16 %v2224, %v2223
        %v2241 = vpack.c.bf16 %v2226, %v2225
        %v2242 = vpack.c.bf16 %v2228, %v2227
        %v2243 = vpack.c.bf16 %v2230, %v2229
        %v2244 = vpack.c.bf16 %v2232, %v2231
        %v2245 = vpack.c.bf16 %v2234, %v2233
        %v2246 = vpack.c.bf16 %v2236, %v2235
        %v2247 = vpack.c.bf16 %v2238, %v2237
        %v2248 = vld [vmem:[#allocation11] sm:$0x1]
        %v2250 = vlaneseq
        %v2251 = vshrl.u32 %v2250, 7
        %v2252 = vsub.s32 0, %v2251
        %v2253 = vrot.slane %v2248, %v2252
        %2255 = vmatprep.subr.bf16.mxu0 0
        %2256 = vmatpush1.bf16.msra.mxu0 %v2240
        %2257 = vmatprep.subr.bf16.mxu0 0
        %2258 = vmatpush1.bf16.msra.mxu0 %v2241
        %2259 = vmatprep.subr.bf16.mxu0 0
        %2260 = vmatpush1.bf16.msra.mxu0 %v2242
        %2261 = vmatprep.subr.bf16.mxu0 0
        %2262 = vmatpush1.bf16.msra.mxu0 %v2243
        %2263 = vmatprep.subr.bf16.mxu0 0
        %2264 = vmatpush1.bf16.msra.mxu0 %v2244
        %2265 = vmatprep.subr.bf16.mxu0 0
        %2266 = vmatpush1.bf16.msra.mxu0 %v2245
        %2267 = vmatprep.subr.bf16.mxu0 0
        %2268 = vmatpush1.bf16.msra.mxu0 %v2246
        %2269 = vmatprep.subr.bf16.mxu0 0
        %2270 = vmatpush1.bf16.msra.mxu0 %v2247
        %2271 = vmatprep.subr.bf16.mxu0 0
        %2272 = vmatpush1.bf16.msra.mxu0 0
        %2273 = vmatprep.subr.bf16.mxu0 0
        %2274 = vmatpush1.bf16.msra.mxu0 0
        %2275 = vmatprep.subr.bf16.mxu0 0
        %2276 = vmatpush1.bf16.msra.mxu0 0
        %2277 = vmatprep.subr.bf16.mxu0 0
        %2278 = vmatpush1.bf16.msra.mxu0 0
        %2279 = vmatprep.subr.bf16.mxu0 0
        %2280 = vmatpush1.bf16.msra.mxu0 0
        %2281 = vmatprep.subr.bf16.mxu0 0
        %2282 = vmatpush1.bf16.msra.mxu0 0
        %2283 = vmatprep.subr.bf16.mxu0 0
        %2284 = vmatpush1.bf16.msra.mxu0 0
        %2285 = vmatprep.subr.bf16.mxu0 0
        %2286 = vmatpush1.bf16.msra.mxu0 0
        %2287 = vmatprep.mubr.bf16.mxu0 0
        %2288 = vmatmul.mubr.bf16.gmra.mrb[0].mxu0 %v2239
        %v2289 = vpop.f32.mrb[0].mxu0
        %v2290 = vadd.f32 %v2253, %v2289
        %v2291 = vpop.f32.mrb[0].mxu0
        %v2292 = vpop.f32.mrb[0].mxu0
        %v2293 = vadd.f32 %v2253, %v2292
        %v2294 = vpop.f32.mrb[0].mxu0
        %2295 = vdwg.mxu0
        %v2296 = vld [vmem:[#allocation13] sm:$0xff]
        %v2297 = vld [vmem:[#allocation13 + $0x8] sm:$0xff]
        %v2298 = vld [vmem:[#allocation13 + $0x10] sm:$0xff]
        %v2299 = vld [vmem:[#allocation13 + $0x18] sm:$0xff]
        %v2300 = vld [vmem:[#allocation13 + $0x20] sm:$0xff]
        %v2301 = vld [vmem:[#allocation13 + $0x28] sm:$0xff]
        %v2302 = vld [vmem:[#allocation13 + $0x30] sm:$0xff]
        %v2303 = vld [vmem:[#allocation13 + $0x38] sm:$0xff]
        %v2304 = vld [vmem:[#allocation13 + $0x40] sm:$0xff]
        %v2305 = vld [vmem:[#allocation13 + $0x48] sm:$0xff]
        %v2306 = vld [vmem:[#allocation13 + $0x50] sm:$0xff]
        %v2307 = vld [vmem:[#allocation13 + $0x58] sm:$0xff]
        %v2308 = vld [vmem:[#allocation13 + $0x60] sm:$0xff]
        %v2309 = vld [vmem:[#allocation13 + $0x68] sm:$0xff]
        %v2310 = vld [vmem:[#allocation13 + $0x70] sm:$0xff]
        %v2311 = vld [vmem:[#allocation13 + $0x78] sm:$0xff]
        %v2312 = vld [vmem:[#allocation13 + $0x80] sm:$0xff]
        %v2313 = vld [vmem:[#allocation13 + $0x88] sm:$0xff]
        %v2314 = vld [vmem:[#allocation13 + $0x90] sm:$0xff]
        %v2315 = vld [vmem:[#allocation13 + $0x98] sm:$0xff]
        %v2316 = vld [vmem:[#allocation13 + $0xa0] sm:$0xff]
        %v2317 = vld [vmem:[#allocation13 + $0xa8] sm:$0xff]
        %v2318 = vld [vmem:[#allocation13 + $0xb0] sm:$0xff]
        %v2319 = vld [vmem:[#allocation13 + $0xb8] sm:$0xff]
        %v2320 = vld [vmem:[#allocation13 + $0xc0] sm:$0xff]
        %v2321 = vld [vmem:[#allocation13 + $0xc8] sm:$0xff]
        %v2322 = vld [vmem:[#allocation13 + $0xd0] sm:$0xff]
        %v2323 = vld [vmem:[#allocation13 + $0xd8] sm:$0xff]
        %v2324 = vld [vmem:[#allocation13 + $0xe0] sm:$0xff]
        %v2325 = vld [vmem:[#allocation13 + $0xe8] sm:$0xff]
        %v2326 = vld [vmem:[#allocation13 + $0xf0] sm:$0xff]
        %v2327 = vld [vmem:[#allocation13 + $0xf8] sm:$0xff]
        %v2328 = vpack.c.bf16 %v1293, %v1293
        %v2329 = vpack.c.bf16 %v2298, %v2296
        %v2330 = vpack.c.bf16 %v2299, %v2297
        %v2331 = vpack.c.bf16 %v2302, %v2300
        %v2332 = vpack.c.bf16 %v2303, %v2301
        %v2333 = vpack.c.bf16 %v2306, %v2304
        %v2334 = vpack.c.bf16 %v2307, %v2305
        %v2335 = vpack.c.bf16 %v2310, %v2308
        %v2336 = vpack.c.bf16 %v2311, %v2309
        %v2337 = vpack.c.bf16 %v2314, %v2312
        %v2338 = vpack.c.bf16 %v2315, %v2313
        %v2339 = vpack.c.bf16 %v2318, %v2316
        %v2340 = vpack.c.bf16 %v2319, %v2317
        %v2341 = vpack.c.bf16 %v2322, %v2320
        %v2342 = vpack.c.bf16 %v2323, %v2321
        %v2343 = vpack.c.bf16 %v2326, %v2324
        %v2344 = vpack.c.bf16 %v2327, %v2325
        %v2345 = vld [vmem:[#allocation14] sm:$0x3]
        %v2347 = vlaneseq
        %v2348 = vshrl.u32 %v2347, 7
        %v2349 = vsub.s32 0, %v2348
        %v2350 = vrot.slane %v2345, %v2349
        %v2351 = vlaneseq
        %v2352 = vshrl.u32 %v2351, 7
        %v2353 = vsub.s32 1, %v2352
        %v2354 = vrot.slane %v2345, %v2353
        %2357 = vmatprep.subr.bf16.mxu0 %v2330
        %2358 = vmatpush1.bf16.msra.mxu0 %v2329
        %2359 = vmatprep.subr.bf16.mxu0 %v2332
        %2360 = vmatpush1.bf16.msra.mxu0 %v2331
        %2361 = vmatprep.subr.bf16.mxu0 %v2334
        %2362 = vmatpush1.bf16.msra.mxu0 %v2333
        %2363 = vmatprep.subr.bf16.mxu0 %v2336
        %2364 = vmatpush1.bf16.msra.mxu0 %v2335
        %2365 = vmatprep.subr.bf16.mxu0 %v2338
        %2366 = vmatpush1.bf16.msra.mxu0 %v2337
        %2367 = vmatprep.subr.bf16.mxu0 %v2340
        %2368 = vmatpush1.bf16.msra.mxu0 %v2339
        %2369 = vmatprep.subr.bf16.mxu0 %v2342
        %2370 = vmatpush1.bf16.msra.mxu0 %v2341
        %2371 = vmatprep.subr.bf16.mxu0 %v2344
        %2372 = vmatpush1.bf16.msra.mxu0 %v2343
        %2373 = vmatprep.subr.bf16.mxu0 0
        %2374 = vmatpush1.bf16.msra.mxu0 0
        %2375 = vmatprep.subr.bf16.mxu0 0
        %2376 = vmatpush1.bf16.msra.mxu0 0
        %2377 = vmatprep.subr.bf16.mxu0 0
        %2378 = vmatpush1.bf16.msra.mxu0 0
        %2379 = vmatprep.subr.bf16.mxu0 0
        %2380 = vmatpush1.bf16.msra.mxu0 0
        %2381 = vmatprep.subr.bf16.mxu0 0
        %2382 = vmatpush1.bf16.msra.mxu0 0
        %2383 = vmatprep.subr.bf16.mxu0 0
        %2384 = vmatpush1.bf16.msra.mxu0 0
        %2385 = vmatprep.subr.bf16.mxu0 0
        %2386 = vmatpush1.bf16.msra.mxu0 0
        %2387 = vmatprep.subr.bf16.mxu0 0
        %2388 = vmatpush1.bf16.msra.mxu0 0
        %2389 = vmatprep.mubr.bf16.mxu0 0
        %2390 = vmatmul.mubr.bf16.gmra.mrb[0].mxu0 %v2328
        %v2391 = vpop.f32.mrb[0].mxu0
        %v2392 = vadd.f32 %v2350, %v2391
        %v2393 = vpop.f32.mrb[0].mxu0
        %v2394 = vadd.f32 %v2354, %v2393
        %v2395 = vpop.f32.mrb[0].mxu0
        %v2396 = vpop.f32.mrb[0].mxu0
        %2397 = vdwg.mxu0
        %v2398 = vld [vmem:[%s1274] sm:$0x1]
        %v2399 = vld [vmem:[#allocation16] sm:$0xff]
        %v2400 = vld [vmem:[#allocation16 + $0x8] sm:$0xff]
        %v2401 = vld [vmem:[#allocation16 + $0x10] sm:$0xff]
        %v2402 = vld [vmem:[#allocation16 + $0x18] sm:$0xff]
        %v2403 = vld [vmem:[#allocation16 + $0x20] sm:$0xff]
        %v2404 = vld [vmem:[#allocation16 + $0x28] sm:$0xff]
        %v2405 = vld [vmem:[#allocation16 + $0x30] sm:$0xff]
        %v2406 = vld [vmem:[#allocation16 + $0x38] sm:$0xff]
        %v2407 = vld [vmem:[#allocation16 + $0x40] sm:$0xff]
        %v2408 = vld [vmem:[#allocation16 + $0x48] sm:$0xff]
        %v2409 = vld [vmem:[#allocation16 + $0x50] sm:$0xff]
        %v2410 = vld [vmem:[#allocation16 + $0x58] sm:$0xff]
        %v2411 = vld [vmem:[#allocation16 + $0x60] sm:$0xff]
        %v2412 = vld [vmem:[#allocation16 + $0x68] sm:$0xff]
        %v2413 = vld [vmem:[#allocation16 + $0x70] sm:$0xff]
        %v2414 = vld [vmem:[#allocation16 + $0x78] sm:$0xff]
        %v2415 = vpack.c.bf16 %v2293, %v2290
        %v2416 = vpack.c.bf16 %v2392, %v2392
        %v2418 = vsel %vm1492, %v2415, 0
        %v2421 = vsel %vm1492, %v2416, 0
        %2423 = vmatprep.subr.bf16.mxu0 0
        %2424 = vmatpush1.bf16.xpose.msra.mxu0 %v2421
        %2425 = vmatprep.subr.bf16.mxu0 0
        %2426 = vmatpush1.bf16.xpose.msra.mxu0 0
        %2427 = vmatprep.subr.bf16.mxu0 0
        %2428 = vmatpush1.bf16.xpose.msra.mxu0 0
        %2429 = vmatprep.subr.bf16.mxu0 0
        %2430 = vmatpush1.bf16.xpose.msra.mxu0 0
        %2431 = vmatprep.subr.bf16.mxu0 0
        %2432 = vmatpush1.bf16.xpose.msra.mxu0 0
        %2433 = vmatprep.subr.bf16.mxu0 0
        %2434 = vmatpush1.bf16.xpose.msra.mxu0 0
        %2435 = vmatprep.subr.bf16.mxu0 0
        %2436 = vmatpush1.bf16.xpose.msra.mxu0 0
        %2437 = vmatprep.subr.bf16.mxu0 0
        %2438 = vmatpush1.bf16.xpose.msra.mxu0 0
        %2439 = vmatprep.subr.bf16.mxu0 0
        %2440 = vmatpush1.bf16.xpose.msra.mxu0 0
        %2441 = vmatprep.subr.bf16.mxu0 0
        %2442 = vmatpush1.bf16.xpose.msra.mxu0 0
        %2443 = vmatprep.subr.bf16.mxu0 0
        %2444 = vmatpush1.bf16.xpose.msra.mxu0 0
        %2445 = vmatprep.subr.bf16.mxu0 0
        %2446 = vmatpush1.bf16.xpose.msra.mxu0 0
        %2447 = vmatprep.subr.bf16.mxu0 0
        %2448 = vmatpush1.bf16.xpose.msra.mxu0 0
        %2449 = vmatprep.subr.bf16.mxu0 0
        %2450 = vmatpush1.bf16.xpose.msra.mxu0 0
        %2451 = vmatprep.subr.bf16.mxu0 0
        %2452 = vmatpush1.bf16.xpose.msra.mxu0 0
        %2453 = vmatprep.subr.bf16.mxu0 0
        %2454 = vmatpush1.bf16.xpose.msra.mxu0 0
        %2455 = vmatprep.mubr.bf16.mxu0 0
        %2456 = vmatmul.mubr.bf16.gmra.mrb[0].mxu0 %v2418
        %v2457 = vpop.f32.mrb[0].mxu0
        %v2458 = vadd.f32 0.0, %v2457
        %v2459 = vpop.f32.mrb[0].mxu0
        %v2460 = vpop.f32.mrb[0].mxu0
        %v2461 = vadd.f32 0.0, %v2460
        %v2462 = vpop.f32.mrb[0].mxu0
        %2463 = vdwg.mxu0
        %v2464 = vmul.f32 %v2458, 0.17677669
        %v2465 = vmul.f32 %v2461, 0.17677669
        %v2467 = vlaneseq
        %v2468 = vshrl.u32 %v2467, 7
        %v2469 = vsub.s32 0, %v2468
        %v2470 = vrot.slane %v2398, %v2469
        %v2472 = vadd.f32 %v2464, %v2470
        %v2473 = vadd.f32 %v2465, %v2470
        %vm2474 = vcmask 64512
        %v2475 = vsel %vm2474, %v2472, -inf
        %2476 = vmax.xlane.f32.xlu0 %v2475
        %v2477 = vpop.xlane.xlu0 %2476
        %v2478 = vsel %vm2474, %v2473, -inf
        %2479 = vmax.xlane.f32.xlu0 %v2478
        %v2480 = vpop.xlane.xlu0 %2479
        %v2481 = vsub.f32 %v2472, %v2477
        %v2482 = vsub.f32 %v2473, %v2480
        %v2483 = vmul.f32 %v2481, 1.442695
        %v2484 = vpow.pop %v2483
        %v2485 = vmul.f32 %v2482, 1.442695
        %v2486 = vpow.pop %v2485
        %v2487 = vsel %vm2474, %v2484, 0.0
        %2488 = vadd.xlane.f32.xlu0 %v2487
        %v2489 = vpop.xlane.xlu0 %2488
        %v2490 = vsel %vm2474, %v2486, 0.0
        %2491 = vadd.xlane.f32.xlu0 %v2490
        %v2492 = vpop.xlane.xlu0 %2491
        %v2493 = vrcp.pop %v2489
        %v2494 = vmul.f32 %v2484, %v2493
        %v2495 = vrcp.pop %v2492
        %v2496 = vmul.f32 %v2486, %v2495
        %v2497 = vpack.c.bf16 %v2496, %v2494
        %v2498 = vpack.c.bf16 %v2394, %v2394
        %v2500 = vsel %vm2474, %v2497, 0
        %vm2502 = vcmask 1043456
        %v2504 = vsel %vm2502, %v2498, 0
        %2506 = vmatprep.subr.bf16.mxu0 0
        %2507 = vmatpush1.bf16.msra.mxu0 %v2504
        %2508 = vmatprep.subr.bf16.mxu0 0
        %2509 = vmatpush1.bf16.msra.mxu0 0
        %2510 = vmatprep.subr.bf16.mxu0 0
        %2511 = vmatpush1.bf16.msra.mxu0 0
        %2512 = vmatprep.subr.bf16.mxu0 0
        %2513 = vmatpush1.bf16.msra.mxu0 0
        %2514 = vmatprep.subr.bf16.mxu0 0
        %2515 = vmatpush1.bf16.msra.mxu0 0
        %2516 = vmatprep.subr.bf16.mxu0 0
        %2517 = vmatpush1.bf16.msra.mxu0 0
        %2518 = vmatprep.subr.bf16.mxu0 0
        %2519 = vmatpush1.bf16.msra.mxu0 0
        %2520 = vmatprep.subr.bf16.mxu0 0
        %2521 = vmatpush1.bf16.msra.mxu0 0
        %2522 = vmatprep.subr.bf16.mxu0 0
        %2523 = vmatpush1.bf16.msra.mxu0 0
        %2524 = vmatprep.subr.bf16.mxu0 0
        %2525 = vmatpush1.bf16.msra.mxu0 0
        %2526 = vmatprep.subr.bf16.mxu0 0
        %2527 = vmatpush1.bf16.msra.mxu0 0
        %2528 = vmatprep.subr.bf16.mxu0 0
        %2529 = vmatpush1.bf16.msra.mxu0 0
        %2530 = vmatprep.subr.bf16.mxu0 0
        %2531 = vmatpush1.bf16.msra.mxu0 0
        %2532 = vmatprep.subr.bf16.mxu0 0
        %2533 = vmatpush1.bf16.msra.mxu0 0
        %2534 = vmatprep.subr.bf16.mxu0 0
        %2535 = vmatpush1.bf16.msra.mxu0 0
        %2536 = vmatprep.subr.bf16.mxu0 0
        %2537 = vmatpush1.bf16.msra.mxu0 0
        %2538 = vmatprep.mubr.bf16.mxu0 0
        %2539 = vmatmul.mubr.bf16.gmra.mrb[0].mxu0 %v2500
        %v2540 = vpop.f32.mrb[0].mxu0
        %v2541 = vadd.f32 0.0, %v2540
        %v2542 = vpop.f32.mrb[0].mxu0
        %v2543 = vpop.f32.mrb[0].mxu0
        %v2544 = vadd.f32 0.0, %v2543
        %v2545 = vpop.f32.mrb[0].mxu0
        %2546 = vdwg.mxu0
        %v2547 = vpack.c.bf16 %v2544, %v2541
        %v2548 = vpack.c.bf16 %v2400, %v2399
        %v2549 = vpack.c.bf16 %v2402, %v2401
        %2551 = vrot.lane.b32.xlu0 %v2415, 96
        %v2552 = vpop.permute.xlu0 %2551
        %2554 = vrot.lane.b32.xlu0 %v2416, 96
        %v2555 = vpop.permute.xlu0 %2554
        %v2557 = vsel %vm1492, %v2552, 0
        %v2560 = vsel %vm1492, %v2555, 0
        %2562 = vmatprep.subr.bf16.mxu0 0
        %2563 = vmatpush1.bf16.xpose.msra.mxu0 %v2560
        %2564 = vmatprep.subr.bf16.mxu0 0
        %2565 = vmatpush1.bf16.xpose.msra.mxu0 0
        %2566 = vmatprep.subr.bf16.mxu0 0
        %2567 = vmatpush1.bf16.xpose.msra.mxu0 0
        %2568 = vmatprep.subr.bf16.mxu0 0
        %2569 = vmatpush1.bf16.xpose.msra.mxu0 0
        %2570 = vmatprep.subr.bf16.mxu0 0
        %2571 = vmatpush1.bf16.xpose.msra.mxu0 0
        %2572 = vmatprep.subr.bf16.mxu0 0
        %2573 = vmatpush1.bf16.xpose.msra.mxu0 0
        %2574 = vmatprep.subr.bf16.mxu0 0
        %2575 = vmatpush1.bf16.xpose.msra.mxu0 0
        %2576 = vmatprep.subr.bf16.mxu0 0
        %2577 = vmatpush1.bf16.xpose.msra.mxu0 0
        %2578 = vmatprep.subr.bf16.mxu0 0
        %2579 = vmatpush1.bf16.xpose.msra.mxu0 0
        %2580 = vmatprep.subr.bf16.mxu0 0
        %2581 = vmatpush1.bf16.xpose.msra.mxu0 0
        %2582 = vmatprep.subr.bf16.mxu0 0
        %2583 = vmatpush1.bf16.xpose.msra.mxu0 0
        %2584 = vmatprep.subr.bf16.mxu0 0
        %2585 = vmatpush1.bf16.xpose.msra.mxu0 0
        %2586 = vmatprep.subr.bf16.mxu0 0
        %2587 = vmatpush1.bf16.xpose.msra.mxu0 0
        %2588 = vmatprep.subr.bf16.mxu0 0
        %2589 = vmatpush1.bf16.xpose.msra.mxu0 0
        %2590 = vmatprep.subr.bf16.mxu0 0
        %2591 = vmatpush1.bf16.xpose.msra.mxu0 0
        %2592 = vmatprep.subr.bf16.mxu0 0
        %2593 = vmatpush1.bf16.xpose.msra.mxu0 0
        %2594 = vmatprep.mubr.bf16.mxu0 0
        %2595 = vmatmul.mubr.bf16.gmra.mrb[0].mxu0 %v2557
        %v2596 = vpop.f32.mrb[0].mxu0
        %v2597 = vadd.f32 0.0, %v2596
        %v2598 = vpop.f32.mrb[0].mxu0
        %v2599 = vpop.f32.mrb[0].mxu0
        %v2600 = vadd.f32 0.0, %v2599
        %v2601 = vpop.f32.mrb[0].mxu0
        %2602 = vdwg.mxu0
        %v2603 = vmul.f32 %v2597, 0.17677669
        %v2604 = vmul.f32 %v2600, 0.17677669
        %v2605 = vadd.f32 %v2603, %v2470
        %v2606 = vadd.f32 %v2604, %v2470
        %v2607 = vsel %vm2474, %v2605, -inf
        %2608 = vmax.xlane.f32.xlu0 %v2607
        %v2609 = vpop.xlane.xlu0 %2608
        %v2610 = vsel %vm2474, %v2606, -inf
        %2611 = vmax.xlane.f32.xlu0 %v2610
        %v2612 = vpop.xlane.xlu0 %2611
        %v2613 = vsub.f32 %v2605, %v2609
        %v2614 = vsub.f32 %v2606, %v2612
        %v2615 = vmul.f32 %v2613, 1.442695
        %v2616 = vpow.pop %v2615
        %v2617 = vmul.f32 %v2614, 1.442695
        %v2618 = vpow.pop %v2617
        %v2619 = vsel %vm2474, %v2616, 0.0
        %2620 = vadd.xlane.f32.xlu0 %v2619
        %v2621 = vpop.xlane.xlu0 %2620
        %v2622 = vsel %vm2474, %v2618, 0.0
        %2623 = vadd.xlane.f32.xlu0 %v2622
        %v2624 = vpop.xlane.xlu0 %2623
        %v2625 = vrcp.pop %v2621
        %v2626 = vmul.f32 %v2616, %v2625
        %v2627 = vrcp.pop %v2624
        %v2628 = vmul.f32 %v2618, %v2627
        %v2629 = vpack.c.bf16 %v2628, %v2626
        %2631 = vrot.lane.b32.xlu0 %v2498, 96
        %v2632 = vpop.permute.xlu0 %2631
        %v2634 = vsel %vm2474, %v2629, 0
        %v2637 = vsel %vm2502, %v2632, 0
        %2639 = vmatprep.subr.bf16.mxu0 0
        %2640 = vmatpush1.bf16.msra.mxu0 %v2637
        %2641 = vmatprep.subr.bf16.mxu0 0
        %2642 = vmatpush1.bf16.msra.mxu0 0
        %2643 = vmatprep.subr.bf16.mxu0 0
        %2644 = vmatpush1.bf16.msra.mxu0 0
        %2645 = vmatprep.subr.bf16.mxu0 0
        %2646 = vmatpush1.bf16.msra.mxu0 0
        %2647 = vmatprep.subr.bf16.mxu0 0
        %2648 = vmatpush1.bf16.msra.mxu0 0
        %2649 = vmatprep.subr.bf16.mxu0 0
        %2650 = vmatpush1.bf16.msra.mxu0 0
        %2651 = vmatprep.subr.bf16.mxu0 0
        %2652 = vmatpush1.bf16.msra.mxu0 0
        %2653 = vmatprep.subr.bf16.mxu0 0
        %2654 = vmatpush1.bf16.msra.mxu0 0
        %2655 = vmatprep.subr.bf16.mxu0 0
        %2656 = vmatpush1.bf16.msra.mxu0 0
        %2657 = vmatprep.subr.bf16.mxu0 0
        %2658 = vmatpush1.bf16.msra.mxu0 0
        %2659 = vmatprep.subr.bf16.mxu0 0
        %2660 = vmatpush1.bf16.msra.mxu0 0
        %2661 = vmatprep.subr.bf16.mxu0 0
        %2662 = vmatpush1.bf16.msra.mxu0 0
        %2663 = vmatprep.subr.bf16.mxu0 0
        %2664 = vmatpush1.bf16.msra.mxu0 0
        %2665 = vmatprep.subr.bf16.mxu0 0
        %2666 = vmatpush1.bf16.msra.mxu0 0
        %2667 = vmatprep.subr.bf16.mxu0 0
        %2668 = vmatpush1.bf16.msra.mxu0 0
        %2669 = vmatprep.subr.bf16.mxu0 0
        %2670 = vmatpush1.bf16.msra.mxu0 0
        %2671 = vmatprep.mubr.bf16.mxu0 0
        %2672 = vmatmul.mubr.bf16.gmra.mrb[0].mxu0 %v2634
        %v2673 = vpop.f32.mrb[0].mxu0
        %v2674 = vadd.f32 0.0, %v2673
        %v2675 = vpop.f32.mrb[0].mxu0
        %v2676 = vpop.f32.mrb[0].mxu0
        %v2677 = vadd.f32 0.0, %v2676
        %v2678 = vpop.f32.mrb[0].mxu0
        %2679 = vdwg.mxu0
        %v2680 = vpack.c.bf16 %v2677, %v2674
        %v2681 = vpack.c.bf16 %v2404, %v2403
        %v2682 = vpack.c.bf16 %v2406, %v2405
        %v2684 = vsel %vm1492, %v2680, 0
        %2686 = vmatprep.subr.bf16.mxu0 0
        %2687 = vmatpush1.bf16.msra.mxu0 %v2681
        %2688 = vmatprep.subr.bf16.mxu0 0
        %2689 = vmatpush1.bf16.msra.mxu0 %v2682
        %2690 = vmatprep.subr.bf16.mxu0 0
        %2691 = vmatpush1.bf16.msra.mxu0 0
        %2692 = vmatprep.subr.bf16.mxu0 0
        %2693 = vmatpush1.bf16.msra.mxu0 0
        %2694 = vmatprep.subr.bf16.mxu0 0
        %2695 = vmatpush1.bf16.msra.mxu0 0
        %2696 = vmatprep.subr.bf16.mxu0 0
        %2697 = vmatpush1.bf16.msra.mxu0 0
        %2698 = vmatprep.subr.bf16.mxu0 0
        %2699 = vmatpush1.bf16.msra.mxu0 0
        %2700 = vmatprep.subr.bf16.mxu0 0
        %2701 = vmatpush1.bf16.msra.mxu0 0
        %2702 = vmatprep.subr.bf16.mxu0 0
        %2703 = vmatpush1.bf16.msra.mxu0 0
        %2704 = vmatprep.subr.bf16.mxu0 0
        %2705 = vmatpush1.bf16.msra.mxu0 0
        %2706 = vmatprep.subr.bf16.mxu0 0
        %2707 = vmatpush1.bf16.msra.mxu0 0
        %2708 = vmatprep.subr.bf16.mxu0 0
        %2709 = vmatpush1.bf16.msra.mxu0 0
        %2710 = vmatprep.subr.bf16.mxu0 0
        %2711 = vmatpush1.bf16.msra.mxu0 0
        %2712 = vmatprep.subr.bf16.mxu0 0
        %2713 = vmatpush1.bf16.msra.mxu0 0
        %2714 = vmatprep.subr.bf16.mxu0 0
        %2715 = vmatpush1.bf16.msra.mxu0 0
        %2716 = vmatprep.subr.bf16.mxu0 0
        %2717 = vmatpush1.bf16.msra.mxu0 0
        %2718 = vmatprep.mubr.bf16.mxu0 0
        %2719 = vmatmul.mubr.bf16.gmra.mrb[0].mxu0 %v2684
        %v2720 = vpop.f32.mrb[0].mxu0
        %v2721 = vadd.f32 0.0, %v2720
        %v2722 = vpop.f32.mrb[0].mxu0
        %v2723 = vpop.f32.mrb[0].mxu0
        %v2724 = vadd.f32 0.0, %v2723
        %v2725 = vpop.f32.mrb[0].mxu0
        %2726 = vdwg.mxu0
        %v2728 = vsel %vm1492, %v2547, 0
        %2730 = vmatprep.subr.bf16.mxu0 0
        %2731 = vmatpush1.bf16.msra.mxu0 %v2548
        %2732 = vmatprep.subr.bf16.mxu0 0
        %2733 = vmatpush1.bf16.msra.mxu0 %v2549
        %2734 = vmatprep.subr.bf16.mxu0 0
        %2735 = vmatpush1.bf16.msra.mxu0 0
        %2736 = vmatprep.subr.bf16.mxu0 0
        %2737 = vmatpush1.bf16.msra.mxu0 0
        %2738 = vmatprep.subr.bf16.mxu0 0
        %2739 = vmatpush1.bf16.msra.mxu0 0
        %2740 = vmatprep.subr.bf16.mxu0 0
        %2741 = vmatpush1.bf16.msra.mxu0 0
        %2742 = vmatprep.subr.bf16.mxu0 0
        %2743 = vmatpush1.bf16.msra.mxu0 0
        %2744 = vmatprep.subr.bf16.mxu0 0
        %2745 = vmatpush1.bf16.msra.mxu0 0
        %2746 = vmatprep.subr.bf16.mxu0 0
        %2747 = vmatpush1.bf16.msra.mxu0 0
        %2748 = vmatprep.subr.bf16.mxu0 0
        %2749 = vmatpush1.bf16.msra.mxu0 0
        %2750 = vmatprep.subr.bf16.mxu0 0
        %2751 = vmatpush1.bf16.msra.mxu0 0
        %2752 = vmatprep.subr.bf16.mxu0 0
        %2753 = vmatpush1.bf16.msra.mxu0 0
        %2754 = vmatprep.subr.bf16.mxu0 0
        %2755 = vmatpush1.bf16.msra.mxu0 0
        %2756 = vmatprep.subr.bf16.mxu0 0
        %2757 = vmatpush1.bf16.msra.mxu0 0
        %2758 = vmatprep.subr.bf16.mxu0 0
        %2759 = vmatpush1.bf16.msra.mxu0 0
        %2760 = vmatprep.subr.bf16.mxu0 0
        %2761 = vmatpush1.bf16.msra.mxu0 0
        %2762 = vmatprep.mubr.bf16.mxu0 0
        %2763 = vmatmul.mubr.bf16.gmra.mrb[0].mxu0 %v2728
        %v2764 = vpop.f32.mrb[0].mxu0
        %v2765 = vadd.f32 %v2721, %v2764
        %v2766 = vpop.f32.mrb[0].mxu0
        %v2767 = vpop.f32.mrb[0].mxu0
        %v2768 = vadd.f32 %v2724, %v2767
        %v2769 = vpop.f32.mrb[0].mxu0
        %2770 = vdwg.mxu0
        %2771 = vrot.lane.b32.xlu0 %v2415, 64
        %v2772 = vpop.permute.xlu0 %2771
        %2773 = vrot.lane.b32.xlu0 %v2416, 64
        %v2774 = vpop.permute.xlu0 %2773
        %v2776 = vsel %vm1492, %v2772, 0
        %v2779 = vsel %vm1492, %v2774, 0
        %2781 = vmatprep.subr.bf16.mxu0 0
        %2782 = vmatpush1.bf16.xpose.msra.mxu0 %v2779
        %2783 = vmatprep.subr.bf16.mxu0 0
        %2784 = vmatpush1.bf16.xpose.msra.mxu0 0
        %2785 = vmatprep.subr.bf16.mxu0 0
        %2786 = vmatpush1.bf16.xpose.msra.mxu0 0
        %2787 = vmatprep.subr.bf16.mxu0 0
        %2788 = vmatpush1.bf16.xpose.msra.mxu0 0
        %2789 = vmatprep.subr.bf16.mxu0 0
        %2790 = vmatpush1.bf16.xpose.msra.mxu0 0
        %2791 = vmatprep.subr.bf16.mxu0 0
        %2792 = vmatpush1.bf16.xpose.msra.mxu0 0
        %2793 = vmatprep.subr.bf16.mxu0 0
        %2794 = vmatpush1.bf16.xpose.msra.mxu0 0
        %2795 = vmatprep.subr.bf16.mxu0 0
        %2796 = vmatpush1.bf16.xpose.msra.mxu0 0
        %2797 = vmatprep.subr.bf16.mxu0 0
        %2798 = vmatpush1.bf16.xpose.msra.mxu0 0
        %2799 = vmatprep.subr.bf16.mxu0 0
        %2800 = vmatpush1.bf16.xpose.msra.mxu0 0
        %2801 = vmatprep.subr.bf16.mxu0 0
        %2802 = vmatpush1.bf16.xpose.msra.mxu0 0
        %2803 = vmatprep.subr.bf16.mxu0 0
        %2804 = vmatpush1.bf16.xpose.msra.mxu0 0
        %2805 = vmatprep.subr.bf16.mxu0 0
        %2806 = vmatpush1.bf16.xpose.msra.mxu0 0
        %2807 = vmatprep.subr.bf16.mxu0 0
        %2808 = vmatpush1.bf16.xpose.msra.mxu0 0
        %2809 = vmatprep.subr.bf16.mxu0 0
        %2810 = vmatpush1.bf16.xpose.msra.mxu0 0
        %2811 = vmatprep.subr.bf16.mxu0 0
        %2812 = vmatpush1.bf16.xpose.msra.mxu0 0
        %2813 = vmatprep.mubr.bf16.mxu0 0
        %2814 = vmatmul.mubr.bf16.gmra.mrb[0].mxu0 %v2776
        %v2815 = vpop.f32.mrb[0].mxu0
        %v2816 = vadd.f32 0.0, %v2815
        %v2817 = vpop.f32.mrb[0].mxu0
        %v2818 = vpop.f32.mrb[0].mxu0
        %v2819 = vadd.f32 0.0, %v2818
        %v2820 = vpop.f32.mrb[0].mxu0
        %2821 = vdwg.mxu0
        %v2822 = vmul.f32 %v2816, 0.17677669
        %v2823 = vmul.f32 %v2819, 0.17677669
        %v2824 = vadd.f32 %v2822, %v2470
        %v2825 = vadd.f32 %v2823, %v2470
        %v2826 = vsel %vm2474, %v2824, -inf
        %2827 = vmax.xlane.f32.xlu0 %v2826
        %v2828 = vpop.xlane.xlu0 %2827
        %v2829 = vsel %vm2474, %v2825, -inf
        %2830 = vmax.xlane.f32.xlu0 %v2829
        %v2831 = vpop.xlane.xlu0 %2830
        %v2832 = vsub.f32 %v2824, %v2828
        %v2833 = vsub.f32 %v2825, %v2831
        %v2834 = vmul.f32 %v2832, 1.442695
        %v2835 = vpow.pop %v2834
        %v2836 = vmul.f32 %v2833, 1.442695
        %v2837 = vpow.pop %v2836
        %v2838 = vsel %vm2474, %v2835, 0.0
        %2839 = vadd.xlane.f32.xlu0 %v2838
        %v2840 = vpop.xlane.xlu0 %2839
        %v2841 = vsel %vm2474, %v2837, 0.0
        %2842 = vadd.xlane.f32.xlu0 %v2841
        %v2843 = vpop.xlane.xlu0 %2842
        %v2844 = vrcp.pop %v2840
        %v2845 = vmul.f32 %v2835, %v2844
        %v2846 = vrcp.pop %v2843
        %v2847 = vmul.f32 %v2837, %v2846
        %v2848 = vpack.c.bf16 %v2847, %v2845
        %2849 = vrot.lane.b32.xlu0 %v2498, 64
        %v2850 = vpop.permute.xlu0 %2849
        %v2852 = vsel %vm2474, %v2848, 0
        %v2855 = vsel %vm2502, %v2850, 0
        %2857 = vmatprep.subr.bf16.mxu0 0
        %2858 = vmatpush1.bf16.msra.mxu0 %v2855
        %2859 = vmatprep.subr.bf16.mxu0 0
        %2860 = vmatpush1.bf16.msra.mxu0 0
        %2861 = vmatprep.subr.bf16.mxu0 0
        %2862 = vmatpush1.bf16.msra.mxu0 0
        %2863 = vmatprep.subr.bf16.mxu0 0
        %2864 = vmatpush1.bf16.msra.mxu0 0
        %2865 = vmatprep.subr.bf16.mxu0 0
        %2866 = vmatpush1.bf16.msra.mxu0 0
        %2867 = vmatprep.subr.bf16.mxu0 0
        %2868 = vmatpush1.bf16.msra.mxu0 0
        %2869 = vmatprep.subr.bf16.mxu0 0
        %2870 = vmatpush1.bf16.msra.mxu0 0
        %2871 = vmatprep.subr.bf16.mxu0 0
        %2872 = vmatpush1.bf16.msra.mxu0 0
        %2873 = vmatprep.subr.bf16.mxu0 0
        %2874 = vmatpush1.bf16.msra.mxu0 0
        %2875 = vmatprep.subr.bf16.mxu0 0
        %2876 = vmatpush1.bf16.msra.mxu0 0
        %2877 = vmatprep.subr.bf16.mxu0 0
        %2878 = vmatpush1.bf16.msra.mxu0 0
        %2879 = vmatprep.subr.bf16.mxu0 0
        %2880 = vmatpush1.bf16.msra.mxu0 0
        %2881 = vmatprep.subr.bf16.mxu0 0
        %2882 = vmatpush1.bf16.msra.mxu0 0
        %2883 = vmatprep.subr.bf16.mxu0 0
        %2884 = vmatpush1.bf16.msra.mxu0 0
        %2885 = vmatprep.subr.bf16.mxu0 0
        %2886 = vmatpush1.bf16.msra.mxu0 0
        %2887 = vmatprep.subr.bf16.mxu0 0
        %2888 = vmatpush1.bf16.msra.mxu0 0
        %2889 = vmatprep.mubr.bf16.mxu0 0
        %2890 = vmatmul.mubr.bf16.gmra.mrb[0].mxu0 %v2852
        %v2891 = vpop.f32.mrb[0].mxu0
        %v2892 = vadd.f32 0.0, %v2891
        %v2893 = vpop.f32.mrb[0].mxu0
        %v2894 = vpop.f32.mrb[0].mxu0
        %v2895 = vadd.f32 0.0, %v2894
        %v2896 = vpop.f32.mrb[0].mxu0
        %2897 = vdwg.mxu0
        %v2898 = vpack.c.bf16 %v2895, %v2892
        %v2899 = vpack.c.bf16 %v2408, %v2407
        %v2900 = vpack.c.bf16 %v2410, %v2409
        %v2902 = vsel %vm1492, %v2898, 0
        %2904 = vmatprep.subr.bf16.mxu0 0
        %2905 = vmatpush1.bf16.msra.mxu0 %v2899
        %2906 = vmatprep.subr.bf16.mxu0 0
        %2907 = vmatpush1.bf16.msra.mxu0 %v2900
        %2908 = vmatprep.subr.bf16.mxu0 0
        %2909 = vmatpush1.bf16.msra.mxu0 0
        %2910 = vmatprep.subr.bf16.mxu0 0
        %2911 = vmatpush1.bf16.msra.mxu0 0
        %2912 = vmatprep.subr.bf16.mxu0 0
        %2913 = vmatpush1.bf16.msra.mxu0 0
        %2914 = vmatprep.subr.bf16.mxu0 0
        %2915 = vmatpush1.bf16.msra.mxu0 0
        %2916 = vmatprep.subr.bf16.mxu0 0
        %2917 = vmatpush1.bf16.msra.mxu0 0
        %2918 = vmatprep.subr.bf16.mxu0 0
        %2919 = vmatpush1.bf16.msra.mxu0 0
        %2920 = vmatprep.subr.bf16.mxu0 0
        %2921 = vmatpush1.bf16.msra.mxu0 0
        %2922 = vmatprep.subr.bf16.mxu0 0
        %2923 = vmatpush1.bf16.msra.mxu0 0
        %2924 = vmatprep.subr.bf16.mxu0 0
        %2925 = vmatpush1.bf16.msra.mxu0 0
        %2926 = vmatprep.subr.bf16.mxu0 0
        %2927 = vmatpush1.bf16.msra.mxu0 0
        %2928 = vmatprep.subr.bf16.mxu0 0
        %2929 = vmatpush1.bf16.msra.mxu0 0
        %2930 = vmatprep.subr.bf16.mxu0 0
        %2931 = vmatpush1.bf16.msra.mxu0 0
        %2932 = vmatprep.subr.bf16.mxu0 0
        %2933 = vmatpush1.bf16.msra.mxu0 0
        %2934 = vmatprep.subr.bf16.mxu0 0
        %2935 = vmatpush1.bf16.msra.mxu0 0
        %2936 = vmatprep.mubr.bf16.mxu0 0
        %2937 = vmatmul.mubr.bf16.gmra.mrb[0].mxu0 %v2902
        %v2938 = vpop.f32.mrb[0].mxu0
        %v2939 = vadd.f32 0.0, %v2938
        %v2940 = vpop.f32.mrb[0].mxu0
        %v2941 = vpop.f32.mrb[0].mxu0
        %v2942 = vadd.f32 0.0, %v2941
        %v2943 = vpop.f32.mrb[0].mxu0
        %2944 = vdwg.mxu0
        %v2945 = vadd.f32 %v2765, %v2939
        %v2946 = vadd.f32 %v2768, %v2942
        %2947 = vrot.lane.b32.xlu0 %v2415, 32
        %v2948 = vpop.permute.xlu0 %2947
        %2949 = vrot.lane.b32.xlu0 %v2416, 32
        %v2950 = vpop.permute.xlu0 %2949
        %v2952 = vsel %vm1492, %v2948, 0
        %v2955 = vsel %vm1492, %v2950, 0
        %2957 = vmatprep.subr.bf16.mxu0 0
        %2958 = vmatpush1.bf16.xpose.msra.mxu0 %v2955
        %2959 = vmatprep.subr.bf16.mxu0 0
        %2960 = vmatpush1.bf16.xpose.msra.mxu0 0
        %2961 = vmatprep.subr.bf16.mxu0 0
        %2962 = vmatpush1.bf16.xpose.msra.mxu0 0
        %2963 = vmatprep.subr.bf16.mxu0 0
        %2964 = vmatpush1.bf16.xpose.msra.mxu0 0
        %2965 = vmatprep.subr.bf16.mxu0 0
        %2966 = vmatpush1.bf16.xpose.msra.mxu0 0
        %2967 = vmatprep.subr.bf16.mxu0 0
        %2968 = vmatpush1.bf16.xpose.msra.mxu0 0
        %2969 = vmatprep.subr.bf16.mxu0 0
        %2970 = vmatpush1.bf16.xpose.msra.mxu0 0
        %2971 = vmatprep.subr.bf16.mxu0 0
        %2972 = vmatpush1.bf16.xpose.msra.mxu0 0
        %2973 = vmatprep.subr.bf16.mxu0 0
        %2974 = vmatpush1.bf16.xpose.msra.mxu0 0
        %2975 = vmatprep.subr.bf16.mxu0 0
        %2976 = vmatpush1.bf16.xpose.msra.mxu0 0
        %2977 = vmatprep.subr.bf16.mxu0 0
        %2978 = vmatpush1.bf16.xpose.msra.mxu0 0
        %2979 = vmatprep.subr.bf16.mxu0 0
        %2980 = vmatpush1.bf16.xpose.msra.mxu0 0
        %2981 = vmatprep.subr.bf16.mxu0 0
        %2982 = vmatpush1.bf16.xpose.msra.mxu0 0
        %2983 = vmatprep.subr.bf16.mxu0 0
        %2984 = vmatpush1.bf16.xpose.msra.mxu0 0
        %2985 = vmatprep.subr.bf16.mxu0 0
        %2986 = vmatpush1.bf16.xpose.msra.mxu0 0
        %2987 = vmatprep.subr.bf16.mxu0 0
        %2988 = vmatpush1.bf16.xpose.msra.mxu0 0
        %2989 = vmatprep.mubr.bf16.mxu0 0
        %2990 = vmatmul.mubr.bf16.gmra.mrb[0].mxu0 %v2952
        %v2991 = vpop.f32.mrb[0].mxu0
        %v2992 = vadd.f32 0.0, %v2991
        %v2993 = vpop.f32.mrb[0].mxu0
        %v2994 = vpop.f32.mrb[0].mxu0
        %v2995 = vadd.f32 0.0, %v2994
        %v2996 = vpop.f32.mrb[0].mxu0
        %2997 = vdwg.mxu0
        %v2998 = vmul.f32 %v2992, 0.17677669
        %v2999 = vmul.f32 %v2995, 0.17677669
        %v3000 = vadd.f32 %v2998, %v2470
        %v3001 = vadd.f32 %v2999, %v2470
        %v3002 = vsel %vm2474, %v3000, -inf
        %3003 = vmax.xlane.f32.xlu0 %v3002
        %v3004 = vpop.xlane.xlu0 %3003
        %v3005 = vsel %vm2474, %v3001, -inf
        %3006 = vmax.xlane.f32.xlu0 %v3005
        %v3007 = vpop.xlane.xlu0 %3006
        %v3008 = vsub.f32 %v3000, %v3004
        %v3009 = vsub.f32 %v3001, %v3007
        %v3010 = vmul.f32 %v3008, 1.442695
        %v3011 = vpow.pop %v3010
        %v3012 = vmul.f32 %v3009, 1.442695
        %v3013 = vpow.pop %v3012
        %v3014 = vsel %vm2474, %v3011, 0.0
        %3015 = vadd.xlane.f32.xlu0 %v3014
        %v3016 = vpop.xlane.xlu0 %3015
        %v3017 = vsel %vm2474, %v3013, 0.0
        %3018 = vadd.xlane.f32.xlu0 %v3017
        %v3019 = vpop.xlane.xlu0 %3018
        %v3020 = vrcp.pop %v3016
        %v3021 = vmul.f32 %v3011, %v3020
        %v3022 = vrcp.pop %v3019
        %v3023 = vmul.f32 %v3013, %v3022
        %v3024 = vpack.c.bf16 %v3023, %v3021
        %3025 = vrot.lane.b32.xlu0 %v2498, 32
        %v3026 = vpop.permute.xlu0 %3025
        %v3028 = vsel %vm2474, %v3024, 0
        %v3031 = vsel %vm2502, %v3026, 0
        %3033 = vmatprep.subr.bf16.mxu0 0
        %3034 = vmatpush1.bf16.msra.mxu0 %v3031
        %3035 = vmatprep.subr.bf16.mxu0 0
        %3036 = vmatpush1.bf16.msra.mxu0 0
        %3037 = vmatprep.subr.bf16.mxu0 0
        %3038 = vmatpush1.bf16.msra.mxu0 0
        %3039 = vmatprep.subr.bf16.mxu0 0
        %3040 = vmatpush1.bf16.msra.mxu0 0
        %3041 = vmatprep.subr.bf16.mxu0 0
        %3042 = vmatpush1.bf16.msra.mxu0 0
        %3043 = vmatprep.subr.bf16.mxu0 0
        %3044 = vmatpush1.bf16.msra.mxu0 0
        %3045 = vmatprep.subr.bf16.mxu0 0
        %3046 = vmatpush1.bf16.msra.mxu0 0
        %3047 = vmatprep.subr.bf16.mxu0 0
        %3048 = vmatpush1.bf16.msra.mxu0 0
        %3049 = vmatprep.subr.bf16.mxu0 0
        %3050 = vmatpush1.bf16.msra.mxu0 0
        %3051 = vmatprep.subr.bf16.mxu0 0
        %3052 = vmatpush1.bf16.msra.mxu0 0
        %3053 = vmatprep.subr.bf16.mxu0 0
        %3054 = vmatpush1.bf16.msra.mxu0 0
        %3055 = vmatprep.subr.bf16.mxu0 0
        %3056 = vmatpush1.bf16.msra.mxu0 0
        %3057 = vmatprep.subr.bf16.mxu0 0
        %3058 = vmatpush1.bf16.msra.mxu0 0
        %3059 = vmatprep.subr.bf16.mxu0 0
        %3060 = vmatpush1.bf16.msra.mxu0 0
        %3061 = vmatprep.subr.bf16.mxu0 0
        %3062 = vmatpush1.bf16.msra.mxu0 0
        %3063 = vmatprep.subr.bf16.mxu0 0
        %3064 = vmatpush1.bf16.msra.mxu0 0
        %3065 = vmatprep.mubr.bf16.mxu0 0
        %3066 = vmatmul.mubr.bf16.gmra.mrb[0].mxu0 %v3028
        %v3067 = vpop.f32.mrb[0].mxu0
        %v3068 = vadd.f32 0.0, %v3067
        %v3069 = vpop.f32.mrb[0].mxu0
        %v3070 = vpop.f32.mrb[0].mxu0
        %v3071 = vadd.f32 0.0, %v3070
        %v3072 = vpop.f32.mrb[0].mxu0
        %3073 = vdwg.mxu0
        %v3074 = vpack.c.bf16 %v3071, %v3068
        %v3075 = vpack.c.bf16 %v2412, %v2411
        %v3076 = vpack.c.bf16 %v2414, %v2413
        %v3078 = vsel %vm1492, %v3074, 0
        %3080 = vmatprep.subr.bf16.mxu0 0
        %3081 = vmatpush1.bf16.msra.mxu0 %v3075
        %3082 = vmatprep.subr.bf16.mxu0 0
        %3083 = vmatpush1.bf16.msra.mxu0 %v3076
        %3084 = vmatprep.subr.bf16.mxu0 0
        %3085 = vmatpush1.bf16.msra.mxu0 0
        %3086 = vmatprep.subr.bf16.mxu0 0
        %3087 = vmatpush1.bf16.msra.mxu0 0
        %3088 = vmatprep.subr.bf16.mxu0 0
        %3089 = vmatpush1.bf16.msra.mxu0 0
        %3090 = vmatprep.subr.bf16.mxu0 0
        %3091 = vmatpush1.bf16.msra.mxu0 0
        %3092 = vmatprep.subr.bf16.mxu0 0
        %3093 = vmatpush1.bf16.msra.mxu0 0
        %3094 = vmatprep.subr.bf16.mxu0 0
        %3095 = vmatpush1.bf16.msra.mxu0 0
        %3096 = vmatprep.subr.bf16.mxu0 0
        %3097 = vmatpush1.bf16.msra.mxu0 0
        %3098 = vmatprep.subr.bf16.mxu0 0
        %3099 = vmatpush1.bf16.msra.mxu0 0
        %3100 = vmatprep.subr.bf16.mxu0 0
        %3101 = vmatpush1.bf16.msra.mxu0 0
        %3102 = vmatprep.subr.bf16.mxu0 0
        %3103 = vmatpush1.bf16.msra.mxu0 0
        %3104 = vmatprep.subr.bf16.mxu0 0
        %3105 = vmatpush1.bf16.msra.mxu0 0
        %3106 = vmatprep.subr.bf16.mxu0 0
        %3107 = vmatpush1.bf16.msra.mxu0 0
        %3108 = vmatprep.subr.bf16.mxu0 0
        %3109 = vmatpush1.bf16.msra.mxu0 0
        %3110 = vmatprep.subr.bf16.mxu0 0
        %3111 = vmatpush1.bf16.msra.mxu0 0
        %3112 = vmatprep.mubr.bf16.mxu0 0
        %3113 = vmatmul.mubr.bf16.gmra.mrb[0].mxu0 %v3078
        %v3114 = vpop.f32.mrb[0].mxu0
        %v3115 = vadd.f32 0.0, %v3114
        %v3116 = vpop.f32.mrb[0].mxu0
        %v3117 = vpop.f32.mrb[0].mxu0
        %v3118 = vadd.f32 0.0, %v3117
        %v3119 = vpop.f32.mrb[0].mxu0
        %3120 = vdwg.mxu0
        %v3121 = vadd.f32 %v2945, %v3115
        %v3122 = vadd.f32 %v2946, %v3118
        %v3123 = vld [vmem:[#allocation17] sm:$0x1]
        %v3125 = vlaneseq
        %v3126 = vshrl.u32 %v3125, 7
        %v3127 = vsub.s32 0, %v3126
        %v3128 = vrot.slane %v3123, %v3127
        %v3130 = vadd.f32 %v3121, %v3128
        %v3131 = vadd.f32 %v3122, %v3128
        %v3132 = vadd.f32 %v2219, %v3130
        %v3133 = vadd.f32 %v2220, %v3131
        %3134 = vadd.xlane.f32.xlu0 %v3132
        %v3135 = vpop.xlane.xlu0 %3134
        %3136 = vadd.xlane.f32.xlu0 %v3133
        %v3137 = vpop.xlane.xlu0 %3136
        %v3138 = vmul.f32 %v3135, %v2190
        %v3139 = vmul.f32 %v3137, %v2190
        %v3140 = vsub.f32 %v3132, %v3138
        %v3141 = vsub.f32 %v3133, %v3139
        %v3142 = vmul.f32 %v3140, %v3140
        %v3143 = vmul.f32 %v3141, %v3141
        %3144 = vadd.xlane.f32.xlu0 %v3142
        %v3145 = vpop.xlane.xlu0 %3144
        %3146 = vadd.xlane.f32.xlu0 %v3143
        %v3147 = vpop.xlane.xlu0 %3146
        %v3148 = vmul.f32 %v3145, %v2190
        %v3149 = vmul.f32 %v3147, %v2190
        %v3150 = vadd.f32 %v3148, 1e-05
        %v3151 = vadd.f32 %v3149, 1e-05
        %v3152 = vrsqrt.pop %v3150
        %v3153 = vrsqrt.pop %v3151
        %v3154 = vmul.f32 %v3140, %v3152
        %v3155 = vmul.f32 %v3141, %v3153
        %v3156 = vlaneseq
        %v3157 = vshrl.u32 %v3156, 7
        %v3158 = vsub.s32 2, %v3157
        %v3159 = vrot.slane %v1294, %v3158
        %v3160 = vmul.f32 %v3154, %v3159
        %v3161 = vmul.f32 %v3155, %v3159
        %v3162 = vlaneseq
        %v3163 = vshrl.u32 %v3162, 7
        %v3164 = vsub.s32 3, %v3163
        %v3165 = vrot.slane %v1294, %v3164
        %v3166 = vadd.f32 %v3160, %v3165
        %v3167 = vadd.f32 %v3161, %v3165
        %v3168 = vadd.f32 %v3166, %v1291
        %v3169 = vadd.f32 %v3167, %v1292
        %v3170 = vld [vmem:[%s1278] sm:$0xff]
        %v3171 = vld [vmem:[#allocation19] sm:$0xff]
        %v3172 = vld [vmem:[#allocation19 + $0x8] sm:$0xff]
        %v3173 = vld [vmem:[#allocation19 + $0x10] sm:$0xff]
        %v3174 = vld [vmem:[#allocation19 + $0x18] sm:$0xff]
        %v3175 = vld [vmem:[#allocation19 + $0x20] sm:$0xff]
        %v3176 = vld [vmem:[#allocation19 + $0x28] sm:$0xff]
        %v3177 = vld [vmem:[#allocation19 + $0x30] sm:$0xff]
        %v3178 = vld [vmem:[#allocation19 + $0x38] sm:$0xff]
        %v3179 = vld [vmem:[#allocation19 + $0x40] sm:$0xff]
        %v3180 = vld [vmem:[#allocation19 + $0x48] sm:$0xff]
        %v3181 = vld [vmem:[#allocation19 + $0x50] sm:$0xff]
        %v3182 = vld [vmem:[#allocation19 + $0x58] sm:$0xff]
        %v3183 = vld [vmem:[#allocation19 + $0x60] sm:$0xff]
        %v3184 = vld [vmem:[#allocation19 + $0x68] sm:$0xff]
        %v3185 = vld [vmem:[#allocation19 + $0x70] sm:$0xff]
        %v3186 = vld [vmem:[#allocation19 + $0x78] sm:$0xff]
        %v3187 = vpack.c.bf16 %v3170, %v3170
        %v3188 = vpack.c.bf16 %v3172, %v3171
        %v3189 = vpack.c.bf16 %v3174, %v3173
        %v3190 = vpack.c.bf16 %v3176, %v3175
        %v3191 = vpack.c.bf16 %v3178, %v3177
        %v3192 = vpack.c.bf16 %v3180, %v3179
        %v3193 = vpack.c.bf16 %v3182, %v3181
        %v3194 = vpack.c.bf16 %v3184, %v3183
        %v3195 = vpack.c.bf16 %v3186, %v3185
        %v3196 = vld [vmem:[#allocation20] sm:$0x1]
        %v3198 = vlaneseq
        %v3199 = vshrl.u32 %v3198, 7
        %v3200 = vsub.s32 0, %v3199
        %v3201 = vrot.slane %v3196, %v3200
        %3203 = vmatprep.subr.bf16.mxu0 0
        %3204 = vmatpush1.bf16.msra.mxu0 %v3188
        %3205 = vmatprep.subr.bf16.mxu0 0
        %3206 = vmatpush1.bf16.msra.mxu0 %v3189
        %3207 = vmatprep.subr.bf16.mxu0 0
        %3208 = vmatpush1.bf16.msra.mxu0 %v3190
        %3209 = vmatprep.subr.bf16.mxu0 0
        %3210 = vmatpush1.bf16.msra.mxu0 %v3191
        %3211 = vmatprep.subr.bf16.mxu0 0
        %3212 = vmatpush1.bf16.msra.mxu0 %v3192
        %3213 = vmatprep.subr.bf16.mxu0 0
        %3214 = vmatpush1.bf16.msra.mxu0 %v3193
        %3215 = vmatprep.subr.bf16.mxu0 0
        %3216 = vmatpush1.bf16.msra.mxu0 %v3194
        %3217 = vmatprep.subr.bf16.mxu0 0
        %3218 = vmatpush1.bf16.msra.mxu0 %v3195
        %3219 = vmatprep.subr.bf16.mxu0 0
        %3220 = vmatpush1.bf16.msra.mxu0 0
        %3221 = vmatprep.subr.bf16.mxu0 0
        %3222 = vmatpush1.bf16.msra.mxu0 0
        %3223 = vmatprep.subr.bf16.mxu0 0
        %3224 = vmatpush1.bf16.msra.mxu0 0
        %3225 = vmatprep.subr.bf16.mxu0 0
        %3226 = vmatpush1.bf16.msra.mxu0 0
        %3227 = vmatprep.subr.bf16.mxu0 0
        %3228 = vmatpush1.bf16.msra.mxu0 0
        %3229 = vmatprep.subr.bf16.mxu0 0
        %3230 = vmatpush1.bf16.msra.mxu0 0
        %3231 = vmatprep.subr.bf16.mxu0 0
        %3232 = vmatpush1.bf16.msra.mxu0 0
        %3233 = vmatprep.subr.bf16.mxu0 0
        %3234 = vmatpush1.bf16.msra.mxu0 0
        %3235 = vmatprep.mubr.bf16.mxu0 0
        %3236 = vmatmul.mubr.bf16.gmra.mrb[0].mxu0 %v3187
        %v3237 = vpop.f32.mrb[0].mxu0
        %v3238 = vadd.f32 %v3201, %v3237
        %v3239 = vpop.f32.mrb[0].mxu0
        %v3240 = vpop.f32.mrb[0].mxu0
        %v3241 = vpop.f32.mrb[0].mxu0
        %3242 = vdwg.mxu0
        %v3243 = vld [vmem:[%s1282] sm:$0xff]
        %3245 = vset.pattern.permute.xlu0 0
        %3246 = vperm.xlu0 %3245, %v3243
        %v3247 = vpop.permute.xlu0 %3246
        %v3249 = vmul.f32 %v3238, %v3247
        %v3250 = vrot.slane %v3249, 4
        %v3251 = vadd.f32 %v3249, %v3250
        %v3252 = vrot.slane %v3251, 2
        %v3253 = vadd.f32 %v3251, %v3252
        %v3254 = vrot.slane %v3253, 1
        %v3255 = vadd.f32 %v3253, %v3254
        %v3256 = vld [vmem:[%s43] sm:$0xff]
        %v3257 = vld [vmem:[%s43 + $0x8] sm:$0xff]
        %v3258 = vld [vmem:[%s43 + $0x10] sm:$0xff]
        %v3259 = vld [vmem:[%s43 + $0x18] sm:$0xff]
        %v3260 = vld [vmem:[%s43 + $0x20] sm:$0xff]
        %v3261 = vld [vmem:[%s43 + $0x28] sm:$0xff]
        %v3262 = vld [vmem:[%s43 + $0x30] sm:$0xff]
        %v3263 = vld [vmem:[%s43 + $0x38] sm:$0xff]
        %v3264 = vld [vmem:[%s43 + $0x40] sm:$0xff]
        %v3265 = vld [vmem:[%s43 + $0x48] sm:$0xff]
        %v3266 = vld [vmem:[%s43 + $0x50] sm:$0xff]
        %v3267 = vld [vmem:[%s43 + $0x58] sm:$0xff]
        %v3268 = vld [vmem:[%s43 + $0x60] sm:$0xff]
        %v3269 = vld [vmem:[%s43 + $0x68] sm:$0xff]
        %v3270 = vld [vmem:[%s43 + $0x70] sm:$0xff]
        %v3271 = vld [vmem:[%s43 + $0x78] sm:$0xff]
        %v3272 = vpack.c.bf16 %v3169, %v3168
        %v3273 = vpack.c.bf16 %v3257, %v3256
        %v3274 = vpack.c.bf16 %v3259, %v3258
        %v3275 = vpack.c.bf16 %v3261, %v3260
        %v3276 = vpack.c.bf16 %v3263, %v3262
        %v3277 = vpack.c.bf16 %v3265, %v3264
        %v3278 = vpack.c.bf16 %v3267, %v3266
        %v3279 = vpack.c.bf16 %v3269, %v3268
        %v3280 = vpack.c.bf16 %v3271, %v3270
        %v3281 = vld [vmem:[#allocation22] sm:$0x1]
        %v3283 = vlaneseq
        %v3284 = vshrl.u32 %v3283, 7
        %v3285 = vsub.s32 0, %v3284
        %v3286 = vrot.slane %v3281, %v3285
        %3288 = vmatprep.subr.bf16.mxu0 0
        %3289 = vmatpush1.bf16.msra.mxu0 %v3273
        %3290 = vmatprep.subr.bf16.mxu0 0
        %3291 = vmatpush1.bf16.msra.mxu0 %v3274
        %3292 = vmatprep.subr.bf16.mxu0 0
        %3293 = vmatpush1.bf16.msra.mxu0 %v3275
        %3294 = vmatprep.subr.bf16.mxu0 0
        %3295 = vmatpush1.bf16.msra.mxu0 %v3276
        %3296 = vmatprep.subr.bf16.mxu0 0
        %3297 = vmatpush1.bf16.msra.mxu0 %v3277
        %3298 = vmatprep.subr.bf16.mxu0 0
        %3299 = vmatpush1.bf16.msra.mxu0 %v3278
        %3300 = vmatprep.subr.bf16.mxu0 0
        %3301 = vmatpush1.bf16.msra.mxu0 %v3279
        %3302 = vmatprep.subr.bf16.mxu0 0
        %3303 = vmatpush1.bf16.msra.mxu0 %v3280
        %3304 = vmatprep.subr.bf16.mxu0 0
        %3305 = vmatpush1.bf16.msra.mxu0 0
        %3306 = vmatprep.subr.bf16.mxu0 0
        %3307 = vmatpush1.bf16.msra.mxu0 0
        %3308 = vmatprep.subr.bf16.mxu0 0
        %3309 = vmatpush1.bf16.msra.mxu0 0
        %3310 = vmatprep.subr.bf16.mxu0 0
        %3311 = vmatpush1.bf16.msra.mxu0 0
        %3312 = vmatprep.subr.bf16.mxu0 0
        %3313 = vmatpush1.bf16.msra.mxu0 0
        %3314 = vmatprep.subr.bf16.mxu0 0
        %3315 = vmatpush1.bf16.msra.mxu0 0
        %3316 = vmatprep.subr.bf16.mxu0 0
        %3317 = vmatpush1.bf16.msra.mxu0 0
        %3318 = vmatprep.subr.bf16.mxu0 0
        %3319 = vmatpush1.bf16.msra.mxu0 0
        %3320 = vmatprep.mubr.bf16.mxu0 0
        %3321 = vmatmul.mubr.bf16.gmra.mrb[0].mxu0 %v3272
        %v3322 = vpop.f32.mrb[0].mxu0
        %v3323 = vadd.f32 %v3286, %v3322
        %v3324 = vpop.f32.mrb[0].mxu0
        %v3325 = vpop.f32.mrb[0].mxu0
        %v3326 = vadd.f32 %v3286, %v3325
        %v3327 = vpop.f32.mrb[0].mxu0
        %3328 = vdwg.mxu0
        %v3329 = vld [vmem:[%s1287] sm:$0xff]
        %v3330 = vld [vmem:[%s1287 + $0x8] sm:$0xff]
        %v3331 = vld [vmem:[#allocation23] sm:$0xff]
        %v3332 = vld [vmem:[#allocation23 + $0x8] sm:$0xff]
        %v3333 = vld [vmem:[#allocation23 + $0x10] sm:$0xff]
        %v3334 = vld [vmem:[#allocation23 + $0x18] sm:$0xff]
        %v3335 = vld [vmem:[#allocation23 + $0x20] sm:$0xff]
        %v3336 = vld [vmem:[#allocation23 + $0x28] sm:$0xff]
        %v3337 = vld [vmem:[#allocation23 + $0x30] sm:$0xff]
        %v3338 = vld [vmem:[#allocation23 + $0x38] sm:$0xff]
        %v3339 = vld [vmem:[#allocation23 + $0x40] sm:$0xff]
        %v3340 = vld [vmem:[#allocation23 + $0x48] sm:$0xff]
        %v3341 = vld [vmem:[#allocation23 + $0x50] sm:$0xff]
        %v3342 = vld [vmem:[#allocation23 + $0x58] sm:$0xff]
        %v3343 = vld [vmem:[#allocation23 + $0x60] sm:$0xff]
        %v3344 = vld [vmem:[#allocation23 + $0x68] sm:$0xff]
        %v3345 = vld [vmem:[#allocation23 + $0x70] sm:$0xff]
        %v3346 = vld [vmem:[#allocation23 + $0x78] sm:$0xff]
        %vm3347 = vcmask 162944
        %v3348 = vsel %vm3347, %v3323, -inf
        %3349 = vmax.xlane.f32.xlu0 %v3348
        %v3350 = vpop.xlane.xlu0 %3349
        %v3351 = vsel %vm3347, %v3326, -inf
        %3352 = vmax.xlane.f32.xlu0 %v3351
        %v3353 = vpop.xlane.xlu0 %3352
        %v3354 = vsub.f32 %v3323, %v3350
        %v3355 = vsub.f32 %v3326, %v3353
        %v3356 = vmul.f32 %v3354, 1.442695
        %v3357 = vpow.pop %v3356
        %v3358 = vmul.f32 %v3355, 1.442695
        %v3359 = vpow.pop %v3358
        %3362 = vrot.lane.b32.xlu0 %v3357, 112
        %v3363 = vpop.permute.xlu0 %3362
        %3364 = vrot.lane.b32.xlu0 %v3359, 112
        %v3365 = vpop.permute.xlu0 %3364
        %vm3368 = vcmask 31744
        %v3369 = vsel %vm3368, %v3363, 0.0
        %3370 = vadd.xlane.f32.xlu0 %v3369
        %v3371 = vpop.xlane.xlu0 %3370
        %v3372 = vsel %vm3368, %v3365, 0.0
        %3373 = vadd.xlane.f32.xlu0 %v3372
        %v3374 = vpop.xlane.xlu0 %3373
        %v3375 = vrcp.pop %v3371
        %v3376 = vmul.f32 %v3357, %v3375
        %v3377 = vrcp.pop %v3374
        %v3378 = vmul.f32 %v3359, %v3377
        %3380 = vset.pattern.permute.xlu0 1
        %3381 = vperm.xlu0 %3380, %v3329
        %v3382 = vpop.permute.xlu0 %3381
        %3385 = vset.pattern.permute.xlu0 1
        %3386 = vperm.xlu0 %3385, %v3330
        %v3387 = vpop.permute.xlu0 %3386
        %v3389 = vrcp.pop %v3382
        %v3390 = vmul.f32 %v3323, %v3389
        %v3391 = vrcp.pop %v3387
        %v3392 = vmul.f32 %v3326, %v3391
        %3393 = vset.pattern.permute.xlu0 0
        %3394 = vperm.xlu0 %3393, %v3329
        %v3395 = vpop.permute.xlu0 %3394
        %3397 = vset.pattern.permute.xlu0 0
        %3398 = vperm.xlu0 %3397, %v3330
        %v3399 = vpop.permute.xlu0 %3398
        %v3401 = vadd.f32 %v3395, %v3390
        %v3402 = vadd.f32 %v3399, %v3392
        %v3403 = vsub.f32 %v3401, 0.5
        %v3404 = vsub.f32 %v3402, 0.5
        %v3405 = vand.u32 2147483647, %v3403
        %v3406 = vand.u32 2147483647, %v3404
        %v3407 = vsub.f32 1.0, %v3405
        %v3408 = vsub.f32 1.0, %v3406
        %v3409 = vmax.f32 %v3407, 0.0
        %v3410 = vmax.f32 %v3408, 0.0
        %3413 = vrot.lane.b32.xlu0 %v3409, 16
        %v3414 = vpop.permute.xlu0 %3413
        %3415 = vrot.lane.b32.xlu0 %v3410, 16
        %v3416 = vpop.permute.xlu0 %3415
        %v3419 = vmul.f32 %v3376, %v3414
        %v3420 = vmul.f32 %v3378, %v3416
        %3423 = vrot.lane.b32.xlu0 %v3419, 112
        %v3424 = vpop.permute.xlu0 %3423
        %3425 = vrot.lane.b32.xlu0 %v3420, 112
        %v3426 = vpop.permute.xlu0 %3425
        %v3429 = vsel %vm3368, %v3424, 0.0
        %3430 = vadd.xlane.f32.xlu0 %v3429
        %v3431 = vpop.xlane.xlu0 %3430
        %v3432 = vsel %vm3368, %v3426, 0.0
        %3433 = vadd.xlane.f32.xlu0 %v3432
        %v3434 = vpop.xlane.xlu0 %3433
        %v3435 = vmul.f32 %v3431, %v3255
        %v3436 = vmul.f32 %v3434, %v3255
        %v3437 = vpack.c.bf16 %v3436, %v3435
        %v3438 = vpack.c.bf16 %v3332, %v3331
        %v3439 = vpack.c.bf16 %v3334, %v3333
        %vm3440 = vcmask 195744
        %v3441 = vsel %vm3440, %v3323, -inf
        %3442 = vmax.xlane.f32.xlu0 %v3441
        %v3443 = vpop.xlane.xlu0 %3442
        %v3444 = vsel %vm3440, %v3326, -inf
        %3445 = vmax.xlane.f32.xlu0 %v3444
        %v3446 = vpop.xlane.xlu0 %3445
        %v3447 = vsub.f32 %v3323, %v3443
        %v3448 = vsub.f32 %v3326, %v3446
        %v3449 = vmul.f32 %v3447, 1.442695
        %v3450 = vpow.pop %v3449
        %v3451 = vmul.f32 %v3448, 1.442695
        %v3452 = vpow.pop %v3451
        %3455 = vrot.lane.b32.xlu0 %v3450, 108
        %v3456 = vpop.permute.xlu0 %3455
        %3457 = vrot.lane.b32.xlu0 %v3452, 108
        %v3458 = vpop.permute.xlu0 %3457
        %v3461 = vsel %vm3368, %v3456, 0.0
        %3462 = vadd.xlane.f32.xlu0 %v3461
        %v3463 = vpop.xlane.xlu0 %3462
        %v3464 = vsel %vm3368, %v3458, 0.0
        %3465 = vadd.xlane.f32.xlu0 %v3464
        %v3466 = vpop.xlane.xlu0 %3465
        %v3467 = vrcp.pop %v3463
        %v3468 = vmul.f32 %v3450, %v3467
        %v3469 = vrcp.pop %v3466
        %v3470 = vmul.f32 %v3452, %v3469
        %v3471 = vmul.f32 %v3468, %v3414
        %v3472 = vmul.f32 %v3470, %v3416
        %3475 = vrot.lane.b32.xlu0 %v3471, 108
        %v3476 = vpop.permute.xlu0 %3475
        %3477 = vrot.lane.b32.xlu0 %v3472, 108
        %v3478 = vpop.permute.xlu0 %3477
        %v3481 = vsel %vm3368, %v3476, 0.0
        %3482 = vadd.xlane.f32.xlu0 %v3481
        %v3483 = vpop.xlane.xlu0 %3482
        %v3484 = vsel %vm3368, %v3478, 0.0
        %3485 = vadd.xlane.f32.xlu0 %v3484
        %v3486 = vpop.xlane.xlu0 %3485
        %v3487 = vmul.f32 %v3483, %v3255
        %v3488 = vmul.f32 %v3486, %v3255
        %v3489 = vpack.c.bf16 %v3488, %v3487
        %v3490 = vpack.c.bf16 %v3336, %v3335
        %v3491 = vpack.c.bf16 %v3338, %v3337
        %3493 = vrot.lane.b32.xlu0 %v3489, 96
        %v3494 = vpop.permute.xlu0 %3493
        %v3496 = vsel %vm1492, %v3494, 0
        %3498 = vmatprep.subr.bf16.mxu0 0
        %3499 = vmatpush1.bf16.msra.mxu0 %v3490
        %3500 = vmatprep.subr.bf16.mxu0 0
        %3501 = vmatpush1.bf16.msra.mxu0 %v3491
        %3502 = vmatprep.subr.bf16.mxu0 0
        %3503 = vmatpush1.bf16.msra.mxu0 0
        %3504 = vmatprep.subr.bf16.mxu0 0
        %3505 = vmatpush1.bf16.msra.mxu0 0
        %3506 = vmatprep.subr.bf16.mxu0 0
        %3507 = vmatpush1.bf16.msra.mxu0 0
        %3508 = vmatprep.subr.bf16.mxu0 0
        %3509 = vmatpush1.bf16.msra.mxu0 0
        %3510 = vmatprep.subr.bf16.mxu0 0
        %3511 = vmatpush1.bf16.msra.mxu0 0
        %3512 = vmatprep.subr.bf16.mxu0 0
        %3513 = vmatpush1.bf16.msra.mxu0 0
        %3514 = vmatprep.subr.bf16.mxu0 0
        %3515 = vmatpush1.bf16.msra.mxu0 0
        %3516 = vmatprep.subr.bf16.mxu0 0
        %3517 = vmatpush1.bf16.msra.mxu0 0
        %3518 = vmatprep.subr.bf16.mxu0 0
        %3519 = vmatpush1.bf16.msra.mxu0 0
        %3520 = vmatprep.subr.bf16.mxu0 0
        %3521 = vmatpush1.bf16.msra.mxu0 0
        %3522 = vmatprep.subr.bf16.mxu0 0
        %3523 = vmatpush1.bf16.msra.mxu0 0
        %3524 = vmatprep.subr.bf16.mxu0 0
        %3525 = vmatpush1.bf16.msra.mxu0 0
        %3526 = vmatprep.subr.bf16.mxu0 0
        %3527 = vmatpush1.bf16.msra.mxu0 0
        %3528 = vmatprep.subr.bf16.mxu0 0
        %3529 = vmatpush1.bf16.msra.mxu0 0
        %3530 = vmatprep.mubr.bf16.mxu0 0
        %3531 = vmatmul.mubr.bf16.gmra.mrb[0].mxu0 %v3496
        %v3532 = vpop.f32.mrb[0].mxu0
        %v3533 = vadd.f32 0.0, %v3532
        %v3534 = vpop.f32.mrb[0].mxu0
        %v3535 = vpop.f32.mrb[0].mxu0
        %v3536 = vadd.f32 0.0, %v3535
        %v3537 = vpop.f32.mrb[0].mxu0
        %3538 = vdwg.mxu0
        %v3540 = vsel %vm1492, %v3437, 0
        %3542 = vmatprep.subr.bf16.mxu0 0
        %3543 = vmatpush1.bf16.msra.mxu0 %v3438
        %3544 = vmatprep.subr.bf16.mxu0 0
        %3545 = vmatpush1.bf16.msra.mxu0 %v3439
        %3546 = vmatprep.subr.bf16.mxu0 0
        %3547 = vmatpush1.bf16.msra.mxu0 0
        %3548 = vmatprep.subr.bf16.mxu0 0
        %3549 = vmatpush1.bf16.msra.mxu0 0
        %3550 = vmatprep.subr.bf16.mxu0 0
        %3551 = vmatpush1.bf16.msra.mxu0 0
        %3552 = vmatprep.subr.bf16.mxu0 0
        %3553 = vmatpush1.bf16.msra.mxu0 0
        %3554 = vmatprep.subr.bf16.mxu0 0
        %3555 = vmatpush1.bf16.msra.mxu0 0
        %3556 = vmatprep.subr.bf16.mxu0 0
        %3557 = vmatpush1.bf16.msra.mxu0 0
        %3558 = vmatprep.subr.bf16.mxu0 0
        %3559 = vmatpush1.bf16.msra.mxu0 0
        %3560 = vmatprep.subr.bf16.mxu0 0
        %3561 = vmatpush1.bf16.msra.mxu0 0
        %3562 = vmatprep.subr.bf16.mxu0 0
        %3563 = vmatpush1.bf16.msra.mxu0 0
        %3564 = vmatprep.subr.bf16.mxu0 0
        %3565 = vmatpush1.bf16.msra.mxu0 0
        %3566 = vmatprep.subr.bf16.mxu0 0
        %3567 = vmatpush1.bf16.msra.mxu0 0
        %3568 = vmatprep.subr.bf16.mxu0 0
        %3569 = vmatpush1.bf16.msra.mxu0 0
        %3570 = vmatprep.subr.bf16.mxu0 0
        %3571 = vmatpush1.bf16.msra.mxu0 0
        %3572 = vmatprep.subr.bf16.mxu0 0
        %3573 = vmatpush1.bf16.msra.mxu0 0
        %3574 = vmatprep.mubr.bf16.mxu0 0
        %3575 = vmatmul.mubr.bf16.gmra.mrb[0].mxu0 %v3540
        %v3576 = vpop.f32.mrb[0].mxu0
        %v3577 = vadd.f32 %v3533, %v3576
        %v3578 = vpop.f32.mrb[0].mxu0
        %v3579 = vpop.f32.mrb[0].mxu0
        %v3580 = vadd.f32 %v3536, %v3579
        %v3581 = vpop.f32.mrb[0].mxu0
        %3582 = vdwg.mxu0
        %vm3583 = vcmask 228544
        %v3584 = vsel %vm3583, %v3323, -inf
        %3585 = vmax.xlane.f32.xlu0 %v3584
        %v3586 = vpop.xlane.xlu0 %3585
        %v3587 = vsel %vm3583, %v3326, -inf
        %3588 = vmax.xlane.f32.xlu0 %v3587
        %v3589 = vpop.xlane.xlu0 %3588
        %v3590 = vsub.f32 %v3323, %v3586
        %v3591 = vsub.f32 %v3326, %v3589
        %v3592 = vmul.f32 %v3590, 1.442695
        %v3593 = vpow.pop %v3592
        %v3594 = vmul.f32 %v3591, 1.442695
        %v3595 = vpow.pop %v3594
        %3598 = vrot.lane.b32.xlu0 %v3593, 104
        %v3599 = vpop.permute.xlu0 %3598
        %3600 = vrot.lane.b32.xlu0 %v3595, 104
        %v3601 = vpop.permute.xlu0 %3600
        %v3604 = vsel %vm3368, %v3599, 0.0
        %3605 = vadd.xlane.f32.xlu0 %v3604
        %v3606 = vpop.xlane.xlu0 %3605
        %v3607 = vsel %vm3368, %v3601, 0.0
        %3608 = vadd.xlane.f32.xlu0 %v3607
        %v3609 = vpop.xlane.xlu0 %3608
        %v3610 = vrcp.pop %v3606
        %v3611 = vmul.f32 %v3593, %v3610
        %v3612 = vrcp.pop %v3609
        %v3613 = vmul.f32 %v3595, %v3612
        %v3614 = vmul.f32 %v3611, %v3414
        %v3615 = vmul.f32 %v3613, %v3416
        %3618 = vrot.lane.b32.xlu0 %v3614, 104
        %v3619 = vpop.permute.xlu0 %3618
        %3620 = vrot.lane.b32.xlu0 %v3615, 104
        %v3621 = vpop.permute.xlu0 %3620
        %v3624 = vsel %vm3368, %v3619, 0.0
        %3625 = vadd.xlane.f32.xlu0 %v3624
        %v3626 = vpop.xlane.xlu0 %3625
        %v3627 = vsel %vm3368, %v3621, 0.0
        %3628 = vadd.xlane.f32.xlu0 %v3627
        %v3629 = vpop.xlane.xlu0 %3628
        %v3630 = vmul.f32 %v3626, %v3255
        %v3631 = vmul.f32 %v3629, %v3255
        %v3632 = vpack.c.bf16 %v3631, %v3630
        %v3633 = vpack.c.bf16 %v3340, %v3339
        %v3634 = vpack.c.bf16 %v3342, %v3341
        %3636 = vrot.lane.b32.xlu0 %v3632, 64
        %v3637 = vpop.permute.xlu0 %3636
        %v3639 = vsel %vm1492, %v3637, 0
        %3641 = vmatprep.subr.bf16.mxu0 0
        %3642 = vmatpush1.bf16.msra.mxu0 %v3633
        %3643 = vmatprep.subr.bf16.mxu0 0
        %3644 = vmatpush1.bf16.msra.mxu0 %v3634
        %3645 = vmatprep.subr.bf16.mxu0 0
        %3646 = vmatpush1.bf16.msra.mxu0 0
        %3647 = vmatprep.subr.bf16.mxu0 0
        %3648 = vmatpush1.bf16.msra.mxu0 0
        %3649 = vmatprep.subr.bf16.mxu0 0
        %3650 = vmatpush1.bf16.msra.mxu0 0
        %3651 = vmatprep.subr.bf16.mxu0 0
        %3652 = vmatpush1.bf16.msra.mxu0 0
        %3653 = vmatprep.subr.bf16.mxu0 0
        %3654 = vmatpush1.bf16.msra.mxu0 0
        %3655 = vmatprep.subr.bf16.mxu0 0
        %3656 = vmatpush1.bf16.msra.mxu0 0
        %3657 = vmatprep.subr.bf16.mxu0 0
        %3658 = vmatpush1.bf16.msra.mxu0 0
        %3659 = vmatprep.subr.bf16.mxu0 0
        %3660 = vmatpush1.bf16.msra.mxu0 0
        %3661 = vmatprep.subr.bf16.mxu0 0
        %3662 = vmatpush1.bf16.msra.mxu0 0
        %3663 = vmatprep.subr.bf16.mxu0 0
        %3664 = vmatpush1.bf16.msra.mxu0 0
        %3665 = vmatprep.subr.bf16.mxu0 0
        %3666 = vmatpush1.bf16.msra.mxu0 0
        %3667 = vmatprep.subr.bf16.mxu0 0
        %3668 = vmatpush1.bf16.msra.mxu0 0
        %3669 = vmatprep.subr.bf16.mxu0 0
        %3670 = vmatpush1.bf16.msra.mxu0 0
        %3671 = vmatprep.subr.bf16.mxu0 0
        %3672 = vmatpush1.bf16.msra.mxu0 0
        %3673 = vmatprep.mubr.bf16.mxu0 0
        %3674 = vmatmul.mubr.bf16.gmra.mrb[0].mxu0 %v3639
        %v3675 = vpop.f32.mrb[0].mxu0
        %v3676 = vadd.f32 0.0, %v3675
        %v3677 = vpop.f32.mrb[0].mxu0
        %v3678 = vpop.f32.mrb[0].mxu0
        %v3679 = vadd.f32 0.0, %v3678
        %v3680 = vpop.f32.mrb[0].mxu0
        %3681 = vdwg.mxu0
        %v3682 = vadd.f32 %v3577, %v3676
        %v3683 = vadd.f32 %v3580, %v3679
        %vm3684 = vcmask 261344
        %v3685 = vsel %vm3684, %v3323, -inf
        %3686 = vmax.xlane.f32.xlu0 %v3685
        %v3687 = vpop.xlane.xlu0 %3686
        %v3688 = vsel %vm3684, %v3326, -inf
        %3689 = vmax.xlane.f32.xlu0 %v3688
        %v3690 = vpop.xlane.xlu0 %3689
        %v3691 = vsub.f32 %v3323, %v3687
        %v3692 = vsub.f32 %v3326, %v3690
        %v3693 = vmul.f32 %v3691, 1.442695
        %v3694 = vpow.pop %v3693
        %v3695 = vmul.f32 %v3692, 1.442695
        %v3696 = vpow.pop %v3695
        %3699 = vrot.lane.b32.xlu0 %v3694, 100
        %v3700 = vpop.permute.xlu0 %3699
        %3701 = vrot.lane.b32.xlu0 %v3696, 100
        %v3702 = vpop.permute.xlu0 %3701
        %v3705 = vsel %vm3368, %v3700, 0.0
        %3706 = vadd.xlane.f32.xlu0 %v3705
        %v3707 = vpop.xlane.xlu0 %3706
        %v3708 = vsel %vm3368, %v3702, 0.0
        %3709 = vadd.xlane.f32.xlu0 %v3708
        %v3710 = vpop.xlane.xlu0 %3709
        %v3711 = vrcp.pop %v3707
        %v3712 = vmul.f32 %v3694, %v3711
        %v3713 = vrcp.pop %v3710
        %v3714 = vmul.f32 %v3696, %v3713
        %v3715 = vmul.f32 %v3712, %v3414
        %v3716 = vmul.f32 %v3714, %v3416
        %3719 = vrot.lane.b32.xlu0 %v3715, 100
        %v3720 = vpop.permute.xlu0 %3719
        %3721 = vrot.lane.b32.xlu0 %v3716, 100
        %v3722 = vpop.permute.xlu0 %3721
        %v3725 = vsel %vm3368, %v3720, 0.0
        %3726 = vadd.xlane.f32.xlu0 %v3725
        %v3727 = vpop.xlane.xlu0 %3726
        %v3728 = vsel %vm3368, %v3722, 0.0
        %3729 = vadd.xlane.f32.xlu0 %v3728
        %v3730 = vpop.xlane.xlu0 %3729
        %v3731 = vmul.f32 %v3727, %v3255
        %v3732 = vmul.f32 %v3730, %v3255
        %v3733 = vpack.c.bf16 %v3732, %v3731
        %v3734 = vpack.c.bf16 %v3344, %v3343
        %v3735 = vpack.c.bf16 %v3346, %v3345
        %3737 = vrot.lane.b32.xlu0 %v3733, 32
        %v3738 = vpop.permute.xlu0 %3737
        %v3740 = vsel %vm1492, %v3738, 0
        %3742 = vmatprep.subr.bf16.mxu0 0
        %3743 = vmatpush1.bf16.msra.mxu0 %v3734
        %3744 = vmatprep.subr.bf16.mxu0 0
        %3745 = vmatpush1.bf16.msra.mxu0 %v3735
        %3746 = vmatprep.subr.bf16.mxu0 0
        %3747 = vmatpush1.bf16.msra.mxu0 0
        %3748 = vmatprep.subr.bf16.mxu0 0
        %3749 = vmatpush1.bf16.msra.mxu0 0
        %3750 = vmatprep.subr.bf16.mxu0 0
        %3751 = vmatpush1.bf16.msra.mxu0 0
        %3752 = vmatprep.subr.bf16.mxu0 0
        %3753 = vmatpush1.bf16.msra.mxu0 0
        %3754 = vmatprep.subr.bf16.mxu0 0
        %3755 = vmatpush1.bf16.msra.mxu0 0
        %3756 = vmatprep.subr.bf16.mxu0 0
        %3757 = vmatpush1.bf16.msra.mxu0 0
        %3758 = vmatprep.subr.bf16.mxu0 0
        %3759 = vmatpush1.bf16.msra.mxu0 0
        %3760 = vmatprep.subr.bf16.mxu0 0
        %3761 = vmatpush1.bf16.msra.mxu0 0
        %3762 = vmatprep.subr.bf16.mxu0 0
        %3763 = vmatpush1.bf16.msra.mxu0 0
        %3764 = vmatprep.subr.bf16.mxu0 0
        %3765 = vmatpush1.bf16.msra.mxu0 0
        %3766 = vmatprep.subr.bf16.mxu0 0
        %3767 = vmatpush1.bf16.msra.mxu0 0
        %3768 = vmatprep.subr.bf16.mxu0 0
        %3769 = vmatpush1.bf16.msra.mxu0 0
        %3770 = vmatprep.subr.bf16.mxu0 0
        %3771 = vmatpush1.bf16.msra.mxu0 0
        %3772 = vmatprep.subr.bf16.mxu0 0
        %3773 = vmatpush1.bf16.msra.mxu0 0
        %3774 = vmatprep.mubr.bf16.mxu0 0
        %3775 = vmatmul.mubr.bf16.gmra.mrb[0].mxu0 %v3740
        %v3776 = vpop.f32.mrb[0].mxu0
        %v3777 = vadd.f32 0.0, %v3776
        %v3778 = vpop.f32.mrb[0].mxu0
        %v3779 = vpop.f32.mrb[0].mxu0
        %v3780 = vadd.f32 0.0, %v3779
        %v3781 = vpop.f32.mrb[0].mxu0
        %3782 = vdwg.mxu0
        %v3783 = vadd.f32 %v3682, %v3777
        %v3784 = vadd.f32 %v3683, %v3780
        %v3785 = vld [vmem:[#allocation25] sm:$0x1]
        %v3787 = vlaneseq
        %v3788 = vshrl.u32 %v3787, 7
        %v3789 = vsub.s32 0, %v3788
        %v3790 = vrot.slane %v3785, %v3789
        %v3792 = vadd.f32 %v3783, %v3790
        %v3793 = vadd.f32 %v3784, %v3790
        %v3794 = vadd.f32 %v3166, %v3792
        %v3795 = vadd.f32 %v3167, %v3793
        %3796 = vadd.xlane.f32.xlu0 %v3794
        %v3797 = vpop.xlane.xlu0 %3796
        %3798 = vadd.xlane.f32.xlu0 %v3795
        %v3799 = vpop.xlane.xlu0 %3798
        %v3800 = vmul.f32 %v3797, %v2190
        %v3801 = vmul.f32 %v3799, %v2190
        %v3802 = vsub.f32 %v3794, %v3800
        %v3803 = vsub.f32 %v3795, %v3801
        %v3804 = vmul.f32 %v3802, %v3802
        %v3805 = vmul.f32 %v3803, %v3803
        %3806 = vadd.xlane.f32.xlu0 %v3804
        %v3807 = vpop.xlane.xlu0 %3806
        %3808 = vadd.xlane.f32.xlu0 %v3805
        %v3809 = vpop.xlane.xlu0 %3808
        %v3810 = vmul.f32 %v3807, %v2190
        %v3811 = vmul.f32 %v3809, %v2190
        %v3812 = vadd.f32 %v3810, 1e-05
        %v3813 = vadd.f32 %v3811, 1e-05
        %v3814 = vrsqrt.pop %v3812
        %v3815 = vrsqrt.pop %v3813
        %v3816 = vmul.f32 %v3802, %v3814
        %v3817 = vmul.f32 %v3803, %v3815
        %v3818 = vlaneseq
        %v3819 = vshrl.u32 %v3818, 7
        %v3820 = vsub.s32 4, %v3819
        %v3821 = vrot.slane %v1294, %v3820
        %v3822 = vmul.f32 %v3816, %v3821
        %v3823 = vmul.f32 %v3817, %v3821
        %v3824 = vlaneseq
        %v3825 = vshrl.u32 %v3824, 7
        %v3826 = vsub.s32 5, %v3825
        %v3827 = vrot.slane %v1294, %v3826
        %v3828 = vadd.f32 %v3822, %v3827
        %v3829 = vadd.f32 %v3823, %v3827
        %v3830 = vld [vmem:[#allocation26] sm:$0xff]
        %v3831 = vld [vmem:[#allocation26 + $0x8] sm:$0xff]
        %v3832 = vld [vmem:[#allocation26 + $0x10] sm:$0xff]
        %v3833 = vld [vmem:[#allocation26 + $0x18] sm:$0xff]
        %v3834 = vld [vmem:[#allocation26 + $0x20] sm:$0xff]
        %v3835 = vld [vmem:[#allocation26 + $0x28] sm:$0xff]
        %v3836 = vld [vmem:[#allocation26 + $0x30] sm:$0xff]
        %v3837 = vld [vmem:[#allocation26 + $0x38] sm:$0xff]
        %v3838 = vld [vmem:[#allocation26 + $0x40] sm:$0xff]
        %v3839 = vld [vmem:[#allocation26 + $0x48] sm:$0xff]
        %v3840 = vld [vmem:[#allocation26 + $0x50] sm:$0xff]
        %v3841 = vld [vmem:[#allocation26 + $0x58] sm:$0xff]
        %v3842 = vld [vmem:[#allocation26 + $0x60] sm:$0xff]
        %v3843 = vld [vmem:[#allocation26 + $0x68] sm:$0xff]
        %v3844 = vld [vmem:[#allocation26 + $0x70] sm:$0xff]
        %v3845 = vld [vmem:[#allocation26 + $0x78] sm:$0xff]
        %v3846 = vld [vmem:[#allocation26 + $0x80] sm:$0xff]
        %v3847 = vld [vmem:[#allocation26 + $0x88] sm:$0xff]
        %v3848 = vld [vmem:[#allocation26 + $0x90] sm:$0xff]
        %v3849 = vld [vmem:[#allocation26 + $0x98] sm:$0xff]
        %v3850 = vld [vmem:[#allocation26 + $0xa0] sm:$0xff]
        %v3851 = vld [vmem:[#allocation26 + $0xa8] sm:$0xff]
        %v3852 = vld [vmem:[#allocation26 + $0xb0] sm:$0xff]
        %v3853 = vld [vmem:[#allocation26 + $0xb8] sm:$0xff]
        %v3854 = vld [vmem:[#allocation26 + $0xc0] sm:$0xff]
        %v3855 = vld [vmem:[#allocation26 + $0xc8] sm:$0xff]
        %v3856 = vld [vmem:[#allocation26 + $0xd0] sm:$0xff]
        %v3857 = vld [vmem:[#allocation26 + $0xd8] sm:$0xff]
        %v3858 = vld [vmem:[#allocation26 + $0xe0] sm:$0xff]
        %v3859 = vld [vmem:[#allocation26 + $0xe8] sm:$0xff]
        %v3860 = vld [vmem:[#allocation26 + $0xf0] sm:$0xff]
        %v3861 = vld [vmem:[#allocation26 + $0xf8] sm:$0xff]
        %v3862 = vpack.c.bf16 %v3829, %v3828
        %v3863 = vpack.c.bf16 %v3832, %v3830
        %v3864 = vpack.c.bf16 %v3833, %v3831
        %v3865 = vpack.c.bf16 %v3836, %v3834
        %v3866 = vpack.c.bf16 %v3837, %v3835
        %v3867 = vpack.c.bf16 %v3840, %v3838
        %v3868 = vpack.c.bf16 %v3841, %v3839
        %v3869 = vpack.c.bf16 %v3844, %v3842
        %v3870 = vpack.c.bf16 %v3845, %v3843
        %v3871 = vpack.c.bf16 %v3848, %v3846
        %v3872 = vpack.c.bf16 %v3849, %v3847
        %v3873 = vpack.c.bf16 %v3852, %v3850
        %v3874 = vpack.c.bf16 %v3853, %v3851
        %v3875 = vpack.c.bf16 %v3856, %v3854
        %v3876 = vpack.c.bf16 %v3857, %v3855
        %v3877 = vpack.c.bf16 %v3860, %v3858
        %v3878 = vpack.c.bf16 %v3861, %v3859
        %v3879 = vld [vmem:[#allocation28] sm:$0x3]
        %v3881 = vlaneseq
        %v3882 = vshrl.u32 %v3881, 7
        %v3883 = vsub.s32 0, %v3882
        %v3884 = vrot.slane %v3879, %v3883
        %v3885 = vlaneseq
        %v3886 = vshrl.u32 %v3885, 7
        %v3887 = vsub.s32 1, %v3886
        %v3888 = vrot.slane %v3879, %v3887
        %3891 = vmatprep.subr.bf16.mxu0 %v3864
        %3892 = vmatpush1.bf16.msra.mxu0 %v3863
        %3893 = vmatprep.subr.bf16.mxu0 %v3866
        %3894 = vmatpush1.bf16.msra.mxu0 %v3865
        %3895 = vmatprep.subr.bf16.mxu0 %v3868
        %3896 = vmatpush1.bf16.msra.mxu0 %v3867
        %3897 = vmatprep.subr.bf16.mxu0 %v3870
        %3898 = vmatpush1.bf16.msra.mxu0 %v3869
        %3899 = vmatprep.subr.bf16.mxu0 %v3872
        %3900 = vmatpush1.bf16.msra.mxu0 %v3871
        %3901 = vmatprep.subr.bf16.mxu0 %v3874
        %3902 = vmatpush1.bf16.msra.mxu0 %v3873
        %3903 = vmatprep.subr.bf16.mxu0 %v3876
        %3904 = vmatpush1.bf16.msra.mxu0 %v3875
        %3905 = vmatprep.subr.bf16.mxu0 %v3878
        %3906 = vmatpush1.bf16.msra.mxu0 %v3877
        %3907 = vmatprep.subr.bf16.mxu0 0
        %3908 = vmatpush1.bf16.msra.mxu0 0
        %3909 = vmatprep.subr.bf16.mxu0 0
        %3910 = vmatpush1.bf16.msra.mxu0 0
        %3911 = vmatprep.subr.bf16.mxu0 0
        %3912 = vmatpush1.bf16.msra.mxu0 0
        %3913 = vmatprep.subr.bf16.mxu0 0
        %3914 = vmatpush1.bf16.msra.mxu0 0
        %3915 = vmatprep.subr.bf16.mxu0 0
        %3916 = vmatpush1.bf16.msra.mxu0 0
        %3917 = vmatprep.subr.bf16.mxu0 0
        %3918 = vmatpush1.bf16.msra.mxu0 0
        %3919 = vmatprep.subr.bf16.mxu0 0
        %3920 = vmatpush1.bf16.msra.mxu0 0
        %3921 = vmatprep.subr.bf16.mxu0 0
        %3922 = vmatpush1.bf16.msra.mxu0 0
        %3923 = vmatprep.mubr.bf16.mxu0 0
        %3924 = vmatmul.mubr.bf16.gmra.mrb[0].mxu0 %v3862
        %v3925 = vpop.f32.mrb[0].mxu0
        %v3926 = vadd.f32 %v3884, %v3925
        %v3927 = vpop.f32.mrb[0].mxu0
        %v3928 = vadd.f32 %v3888, %v3927
        %v3929 = vpop.f32.mrb[0].mxu0
        %v3930 = vadd.f32 %v3884, %v3929
        %v3931 = vpop.f32.mrb[0].mxu0
        %v3932 = vadd.f32 %v3888, %v3931
        %3933 = vdwg.mxu0
        %v3934 = vmax.f32 %v3926, 0.0
        %v3935 = vmax.f32 %v3928, 0.0
        %v3936 = vmax.f32 %v3930, 0.0
        %v3937 = vmax.f32 %v3932, 0.0
        %v3938 = vld [vmem:[#allocation29] sm:$0xff]
        %v3939 = vld [vmem:[#allocation29 + $0x8] sm:$0xff]
        %v3940 = vld [vmem:[#allocation29 + $0x10] sm:$0xff]
        %v3941 = vld [vmem:[#allocation29 + $0x18] sm:$0xff]
        %v3942 = vld [vmem:[#allocation29 + $0x20] sm:$0xff]
        %v3943 = vld [vmem:[#allocation29 + $0x28] sm:$0xff]
        %v3944 = vld [vmem:[#allocation29 + $0x30] sm:$0xff]
        %v3945 = vld [vmem:[#allocation29 + $0x38] sm:$0xff]
        %v3946 = vld [vmem:[#allocation29 + $0x40] sm:$0xff]
        %v3947 = vld [vmem:[#allocation29 + $0x48] sm:$0xff]
        %v3948 = vld [vmem:[#allocation29 + $0x50] sm:$0xff]
        %v3949 = vld [vmem:[#allocation29 + $0x58] sm:$0xff]
        %v3950 = vld [vmem:[#allocation29 + $0x60] sm:$0xff]
        %v3951 = vld [vmem:[#allocation29 + $0x68] sm:$0xff]
        %v3952 = vld [vmem:[#allocation29 + $0x70] sm:$0xff]
        %v3953 = vld [vmem:[#allocation29 + $0x78] sm:$0xff]
        %v3954 = vld [vmem:[#allocation29 + $0x80] sm:$0xff]
        %v3955 = vld [vmem:[#allocation29 + $0x88] sm:$0xff]
        %v3956 = vld [vmem:[#allocation29 + $0x90] sm:$0xff]
        %v3957 = vld [vmem:[#allocation29 + $0x98] sm:$0xff]
        %v3958 = vld [vmem:[#allocation29 + $0xa0] sm:$0xff]
        %v3959 = vld [vmem:[#allocation29 + $0xa8] sm:$0xff]
        %v3960 = vld [vmem:[#allocation29 + $0xb0] sm:$0xff]
        %v3961 = vld [vmem:[#allocation29 + $0xb8] sm:$0xff]
        %v3962 = vld [vmem:[#allocation29 + $0xc0] sm:$0xff]
        %v3963 = vld [vmem:[#allocation29 + $0xc8] sm:$0xff]
        %v3964 = vld [vmem:[#allocation29 + $0xd0] sm:$0xff]
        %v3965 = vld [vmem:[#allocation29 + $0xd8] sm:$0xff]
        %v3966 = vld [vmem:[#allocation29 + $0xe0] sm:$0xff]
        %v3967 = vld [vmem:[#allocation29 + $0xe8] sm:$0xff]
        %v3968 = vld [vmem:[#allocation29 + $0xf0] sm:$0xff]
        %v3969 = vld [vmem:[#allocation29 + $0xf8] sm:$0xff]
        %v3970 = vpack.c.bf16 %v3936, %v3934
        %v3971 = vpack.c.bf16 %v3937, %v3935
        %v3972 = vpack.c.bf16 %v3939, %v3938
        %v3973 = vpack.c.bf16 %v3941, %v3940
        %v3974 = vpack.c.bf16 %v3943, %v3942
        %v3975 = vpack.c.bf16 %v3945, %v3944
        %v3976 = vpack.c.bf16 %v3947, %v3946
        %v3977 = vpack.c.bf16 %v3949, %v3948
        %v3978 = vpack.c.bf16 %v3951, %v3950
        %v3979 = vpack.c.bf16 %v3953, %v3952
        %v3980 = vpack.c.bf16 %v3955, %v3954
        %v3981 = vpack.c.bf16 %v3957, %v3956
        %v3982 = vpack.c.bf16 %v3959, %v3958
        %v3983 = vpack.c.bf16 %v3961, %v3960
        %v3984 = vpack.c.bf16 %v3963, %v3962
        %v3985 = vpack.c.bf16 %v3965, %v3964
        %v3986 = vpack.c.bf16 %v3967, %v3966
        %v3987 = vpack.c.bf16 %v3969, %v3968
        %v3988 = vld [vmem:[#allocation31] sm:$0x1]
        %v3990 = vlaneseq
        %v3991 = vshrl.u32 %v3990, 7
        %v3992 = vsub.s32 0, %v3991
        %v3993 = vrot.slane %v3988, %v3992
        %3995 = vmatprep.subr.bf16.mxu0 0
        %3996 = vmatpush1.bf16.msra.mxu0 %v3972
        %3997 = vmatprep.subr.bf16.mxu0 0
        %3998 = vmatpush1.bf16.msra.mxu0 %v3973
        %3999 = vmatprep.subr.bf16.mxu0 0
        %4000 = vmatpush1.bf16.msra.mxu0 %v3974
        %4001 = vmatprep.subr.bf16.mxu0 0
        %4002 = vmatpush1.bf16.msra.mxu0 %v3975
        %4003 = vmatprep.subr.bf16.mxu0 0
        %4004 = vmatpush1.bf16.msra.mxu0 %v3976
        %4005 = vmatprep.subr.bf16.mxu0 0
        %4006 = vmatpush1.bf16.msra.mxu0 %v3977
        %4007 = vmatprep.subr.bf16.mxu0 0
        %4008 = vmatpush1.bf16.msra.mxu0 %v3978
        %4009 = vmatprep.subr.bf16.mxu0 0
        %4010 = vmatpush1.bf16.msra.mxu0 %v3979
        %4011 = vmatprep.subr.bf16.mxu0 0
        %4012 = vmatpush1.bf16.msra.mxu0 %v3980
        %4013 = vmatprep.subr.bf16.mxu0 0
        %4014 = vmatpush1.bf16.msra.mxu0 %v3981
        %4015 = vmatprep.subr.bf16.mxu0 0
        %4016 = vmatpush1.bf16.msra.mxu0 %v3982
        %4017 = vmatprep.subr.bf16.mxu0 0
        %4018 = vmatpush1.bf16.msra.mxu0 %v3983
        %4019 = vmatprep.subr.bf16.mxu0 0
        %4020 = vmatpush1.bf16.msra.mxu0 %v3984
        %4021 = vmatprep.subr.bf16.mxu0 0
        %4022 = vmatpush1.bf16.msra.mxu0 %v3985
        %4023 = vmatprep.subr.bf16.mxu0 0
        %4024 = vmatpush1.bf16.msra.mxu0 %v3986
        %4025 = vmatprep.subr.bf16.mxu0 0
        %4026 = vmatpush1.bf16.msra.mxu0 %v3987
        %4027 = vmatprep.mubr.bf16.mxu0 %v3971
        %4028 = vmatmul.mubr.bf16.gmra.mrb[0].mxu0 %v3970
        %v4029 = vpop.f32.mrb[0].mxu0
        %v4030 = vadd.f32 %v3993, %v4029
        %v4031 = vpop.f32.mrb[0].mxu0
        %v4032 = vpop.f32.mrb[0].mxu0
        %v4033 = vadd.f32 %v3993, %v4032
        %v4034 = vpop.f32.mrb[0].mxu0
        %4035 = vdwg.mxu0
        %v4036 = vadd.f32 %v3828, %v4030
        %v4037 = vadd.f32 %v3829, %v4033
        %4038 = vadd.xlane.f32.xlu0 %v4036
        %v4039 = vpop.xlane.xlu0 %4038
        %4040 = vadd.xlane.f32.xlu0 %v4037
        %v4041 = vpop.xlane.xlu0 %4040
        %v4042 = vmul.f32 %v4039, %v2190
        %v4043 = vmul.f32 %v4041, %v2190
        %v4044 = vsub.f32 %v4036, %v4042
        %v4045 = vsub.f32 %v4037, %v4043
        %v4046 = vmul.f32 %v4044, %v4044
        %v4047 = vmul.f32 %v4045, %v4045
        %4048 = vadd.xlane.f32.xlu0 %v4046
        %v4049 = vpop.xlane.xlu0 %4048
        %4050 = vadd.xlane.f32.xlu0 %v4047
        %v4051 = vpop.xlane.xlu0 %4050
        %v4052 = vmul.f32 %v4049, %v2190
        %v4053 = vmul.f32 %v4051, %v2190
        %v4054 = vadd.f32 %v4052, 1e-05
        %v4055 = vadd.f32 %v4053, 1e-05
        %v4056 = vrsqrt.pop %v4054
        %v4057 = vrsqrt.pop %v4055
        %v4058 = vmul.f32 %v4044, %v4056
        %v4059 = vmul.f32 %v4045, %v4057
        %v4060 = vlaneseq
        %v4061 = vshrl.u32 %v4060, 7
        %v4062 = vsub.s32 6, %v4061
        %v4063 = vrot.slane %v1294, %v4062
        %v4064 = vmul.f32 %v4058, %v4063
        %v4065 = vmul.f32 %v4059, %v4063
        %v4066 = vlaneseq
        %v4067 = vshrl.u32 %v4066, 7
        %v4068 = vsub.s32 7, %v4067
        %v4069 = vrot.slane %v1294, %v4068
        %v4070 = vadd.f32 %v4064, %v4069
        %v4071 = vadd.f32 %v4065, %v4069
        %4072 = vst [vmem:[%s1257] sm:$0xff] %v4070
        %4073 = vst [vmem:[%s1257 + $0x8] sm:$0xff] %v4071
        %s4074 = sand.u32 %s758, 1
        %s4075 = scalar_lea.sflag [#allocation4], %s4074
        %s4076 = sand.u32 %s758, 1
        %s4077 = smul.addr %s4076, 16
        %s4078 = scalar_lea.vmem [#allocation32], %s4077
        // Predicated region
        $region217: #{decoder_layer_forward.1} parent=139 // pred_check
          %p4079 = pneg %p768
        $region218: #{decoder_layer_forward.1} parent=139 // pred_check_branch
          %4081 = sbr.rel (%p4079) target = $region220
        $region219: #{decoder_layer_forward.1} parent=139 // pred_region
          %s4083 = ssub.s32 256, 256
          %4084 = vsyncadd %s4075, %s4083
          %s4085 = smul.addr %s85, 2
          %s4086 = smul.addr %s4085, 128
          %s4087 = scalar_lea.hbm %s61, %s4086
          %s4088 = sshll.u32 %s4078, 4
          %s4089 = int_to_ptr.vmem [resolvable:$true] %s4088
          %4094 = dma.vmem_to_hbm [thread:$0]  %s4089, 256, %s4087, %s4075, 128, 128, 8
        $region220: #{decoder_layer_forward.1} parent=139 // pred_fallthru
          _
      $region140: #{decoder_layer_forward.1} parent=5 // pred_fallthru
        _
      %p4095 = scmp.le.s32.totalorder 2, %s80
      // Predicated region
      $region221: #{decoder_layer_forward.1} parent=5 // pred_check
        %p4096 = pneg %p4095
      $region222: #{decoder_layer_forward.1} parent=5 // pred_check_branch
        %4098 = sbr.rel (%p4096) target = $region224
      $region223: #{decoder_layer_forward.1} parent=5 // pred_region
        %s4099 = ssub.s32 %s80, 2
        // Predicated region
        $region225: #{decoder_layer_forward.1} parent=223 // pred_check
          %p4100 = pneg %p774
        $region226: #{decoder_layer_forward.1} parent=223 // pred_check_branch
          %4102 = sbr.rel (%p4100) target = $region228
        $region227: #{decoder_layer_forward.1} parent=223 // pred_region
          %s4103 = sand.u32 %s759, 1
          %s4104 = scalar_lea.sflag [#allocation4], %s4103
          %s4105 = sand.u32 %s759, 1
          %s4106 = smul.addr %s4105, 16
          %s4107 = scalar_lea.vmem [#allocation32], %s4106
          %4108 = dma.done %s4104, 256
        $region228: #{decoder_layer_forward.1} parent=223 // pred_fallthru
          _
      $region224: #{decoder_layer_forward.1} parent=5 // pred_fallthru
        _
    $region6: #{decoder_layer_forward.1} parent=1 // loop_footer
      %s84 = sadd.s32 1, %s80
    $region7: #{decoder_layer_forward.1} parent=1 // loop_footer_branch
      %79 = sbr.rel target = $region3
    $region8: #{decoder_layer_forward.1} parent=1 // loop_exit
      _
    %4109 = vsyncpa [#allocation3], 1
    %s4110 = scalar_lea.sflag [#allocation3], 1
    %4111 = vsyncpa %s4110, 1
    %4112 = vsyncpa [#allocation6], 1
    %4113 = vsyncpa [#allocation9], 1
    %4114 = vsyncpa [#allocation12], 1
    %4115 = vsyncpa [#allocation15], 1
    %4116 = vsyncpa [#allocation18], 1
    %4117 = vsyncpa [#allocation21], 1
    %4118 = vsyncpa [#allocation24], 1
    %4119 = vsyncpa [#allocation27], 1
    %4120 = vsyncpa [#allocation30], 1
    %4121 = vsyncpa [#allocation4], 1
    %s4122 = scalar_lea.sflag [#allocation4], 1
    %4123 = vsyncpa %s4122, 1

</llo_original>
